<compile_context>
chip_gen: v7x
topology: tpu7x:2x2x1
jax: 0.10.0
libtpu: 0.0.40
codegen_flags: <defaults>
</compile_context>

<pallas_src>
import jax
import jax.numpy as jnp
from jax import lax
from jax.experimental import pallas as pl
from jax.experimental.pallas import tpu as pltpu


# ----------------------------- fused Pallas kernel -------------------------- #

def _make_fcn_kernel(H, W, C, O):
    H2, W2 = H - 2, W - 2

    def kernel(xp_ref, w1_ref, b1_ref, w2_ref, b2_ref, out_ref):
        # xp_ref : (1, H+2, W+2) VMEM  zero-padded input, one batch element
        # w1_ref : (C, 9)        SMEM  w1[c, kh*3 + kw]
        # b1_ref : (C,)          SMEM
        # w2_ref : (O, C*9)      SMEM  w2[o, c*9 + kh*3 + kw]
        # b2_ref : (O,)          SMEM
        # out_ref: (1, 1, O)     VMEM
        xp = xp_ref[0]                                        # (H+2, W+2)

        # ---- layer 1: Conv2d(1, C, 3x3, padding='same') + ReLU ----
        # 'same' conv with 1 input channel == 9 scaled shifted copies of the
        # padded input; taps are in-VMEM slices, no im2col materialization.
        taps1 = [xp[kh:kh + H, kw:kw + W]                     # (H, W) each
                 for kh in range(3) for kw in range(3)]
        y1 = []
        for c in range(C):
            acc = jnp.full((H, W), b1_ref[c], jnp.float32)
            for k in range(9):
                acc = acc + w1_ref[c, k] * taps1[k]
            y1.append(jnp.maximum(acc, 0.0))                  # stays on-chip

        # ---- layer 2: Conv2d(C, O, 3x3, valid) + ReLU + global max ----
        accs = [jnp.full((H2, W2), b2_ref[o], jnp.float32) for o in range(O)]
        for c in range(C):
            for kh in range(3):
                for kw in range(3):
                    s = y1[c][kh:kh + H2, kw:kw + W2]         # shifted view
                    idx = c * 9 + kh * 3 + kw
                    for o in range(O):
                        accs[o] = accs[o] + w2_ref[o, idx] * s
        # AdaptiveMaxPool2d((1,1)) == global spatial max (after ReLU).
        outs = [jnp.max(jnp.maximum(a, 0.0), keepdims=True) for a in accs]  # (1,1)
        out_ref[0] = jnp.concatenate(outs, axis=1)            # (1, O)

    return kernel


# --------------------------------- wrapper ---------------------------------- #

@jax.jit
def fcn_forward(x, w1, b1, w2, b2):
    """x: (N,1,H,W) NCHW.  w1: (C,1,3,3), b1: (C,), w2: (O,C,3,3), b2: (O,)."""
    n, cin, h, w = x.shape
    assert cin == 1
    c = w1.shape[0]
    o = w2.shape[0]
    h2, w2_sp = h - 2, w - 2

    # Only HBM-side prep: zero-pad the single input channel ('same' padding).
    xp = jnp.pad(x[:, 0].astype(jnp.float32), ((0, 0), (1, 1), (1, 1)))  # (N,H+2,W+2)
    w1t = w1.reshape(c, 9).astype(jnp.float32)            # idx = kh*3 + kw
    w2t = w2.reshape(o, c * 9).astype(jnp.float32)        # idx = c*9 + kh*3 + kw

    smem = pl.BlockSpec(memory_space=pltpu.MemorySpace.SMEM)

    flops = 2 * n * (h * w * 9 * c + h2 * w2_sp * 9 * c * o)
    bytes_accessed = 4 * (xp.size + w1t.size + b1.size + w2t.size + b2.size + n * o)

    out = pl.pallas_call(
        _make_fcn_kernel(h, w, c, o),
        out_shape=jax.ShapeDtypeStruct((n, 1, o), jnp.float32),
        grid=(n,),
        in_specs=[
            pl.BlockSpec((1, h + 2, w + 2), lambda i: (i, 0, 0)),  # padded input
            smem, smem, smem, smem,                                # weight tables
        ],
        out_specs=pl.BlockSpec((1, 1, o), lambda i: (i, 0, 0)),
        compiler_params=pltpu.CompilerParams(dimension_semantics=("parallel",)),
        cost_estimate=pl.CostEstimate(flops=flops, transcendentals=0,
                                      bytes_accessed=bytes_accessed),
    )(xp, w1t, b1.astype(jnp.float32), w2t, b2.astype(jnp.float32))

    # TODO(synk): PyTorch .squeeze() would also drop N==1 / O==1 dims; here we
    # return (N, O), which matches torch for N>1 and O>1.
    return out.reshape(n, o)


# --------------------------- pure-JAX reference ----------------------------- #

def fcn_reference(x, w1, b1, w2, b2):
    dn = ("NCHW", "OIHW", "NCHW")
    y = lax.conv_general_dilated(x, w1, (1, 1), "SAME", dimension_numbers=dn)
    y = jax.nn.relu(y + b1[None, :, None, None])
    y = lax.conv_general_dilated(y, w2, (1, 1), "VALID", dimension_numbers=dn)
    y = jax.nn.relu(y + b2[None, :, None, None])
    return jnp.max(y, axis=(2, 3))


# ----------------------------------- main ----------------------------------- #

if __name__ == "__main__":
    n_channels, output_size = 4, 8
    N, H, W = 2, 16, 16

    key = jax.random.PRNGKey(0)
    k1, k2, k3, k4, k5 = jax.random.split(key, 5)

    x = jax.random.normal(k1, (N, 1, H, W), jnp.float32)

    # Deterministic PyTorch-style uniform init (bound = 1/sqrt(fan_in)).
    lim1 = 1.0 / (1 * 3 * 3) ** 0.5
    w1 = jax.random.uniform(k2, (n_channels, 1, 3, 3), jnp.float32, -lim1, lim1)
    b1 = jax.random.uniform(k3, (n_channels,), jnp.float32, -lim1, lim1)
    lim2 = 1.0 / (n_channels * 3 * 3) ** 0.5
    w2 = jax.random.uniform(k4, (output_size, n_channels, 3, 3), jnp.float32, -lim2, lim2)
    b2 = jax.random.uniform(k5, (output_size,), jnp.float32, -lim2, lim2)

    out = fcn_forward(x, w1, b1, w2, b2)
    out = jax.block_until_ready(out)

    ref = fcn_reference(x, w1, b1, w2, b2)
    assert out.shape == (N, output_size), out.shape
    assert jnp.allclose(out, ref, atol=1e-4, rtol=1e-4), (out, ref)

    print("KERNEL_OK")
</pallas_src>

<mosaic_0001>
module attributes {stable_mosaic.version = 11 : i64} {
  func.func @kernel(%arg0: i32, %arg1: memref<1x18x18xf32, #tpu.memory_space<vmem>>, %arg2: memref<4x9xf32, #tpu.memory_space<smem>>, %arg3: memref<4xf32, #tpu.memory_space<smem>>, %arg4: memref<8x36xf32, #tpu.memory_space<smem>>, %arg5: memref<8xf32, #tpu.memory_space<smem>>, %arg6: memref<1x1x8xf32, #tpu.memory_space<vmem>>) attributes {dimension_semantics = [#tpu.dimension_semantics<parallel>], iteration_bounds = array<i64: 2>, scalar_prefetch = 0 : i64, scratch_operands = 0 : i64, tpu.core_type = #tpu.core_type<tc>, window_params = [{transform_indices = @transform_0, window_bounds = array<i64: 1, 18, 18>}, {transform_indices = @transform_1, window_bounds = array<i64: 4, 9>}, {transform_indices = @transform_2, window_bounds = array<i64: 4>}, {transform_indices = @transform_3, window_bounds = array<i64: 8, 36>}, {transform_indices = @transform_4, window_bounds = array<i64: 8>}, {transform_indices = @transform_5, window_bounds = array<i64: 1, 1, 8>}]} {
    %c0 = arith.constant 0 : index
    %c0_0 = arith.constant 0 : index
    %c0_1 = arith.constant 0 : index
    %0 = vector.load %arg1[%c0, %c0_0, %c0_1] : memref<1x18x18xf32, #tpu.memory_space<vmem>>, vector<1x18x18xf32>
    %1 = vector.shape_cast %0 : vector<1x18x18xf32> to vector<18x18xf32>
    %2 = vector.extract_strided_slice %1 {offsets = [0, 0], sizes = [16, 16], strides = [1, 1]} : vector<18x18xf32> to vector<16x16xf32>
    %3 = vector.extract_strided_slice %1 {offsets = [0, 1], sizes = [16, 16], strides = [1, 1]} : vector<18x18xf32> to vector<16x16xf32>
    %4 = vector.extract_strided_slice %1 {offsets = [0, 2], sizes = [16, 16], strides = [1, 1]} : vector<18x18xf32> to vector<16x16xf32>
    %5 = vector.extract_strided_slice %1 {offsets = [1, 0], sizes = [16, 16], strides = [1, 1]} : vector<18x18xf32> to vector<16x16xf32>
    %6 = vector.extract_strided_slice %1 {offsets = [1, 1], sizes = [16, 16], strides = [1, 1]} : vector<18x18xf32> to vector<16x16xf32>
    %7 = vector.extract_strided_slice %1 {offsets = [1, 2], sizes = [16, 16], strides = [1, 1]} : vector<18x18xf32> to vector<16x16xf32>
    %8 = vector.extract_strided_slice %1 {offsets = [2, 0], sizes = [16, 16], strides = [1, 1]} : vector<18x18xf32> to vector<16x16xf32>
    %9 = vector.extract_strided_slice %1 {offsets = [2, 1], sizes = [16, 16], strides = [1, 1]} : vector<18x18xf32> to vector<16x16xf32>
    %10 = vector.extract_strided_slice %1 {offsets = [2, 2], sizes = [16, 16], strides = [1, 1]} : vector<18x18xf32> to vector<16x16xf32>
    %c0_2 = arith.constant 0 : index
    %11 = memref.load %arg3[%c0_2] : memref<4xf32, #tpu.memory_space<smem>>
    %12 = vector.broadcast %11 : f32 to vector<16x16xf32>
    %c0_3 = arith.constant 0 : index
    %c0_4 = arith.constant 0 : index
    %13 = memref.load %arg2[%c0_3, %c0_4] : memref<4x9xf32, #tpu.memory_space<smem>>
    %14 = vector.broadcast %13 : f32 to vector<16x16xf32>
    %15 = arith.mulf %14, %2 : vector<16x16xf32>
    %16 = arith.addf %12, %15 : vector<16x16xf32>
    %c0_5 = arith.constant 0 : index
    %c1 = arith.constant 1 : index
    %17 = memref.load %arg2[%c0_5, %c1] : memref<4x9xf32, #tpu.memory_space<smem>>
    %18 = vector.broadcast %17 : f32 to vector<16x16xf32>
    %19 = arith.mulf %18, %3 : vector<16x16xf32>
    %20 = arith.addf %16, %19 : vector<16x16xf32>
    %c0_6 = arith.constant 0 : index
    %c2 = arith.constant 2 : index
    %21 = memref.load %arg2[%c0_6, %c2] : memref<4x9xf32, #tpu.memory_space<smem>>
    %22 = vector.broadcast %21 : f32 to vector<16x16xf32>
    %23 = arith.mulf %22, %4 : vector<16x16xf32>
    %24 = arith.addf %20, %23 : vector<16x16xf32>
    %c0_7 = arith.constant 0 : index
    %c3 = arith.constant 3 : index
    %25 = memref.load %arg2[%c0_7, %c3] : memref<4x9xf32, #tpu.memory_space<smem>>
    %26 = vector.broadcast %25 : f32 to vector<16x16xf32>
    %27 = arith.mulf %26, %5 : vector<16x16xf32>
    %28 = arith.addf %24, %27 : vector<16x16xf32>
    %c0_8 = arith.constant 0 : index
    %c4 = arith.constant 4 : index
    %29 = memref.load %arg2[%c0_8, %c4] : memref<4x9xf32, #tpu.memory_space<smem>>
    %30 = vector.broadcast %29 : f32 to vector<16x16xf32>
    %31 = arith.mulf %30, %6 : vector<16x16xf32>
    %32 = arith.addf %28, %31 : vector<16x16xf32>
    %c0_9 = arith.constant 0 : index
    %c5 = arith.constant 5 : index
    %33 = memref.load %arg2[%c0_9, %c5] : memref<4x9xf32, #tpu.memory_space<smem>>
    %34 = vector.broadcast %33 : f32 to vector<16x16xf32>
    %35 = arith.mulf %34, %7 : vector<16x16xf32>
    %36 = arith.addf %32, %35 : vector<16x16xf32>
    %c0_10 = arith.constant 0 : index
    %c6 = arith.constant 6 : index
    %37 = memref.load %arg2[%c0_10, %c6] : memref<4x9xf32, #tpu.memory_space<smem>>
    %38 = vector.broadcast %37 : f32 to vector<16x16xf32>
    %39 = arith.mulf %38, %8 : vector<16x16xf32>
    %40 = arith.addf %36, %39 : vector<16x16xf32>
    %c0_11 = arith.constant 0 : index
    %c7 = arith.constant 7 : index
    %41 = memref.load %arg2[%c0_11, %c7] : memref<4x9xf32, #tpu.memory_space<smem>>
    %42 = vector.broadcast %41 : f32 to vector<16x16xf32>
    %43 = arith.mulf %42, %9 : vector<16x16xf32>
    %44 = arith.addf %40, %43 : vector<16x16xf32>
    %c0_12 = arith.constant 0 : index
    %c8 = arith.constant 8 : index
    %45 = memref.load %arg2[%c0_12, %c8] : memref<4x9xf32, #tpu.memory_space<smem>>
    %46 = vector.broadcast %45 : f32 to vector<16x16xf32>
    %47 = arith.mulf %46, %10 : vector<16x16xf32>
    %48 = arith.addf %44, %47 : vector<16x16xf32>
    %cst = arith.constant 0.000000e+00 : f32
    %49 = vector.broadcast %cst : f32 to vector<16x16xf32>
    %50 = arith.maximumf %48, %49 : vector<16x16xf32>
    %c1_13 = arith.constant 1 : index
    %51 = memref.load %arg3[%c1_13] : memref<4xf32, #tpu.memory_space<smem>>
    %52 = vector.broadcast %51 : f32 to vector<16x16xf32>
    %c1_14 = arith.constant 1 : index
    %c0_15 = arith.constant 0 : index
    %53 = memref.load %arg2[%c1_14, %c0_15] : memref<4x9xf32, #tpu.memory_space<smem>>
    %54 = vector.broadcast %53 : f32 to vector<16x16xf32>
    %55 = arith.mulf %54, %2 : vector<16x16xf32>
    %56 = arith.addf %52, %55 : vector<16x16xf32>
    %c1_16 = arith.constant 1 : index
    %c1_17 = arith.constant 1 : index
    %57 = memref.load %arg2[%c1_16, %c1_17] : memref<4x9xf32, #tpu.memory_space<smem>>
    %58 = vector.broadcast %57 : f32 to vector<16x16xf32>
    %59 = arith.mulf %58, %3 : vector<16x16xf32>
    %60 = arith.addf %56, %59 : vector<16x16xf32>
    %c1_18 = arith.constant 1 : index
    %c2_19 = arith.constant 2 : index
    %61 = memref.load %arg2[%c1_18, %c2_19] : memref<4x9xf32, #tpu.memory_space<smem>>
    %62 = vector.broadcast %61 : f32 to vector<16x16xf32>
    %63 = arith.mulf %62, %4 : vector<16x16xf32>
    %64 = arith.addf %60, %63 : vector<16x16xf32>
    %c1_20 = arith.constant 1 : index
    %c3_21 = arith.constant 3 : index
    %65 = memref.load %arg2[%c1_20, %c3_21] : memref<4x9xf32, #tpu.memory_space<smem>>
    %66 = vector.broadcast %65 : f32 to vector<16x16xf32>
    %67 = arith.mulf %66, %5 : vector<16x16xf32>
    %68 = arith.addf %64, %67 : vector<16x16xf32>
    %c1_22 = arith.constant 1 : index
    %c4_23 = arith.constant 4 : index
    %69 = memref.load %arg2[%c1_22, %c4_23] : memref<4x9xf32, #tpu.memory_space<smem>>
    %70 = vector.broadcast %69 : f32 to vector<16x16xf32>
    %71 = arith.mulf %70, %6 : vector<16x16xf32>
    %72 = arith.addf %68, %71 : vector<16x16xf32>
    %c1_24 = arith.constant 1 : index
    %c5_25 = arith.constant 5 : index
    %73 = memref.load %arg2[%c1_24, %c5_25] : memref<4x9xf32, #tpu.memory_space<smem>>
    %74 = vector.broadcast %73 : f32 to vector<16x16xf32>
    %75 = arith.mulf %74, %7 : vector<16x16xf32>
    %76 = arith.addf %72, %75 : vector<16x16xf32>
    %c1_26 = arith.constant 1 : index
    %c6_27 = arith.constant 6 : index
    %77 = memref.load %arg2[%c1_26, %c6_27] : memref<4x9xf32, #tpu.memory_space<smem>>
    %78 = vector.broadcast %77 : f32 to vector<16x16xf32>
    %79 = arith.mulf %78, %8 : vector<16x16xf32>
    %80 = arith.addf %76, %79 : vector<16x16xf32>
    %c1_28 = arith.constant 1 : index
    %c7_29 = arith.constant 7 : index
    %81 = memref.load %arg2[%c1_28, %c7_29] : memref<4x9xf32, #tpu.memory_space<smem>>
    %82 = vector.broadcast %81 : f32 to vector<16x16xf32>
    %83 = arith.mulf %82, %9 : vector<16x16xf32>
    %84 = arith.addf %80, %83 : vector<16x16xf32>
    %c1_30 = arith.constant 1 : index
    %c8_31 = arith.constant 8 : index
    %85 = memref.load %arg2[%c1_30, %c8_31] : memref<4x9xf32, #tpu.memory_space<smem>>
    %86 = vector.broadcast %85 : f32 to vector<16x16xf32>
    %87 = arith.mulf %86, %10 : vector<16x16xf32>
    %88 = arith.addf %84, %87 : vector<16x16xf32>
    %cst_32 = arith.constant 0.000000e+00 : f32
    %89 = vector.broadcast %cst_32 : f32 to vector<16x16xf32>
    %90 = arith.maximumf %88, %89 : vector<16x16xf32>
    %c2_33 = arith.constant 2 : index
    %91 = memref.load %arg3[%c2_33] : memref<4xf32, #tpu.memory_space<smem>>
    %92 = vector.broadcast %91 : f32 to vector<16x16xf32>
    %c2_34 = arith.constant 2 : index
    %c0_35 = arith.constant 0 : index
    %93 = memref.load %arg2[%c2_34, %c0_35] : memref<4x9xf32, #tpu.memory_space<smem>>
    %94 = vector.broadcast %93 : f32 to vector<16x16xf32>
    %95 = arith.mulf %94, %2 : vector<16x16xf32>
    %96 = arith.addf %92, %95 : vector<16x16xf32>
    %c2_36 = arith.constant 2 : index
    %c1_37 = arith.constant 1 : index
    %97 = memref.load %arg2[%c2_36, %c1_37] : memref<4x9xf32, #tpu.memory_space<smem>>
    %98 = vector.broadcast %97 : f32 to vector<16x16xf32>
    %99 = arith.mulf %98, %3 : vector<16x16xf32>
    %100 = arith.addf %96, %99 : vector<16x16xf32>
    %c2_38 = arith.constant 2 : index
    %c2_39 = arith.constant 2 : index
    %101 = memref.load %arg2[%c2_38, %c2_39] : memref<4x9xf32, #tpu.memory_space<smem>>
    %102 = vector.broadcast %101 : f32 to vector<16x16xf32>
    %103 = arith.mulf %102, %4 : vector<16x16xf32>
    %104 = arith.addf %100, %103 : vector<16x16xf32>
    %c2_40 = arith.constant 2 : index
    %c3_41 = arith.constant 3 : index
    %105 = memref.load %arg2[%c2_40, %c3_41] : memref<4x9xf32, #tpu.memory_space<smem>>
    %106 = vector.broadcast %105 : f32 to vector<16x16xf32>
    %107 = arith.mulf %106, %5 : vector<16x16xf32>
    %108 = arith.addf %104, %107 : vector<16x16xf32>
    %c2_42 = arith.constant 2 : index
    %c4_43 = arith.constant 4 : index
    %109 = memref.load %arg2[%c2_42, %c4_43] : memref<4x9xf32, #tpu.memory_space<smem>>
    %110 = vector.broadcast %109 : f32 to vector<16x16xf32>
    %111 = arith.mulf %110, %6 : vector<16x16xf32>
    %112 = arith.addf %108, %111 : vector<16x16xf32>
    %c2_44 = arith.constant 2 : index
    %c5_45 = arith.constant 5 : index
    %113 = memref.load %arg2[%c2_44, %c5_45] : memref<4x9xf32, #tpu.memory_space<smem>>
    %114 = vector.broadcast %113 : f32 to vector<16x16xf32>
    %115 = arith.mulf %114, %7 : vector<16x16xf32>
    %116 = arith.addf %112, %115 : vector<16x16xf32>
    %c2_46 = arith.constant 2 : index
    %c6_47 = arith.constant 6 : index
    %117 = memref.load %arg2[%c2_46, %c6_47] : memref<4x9xf32, #tpu.memory_space<smem>>
    %118 = vector.broadcast %117 : f32 to vector<16x16xf32>
    %119 = arith.mulf %118, %8 : vector<16x16xf32>
    %120 = arith.addf %116, %119 : vector<16x16xf32>
    %c2_48 = arith.constant 2 : index
    %c7_49 = arith.constant 7 : index
    %121 = memref.load %arg2[%c2_48, %c7_49] : memref<4x9xf32, #tpu.memory_space<smem>>
    %122 = vector.broadcast %121 : f32 to vector<16x16xf32>
    %123 = arith.mulf %122, %9 : vector<16x16xf32>
    %124 = arith.addf %120, %123 : vector<16x16xf32>
    %c2_50 = arith.constant 2 : index
    %c8_51 = arith.constant 8 : index
    %125 = memref.load %arg2[%c2_50, %c8_51] : memref<4x9xf32, #tpu.memory_space<smem>>
    %126 = vector.broadcast %125 : f32 to vector<16x16xf32>
    %127 = arith.mulf %126, %10 : vector<16x16xf32>
    %128 = arith.addf %124, %127 : vector<16x16xf32>
    %cst_52 = arith.constant 0.000000e+00 : f32
    %129 = vector.broadcast %cst_52 : f32 to vector<16x16xf32>
    %130 = arith.maximumf %128, %129 : vector<16x16xf32>
    %c3_53 = arith.constant 3 : index
    %131 = memref.load %arg3[%c3_53] : memref<4xf32, #tpu.memory_space<smem>>
    %132 = vector.broadcast %131 : f32 to vector<16x16xf32>
    %c3_54 = arith.constant 3 : index
    %c0_55 = arith.constant 0 : index
    %133 = memref.load %arg2[%c3_54, %c0_55] : memref<4x9xf32, #tpu.memory_space<smem>>
    %134 = vector.broadcast %133 : f32 to vector<16x16xf32>
    %135 = arith.mulf %134, %2 : vector<16x16xf32>
    %136 = arith.addf %132, %135 : vector<16x16xf32>
    %c3_56 = arith.constant 3 : index
    %c1_57 = arith.constant 1 : index
    %137 = memref.load %arg2[%c3_56, %c1_57] : memref<4x9xf32, #tpu.memory_space<smem>>
    %138 = vector.broadcast %137 : f32 to vector<16x16xf32>
    %139 = arith.mulf %138, %3 : vector<16x16xf32>
    %140 = arith.addf %136, %139 : vector<16x16xf32>
    %c3_58 = arith.constant 3 : index
    %c2_59 = arith.constant 2 : index
    %141 = memref.load %arg2[%c3_58, %c2_59] : memref<4x9xf32, #tpu.memory_space<smem>>
    %142 = vector.broadcast %141 : f32 to vector<16x16xf32>
    %143 = arith.mulf %142, %4 : vector<16x16xf32>
    %144 = arith.addf %140, %143 : vector<16x16xf32>
    %c3_60 = arith.constant 3 : index
    %c3_61 = arith.constant 3 : index
    %145 = memref.load %arg2[%c3_60, %c3_61] : memref<4x9xf32, #tpu.memory_space<smem>>
    %146 = vector.broadcast %145 : f32 to vector<16x16xf32>
    %147 = arith.mulf %146, %5 : vector<16x16xf32>
    %148 = arith.addf %144, %147 : vector<16x16xf32>
    %c3_62 = arith.constant 3 : index
    %c4_63 = arith.constant 4 : index
    %149 = memref.load %arg2[%c3_62, %c4_63] : memref<4x9xf32, #tpu.memory_space<smem>>
    %150 = vector.broadcast %149 : f32 to vector<16x16xf32>
    %151 = arith.mulf %150, %6 : vector<16x16xf32>
    %152 = arith.addf %148, %151 : vector<16x16xf32>
    %c3_64 = arith.constant 3 : index
    %c5_65 = arith.constant 5 : index
    %153 = memref.load %arg2[%c3_64, %c5_65] : memref<4x9xf32, #tpu.memory_space<smem>>
    %154 = vector.broadcast %153 : f32 to vector<16x16xf32>
    %155 = arith.mulf %154, %7 : vector<16x16xf32>
    %156 = arith.addf %152, %155 : vector<16x16xf32>
    %c3_66 = arith.constant 3 : index
    %c6_67 = arith.constant 6 : index
    %157 = memref.load %arg2[%c3_66, %c6_67] : memref<4x9xf32, #tpu.memory_space<smem>>
    %158 = vector.broadcast %157 : f32 to vector<16x16xf32>
    %159 = arith.mulf %158, %8 : vector<16x16xf32>
    %160 = arith.addf %156, %159 : vector<16x16xf32>
    %c3_68 = arith.constant 3 : index
    %c7_69 = arith.constant 7 : index
    %161 = memref.load %arg2[%c3_68, %c7_69] : memref<4x9xf32, #tpu.memory_space<smem>>
    %162 = vector.broadcast %161 : f32 to vector<16x16xf32>
    %163 = arith.mulf %162, %9 : vector<16x16xf32>
    %164 = arith.addf %160, %163 : vector<16x16xf32>
    %c3_70 = arith.constant 3 : index
    %c8_71 = arith.constant 8 : index
    %165 = memref.load %arg2[%c3_70, %c8_71] : memref<4x9xf32, #tpu.memory_space<smem>>
    %166 = vector.broadcast %165 : f32 to vector<16x16xf32>
    %167 = arith.mulf %166, %10 : vector<16x16xf32>
    %168 = arith.addf %164, %167 : vector<16x16xf32>
    %cst_72 = arith.constant 0.000000e+00 : f32
    %169 = vector.broadcast %cst_72 : f32 to vector<16x16xf32>
    %170 = arith.maximumf %168, %169 : vector<16x16xf32>
    %c0_73 = arith.constant 0 : index
    %171 = memref.load %arg5[%c0_73] : memref<8xf32, #tpu.memory_space<smem>>
    %172 = vector.broadcast %171 : f32 to vector<14x14xf32>
    %c1_74 = arith.constant 1 : index
    %173 = memref.load %arg5[%c1_74] : memref<8xf32, #tpu.memory_space<smem>>
    %174 = vector.broadcast %173 : f32 to vector<14x14xf32>
    %c2_75 = arith.constant 2 : index
    %175 = memref.load %arg5[%c2_75] : memref<8xf32, #tpu.memory_space<smem>>
    %176 = vector.broadcast %175 : f32 to vector<14x14xf32>
    %c3_76 = arith.constant 3 : index
    %177 = memref.load %arg5[%c3_76] : memref<8xf32, #tpu.memory_space<smem>>
    %178 = vector.broadcast %177 : f32 to vector<14x14xf32>
    %c4_77 = arith.constant 4 : index
    %179 = memref.load %arg5[%c4_77] : memref<8xf32, #tpu.memory_space<smem>>
    %180 = vector.broadcast %179 : f32 to vector<14x14xf32>
    %c5_78 = arith.constant 5 : index
    %181 = memref.load %arg5[%c5_78] : memref<8xf32, #tpu.memory_space<smem>>
    %182 = vector.broadcast %181 : f32 to vector<14x14xf32>
    %c6_79 = arith.constant 6 : index
    %183 = memref.load %arg5[%c6_79] : memref<8xf32, #tpu.memory_space<smem>>
    %184 = vector.broadcast %183 : f32 to vector<14x14xf32>
    %c7_80 = arith.constant 7 : index
    %185 = memref.load %arg5[%c7_80] : memref<8xf32, #tpu.memory_space<smem>>
    %186 = vector.broadcast %185 : f32 to vector<14x14xf32>
    %187 = vector.extract_strided_slice %50 {offsets = [0, 0], sizes = [14, 14], strides = [1, 1]} : vector<16x16xf32> to vector<14x14xf32>
    %c0_81 = arith.constant 0 : index
    %c0_82 = arith.constant 0 : index
    %188 = memref.load %arg4[%c0_81, %c0_82] : memref<8x36xf32, #tpu.memory_space<smem>>
    %189 = vector.broadcast %188 : f32 to vector<14x14xf32>
    %190 = arith.mulf %189, %187 : vector<14x14xf32>
    %191 = arith.addf %172, %190 : vector<14x14xf32>
    %c1_83 = arith.constant 1 : index
    %c0_84 = arith.constant 0 : index
    %192 = memref.load %arg4[%c1_83, %c0_84] : memref<8x36xf32, #tpu.memory_space<smem>>
    %193 = vector.broadcast %192 : f32 to vector<14x14xf32>
    %194 = arith.mulf %193, %187 : vector<14x14xf32>
    %195 = arith.addf %174, %194 : vector<14x14xf32>
    %c2_85 = arith.constant 2 : index
    %c0_86 = arith.constant 0 : index
    %196 = memref.load %arg4[%c2_85, %c0_86] : memref<8x36xf32, #tpu.memory_space<smem>>
    %197 = vector.broadcast %196 : f32 to vector<14x14xf32>
    %198 = arith.mulf %197, %187 : vector<14x14xf32>
    %199 = arith.addf %176, %198 : vector<14x14xf32>
    %c3_87 = arith.constant 3 : index
    %c0_88 = arith.constant 0 : index
    %200 = memref.load %arg4[%c3_87, %c0_88] : memref<8x36xf32, #tpu.memory_space<smem>>
    %201 = vector.broadcast %200 : f32 to vector<14x14xf32>
    %202 = arith.mulf %201, %187 : vector<14x14xf32>
    %203 = arith.addf %178, %202 : vector<14x14xf32>
    %c4_89 = arith.constant 4 : index
    %c0_90 = arith.constant 0 : index
    %204 = memref.load %arg4[%c4_89, %c0_90] : memref<8x36xf32, #tpu.memory_space<smem>>
    %205 = vector.broadcast %204 : f32 to vector<14x14xf32>
    %206 = arith.mulf %205, %187 : vector<14x14xf32>
    %207 = arith.addf %180, %206 : vector<14x14xf32>
    %c5_91 = arith.constant 5 : index
    %c0_92 = arith.constant 0 : index
    %208 = memref.load %arg4[%c5_91, %c0_92] : memref<8x36xf32, #tpu.memory_space<smem>>
    %209 = vector.broadcast %208 : f32 to vector<14x14xf32>
    %210 = arith.mulf %209, %187 : vector<14x14xf32>
    %211 = arith.addf %182, %210 : vector<14x14xf32>
    %c6_93 = arith.constant 6 : index
    %c0_94 = arith.constant 0 : index
    %212 = memref.load %arg4[%c6_93, %c0_94] : memref<8x36xf32, #tpu.memory_space<smem>>
    %213 = vector.broadcast %212 : f32 to vector<14x14xf32>
    %214 = arith.mulf %213, %187 : vector<14x14xf32>
    %215 = arith.addf %184, %214 : vector<14x14xf32>
    %c7_95 = arith.constant 7 : index
    %c0_96 = arith.constant 0 : index
    %216 = memref.load %arg4[%c7_95, %c0_96] : memref<8x36xf32, #tpu.memory_space<smem>>
    %217 = vector.broadcast %216 : f32 to vector<14x14xf32>
    %218 = arith.mulf %217, %187 : vector<14x14xf32>
    %219 = arith.addf %186, %218 : vector<14x14xf32>
    %220 = vector.extract_strided_slice %50 {offsets = [0, 1], sizes = [14, 14], strides = [1, 1]} : vector<16x16xf32> to vector<14x14xf32>
    %c0_97 = arith.constant 0 : index
    %c1_98 = arith.constant 1 : index
    %221 = memref.load %arg4[%c0_97, %c1_98] : memref<8x36xf32, #tpu.memory_space<smem>>
    %222 = vector.broadcast %221 : f32 to vector<14x14xf32>
    %223 = arith.mulf %222, %220 : vector<14x14xf32>
    %224 = arith.addf %191, %223 : vector<14x14xf32>
    %c1_99 = arith.constant 1 : index
    %c1_100 = arith.constant 1 : index
    %225 = memref.load %arg4[%c1_99, %c1_100] : memref<8x36xf32, #tpu.memory_space<smem>>
    %226 = vector.broadcast %225 : f32 to vector<14x14xf32>
    %227 = arith.mulf %226, %220 : vector<14x14xf32>
    %228 = arith.addf %195, %227 : vector<14x14xf32>
    %c2_101 = arith.constant 2 : index
    %c1_102 = arith.constant 1 : index
    %229 = memref.load %arg4[%c2_101, %c1_102] : memref<8x36xf32, #tpu.memory_space<smem>>
    %230 = vector.broadcast %229 : f32 to vector<14x14xf32>
    %231 = arith.mulf %230, %220 : vector<14x14xf32>
    %232 = arith.addf %199, %231 : vector<14x14xf32>
    %c3_103 = arith.constant 3 : index
    %c1_104 = arith.constant 1 : index
    %233 = memref.load %arg4[%c3_103, %c1_104] : memref<8x36xf32, #tpu.memory_space<smem>>
    %234 = vector.broadcast %233 : f32 to vector<14x14xf32>
    %235 = arith.mulf %234, %220 : vector<14x14xf32>
    %236 = arith.addf %203, %235 : vector<14x14xf32>
    %c4_105 = arith.constant 4 : index
    %c1_106 = arith.constant 1 : index
    %237 = memref.load %arg4[%c4_105, %c1_106] : memref<8x36xf32, #tpu.memory_space<smem>>
    %238 = vector.broadcast %237 : f32 to vector<14x14xf32>
    %239 = arith.mulf %238, %220 : vector<14x14xf32>
    %240 = arith.addf %207, %239 : vector<14x14xf32>
    %c5_107 = arith.constant 5 : index
    %c1_108 = arith.constant 1 : index
    %241 = memref.load %arg4[%c5_107, %c1_108] : memref<8x36xf32, #tpu.memory_space<smem>>
    %242 = vector.broadcast %241 : f32 to vector<14x14xf32>
    %243 = arith.mulf %242, %220 : vector<14x14xf32>
    %244 = arith.addf %211, %243 : vector<14x14xf32>
    %c6_109 = arith.constant 6 : index
    %c1_110 = arith.constant 1 : index
    %245 = memref.load %arg4[%c6_109, %c1_110] : memref<8x36xf32, #tpu.memory_space<smem>>
    %246 = vector.broadcast %245 : f32 to vector<14x14xf32>
    %247 = arith.mulf %246, %220 : vector<14x14xf32>
    %248 = arith.addf %215, %247 : vector<14x14xf32>
    %c7_111 = arith.constant 7 : index
    %c1_112 = arith.constant 1 : index
    %249 = memref.load %arg4[%c7_111, %c1_112] : memref<8x36xf32, #tpu.memory_space<smem>>
    %250 = vector.broadcast %249 : f32 to vector<14x14xf32>
    %251 = arith.mulf %250, %220 : vector<14x14xf32>
    %252 = arith.addf %219, %251 : vector<14x14xf32>
    %253 = vector.extract_strided_slice %50 {offsets = [0, 2], sizes = [14, 14], strides = [1, 1]} : vector<16x16xf32> to vector<14x14xf32>
    %c0_113 = arith.constant 0 : index
    %c2_114 = arith.constant 2 : index
    %254 = memref.load %arg4[%c0_113, %c2_114] : memref<8x36xf32, #tpu.memory_space<smem>>
    %255 = vector.broadcast %254 : f32 to vector<14x14xf32>
    %256 = arith.mulf %255, %253 : vector<14x14xf32>
    %257 = arith.addf %224, %256 : vector<14x14xf32>
    %c1_115 = arith.constant 1 : index
    %c2_116 = arith.constant 2 : index
    %258 = memref.load %arg4[%c1_115, %c2_116] : memref<8x36xf32, #tpu.memory_space<smem>>
    %259 = vector.broadcast %258 : f32 to vector<14x14xf32>
    %260 = arith.mulf %259, %253 : vector<14x14xf32>
    %261 = arith.addf %228, %260 : vector<14x14xf32>
    %c2_117 = arith.constant 2 : index
    %c2_118 = arith.constant 2 : index
    %262 = memref.load %arg4[%c2_117, %c2_118] : memref<8x36xf32, #tpu.memory_space<smem>>
    %263 = vector.broadcast %262 : f32 to vector<14x14xf32>
    %264 = arith.mulf %263, %253 : vector<14x14xf32>
    %265 = arith.addf %232, %264 : vector<14x14xf32>
    %c3_119 = arith.constant 3 : index
    %c2_120 = arith.constant 2 : index
    %266 = memref.load %arg4[%c3_119, %c2_120] : memref<8x36xf32, #tpu.memory_space<smem>>
    %267 = vector.broadcast %266 : f32 to vector<14x14xf32>
    %268 = arith.mulf %267, %253 : vector<14x14xf32>
    %269 = arith.addf %236, %268 : vector<14x14xf32>
    %c4_121 = arith.constant 4 : index
    %c2_122 = arith.constant 2 : index
    %270 = memref.load %arg4[%c4_121, %c2_122] : memref<8x36xf32, #tpu.memory_space<smem>>
    %271 = vector.broadcast %270 : f32 to vector<14x14xf32>
    %272 = arith.mulf %271, %253 : vector<14x14xf32>
    %273 = arith.addf %240, %272 : vector<14x14xf32>
    %c5_123 = arith.constant 5 : index
    %c2_124 = arith.constant 2 : index
    %274 = memref.load %arg4[%c5_123, %c2_124] : memref<8x36xf32, #tpu.memory_space<smem>>
    %275 = vector.broadcast %274 : f32 to vector<14x14xf32>
    %276 = arith.mulf %275, %253 : vector<14x14xf32>
    %277 = arith.addf %244, %276 : vector<14x14xf32>
    %c6_125 = arith.constant 6 : index
    %c2_126 = arith.constant 2 : index
    %278 = memref.load %arg4[%c6_125, %c2_126] : memref<8x36xf32, #tpu.memory_space<smem>>
    %279 = vector.broadcast %278 : f32 to vector<14x14xf32>
    %280 = arith.mulf %279, %253 : vector<14x14xf32>
    %281 = arith.addf %248, %280 : vector<14x14xf32>
    %c7_127 = arith.constant 7 : index
    %c2_128 = arith.constant 2 : index
    %282 = memref.load %arg4[%c7_127, %c2_128] : memref<8x36xf32, #tpu.memory_space<smem>>
    %283 = vector.broadcast %282 : f32 to vector<14x14xf32>
    %284 = arith.mulf %283, %253 : vector<14x14xf32>
    %285 = arith.addf %252, %284 : vector<14x14xf32>
    %286 = vector.extract_strided_slice %50 {offsets = [1, 0], sizes = [14, 14], strides = [1, 1]} : vector<16x16xf32> to vector<14x14xf32>
    %c0_129 = arith.constant 0 : index
    %c3_130 = arith.constant 3 : index
    %287 = memref.load %arg4[%c0_129, %c3_130] : memref<8x36xf32, #tpu.memory_space<smem>>
    %288 = vector.broadcast %287 : f32 to vector<14x14xf32>
    %289 = arith.mulf %288, %286 : vector<14x14xf32>
    %290 = arith.addf %257, %289 : vector<14x14xf32>
    %c1_131 = arith.constant 1 : index
    %c3_132 = arith.constant 3 : index
    %291 = memref.load %arg4[%c1_131, %c3_132] : memref<8x36xf32, #tpu.memory_space<smem>>
    %292 = vector.broadcast %291 : f32 to vector<14x14xf32>
    %293 = arith.mulf %292, %286 : vector<14x14xf32>
    %294 = arith.addf %261, %293 : vector<14x14xf32>
    %c2_133 = arith.constant 2 : index
    %c3_134 = arith.constant 3 : index
    %295 = memref.load %arg4[%c2_133, %c3_134] : memref<8x36xf32, #tpu.memory_space<smem>>
    %296 = vector.broadcast %295 : f32 to vector<14x14xf32>
    %297 = arith.mulf %296, %286 : vector<14x14xf32>
    %298 = arith.addf %265, %297 : vector<14x14xf32>
    %c3_135 = arith.constant 3 : index
    %c3_136 = arith.constant 3 : index
    %299 = memref.load %arg4[%c3_135, %c3_136] : memref<8x36xf32, #tpu.memory_space<smem>>
    %300 = vector.broadcast %299 : f32 to vector<14x14xf32>
    %301 = arith.mulf %300, %286 : vector<14x14xf32>
    %302 = arith.addf %269, %301 : vector<14x14xf32>
    %c4_137 = arith.constant 4 : index
    %c3_138 = arith.constant 3 : index
    %303 = memref.load %arg4[%c4_137, %c3_138] : memref<8x36xf32, #tpu.memory_space<smem>>
    %304 = vector.broadcast %303 : f32 to vector<14x14xf32>
    %305 = arith.mulf %304, %286 : vector<14x14xf32>
    %306 = arith.addf %273, %305 : vector<14x14xf32>
    %c5_139 = arith.constant 5 : index
    %c3_140 = arith.constant 3 : index
    %307 = memref.load %arg4[%c5_139, %c3_140] : memref<8x36xf32, #tpu.memory_space<smem>>
    %308 = vector.broadcast %307 : f32 to vector<14x14xf32>
    %309 = arith.mulf %308, %286 : vector<14x14xf32>
    %310 = arith.addf %277, %309 : vector<14x14xf32>
    %c6_141 = arith.constant 6 : index
    %c3_142 = arith.constant 3 : index
    %311 = memref.load %arg4[%c6_141, %c3_142] : memref<8x36xf32, #tpu.memory_space<smem>>
    %312 = vector.broadcast %311 : f32 to vector<14x14xf32>
    %313 = arith.mulf %312, %286 : vector<14x14xf32>
    %314 = arith.addf %281, %313 : vector<14x14xf32>
    %c7_143 = arith.constant 7 : index
    %c3_144 = arith.constant 3 : index
    %315 = memref.load %arg4[%c7_143, %c3_144] : memref<8x36xf32, #tpu.memory_space<smem>>
    %316 = vector.broadcast %315 : f32 to vector<14x14xf32>
    %317 = arith.mulf %316, %286 : vector<14x14xf32>
    %318 = arith.addf %285, %317 : vector<14x14xf32>
    %319 = vector.extract_strided_slice %50 {offsets = [1, 1], sizes = [14, 14], strides = [1, 1]} : vector<16x16xf32> to vector<14x14xf32>
    %c0_145 = arith.constant 0 : index
    %c4_146 = arith.constant 4 : index
    %320 = memref.load %arg4[%c0_145, %c4_146] : memref<8x36xf32, #tpu.memory_space<smem>>
    %321 = vector.broadcast %320 : f32 to vector<14x14xf32>
    %322 = arith.mulf %321, %319 : vector<14x14xf32>
    %323 = arith.addf %290, %322 : vector<14x14xf32>
    %c1_147 = arith.constant 1 : index
    %c4_148 = arith.constant 4 : index
    %324 = memref.load %arg4[%c1_147, %c4_148] : memref<8x36xf32, #tpu.memory_space<smem>>
    %325 = vector.broadcast %324 : f32 to vector<14x14xf32>
    %326 = arith.mulf %325, %319 : vector<14x14xf32>
    %327 = arith.addf %294, %326 : vector<14x14xf32>
    %c2_149 = arith.constant 2 : index
    %c4_150 = arith.constant 4 : index
    %328 = memref.load %arg4[%c2_149, %c4_150] : memref<8x36xf32, #tpu.memory_space<smem>>
    %329 = vector.broadcast %328 : f32 to vector<14x14xf32>
    %330 = arith.mulf %329, %319 : vector<14x14xf32>
    %331 = arith.addf %298, %330 : vector<14x14xf32>
    %c3_151 = arith.constant 3 : index
    %c4_152 = arith.constant 4 : index
    %332 = memref.load %arg4[%c3_151, %c4_152] : memref<8x36xf32, #tpu.memory_space<smem>>
    %333 = vector.broadcast %332 : f32 to vector<14x14xf32>
    %334 = arith.mulf %333, %319 : vector<14x14xf32>
    %335 = arith.addf %302, %334 : vector<14x14xf32>
    %c4_153 = arith.constant 4 : index
    %c4_154 = arith.constant 4 : index
    %336 = memref.load %arg4[%c4_153, %c4_154] : memref<8x36xf32, #tpu.memory_space<smem>>
    %337 = vector.broadcast %336 : f32 to vector<14x14xf32>
    %338 = arith.mulf %337, %319 : vector<14x14xf32>
    %339 = arith.addf %306, %338 : vector<14x14xf32>
    %c5_155 = arith.constant 5 : index
    %c4_156 = arith.constant 4 : index
    %340 = memref.load %arg4[%c5_155, %c4_156] : memref<8x36xf32, #tpu.memory_space<smem>>
    %341 = vector.broadcast %340 : f32 to vector<14x14xf32>
    %342 = arith.mulf %341, %319 : vector<14x14xf32>
    %343 = arith.addf %310, %342 : vector<14x14xf32>
    %c6_157 = arith.constant 6 : index
    %c4_158 = arith.constant 4 : index
    %344 = memref.load %arg4[%c6_157, %c4_158] : memref<8x36xf32, #tpu.memory_space<smem>>
    %345 = vector.broadcast %344 : f32 to vector<14x14xf32>
    %346 = arith.mulf %345, %319 : vector<14x14xf32>
    %347 = arith.addf %314, %346 : vector<14x14xf32>
    %c7_159 = arith.constant 7 : index
    %c4_160 = arith.constant 4 : index
    %348 = memref.load %arg4[%c7_159, %c4_160] : memref<8x36xf32, #tpu.memory_space<smem>>
    %349 = vector.broadcast %348 : f32 to vector<14x14xf32>
    %350 = arith.mulf %349, %319 : vector<14x14xf32>
    %351 = arith.addf %318, %350 : vector<14x14xf32>
    %352 = vector.extract_strided_slice %50 {offsets = [1, 2], sizes = [14, 14], strides = [1, 1]} : vector<16x16xf32> to vector<14x14xf32>
    %c0_161 = arith.constant 0 : index
    %c5_162 = arith.constant 5 : index
    %353 = memref.load %arg4[%c0_161, %c5_162] : memref<8x36xf32, #tpu.memory_space<smem>>
    %354 = vector.broadcast %353 : f32 to vector<14x14xf32>
    %355 = arith.mulf %354, %352 : vector<14x14xf32>
    %356 = arith.addf %323, %355 : vector<14x14xf32>
    %c1_163 = arith.constant 1 : index
    %c5_164 = arith.constant 5 : index
    %357 = memref.load %arg4[%c1_163, %c5_164] : memref<8x36xf32, #tpu.memory_space<smem>>
    %358 = vector.broadcast %357 : f32 to vector<14x14xf32>
    %359 = arith.mulf %358, %352 : vector<14x14xf32>
    %360 = arith.addf %327, %359 : vector<14x14xf32>
    %c2_165 = arith.constant 2 : index
    %c5_166 = arith.constant 5 : index
    %361 = memref.load %arg4[%c2_165, %c5_166] : memref<8x36xf32, #tpu.memory_space<smem>>
    %362 = vector.broadcast %361 : f32 to vector<14x14xf32>
    %363 = arith.mulf %362, %352 : vector<14x14xf32>
    %364 = arith.addf %331, %363 : vector<14x14xf32>
    %c3_167 = arith.constant 3 : index
    %c5_168 = arith.constant 5 : index
    %365 = memref.load %arg4[%c3_167, %c5_168] : memref<8x36xf32, #tpu.memory_space<smem>>
    %366 = vector.broadcast %365 : f32 to vector<14x14xf32>
    %367 = arith.mulf %366, %352 : vector<14x14xf32>
    %368 = arith.addf %335, %367 : vector<14x14xf32>
    %c4_169 = arith.constant 4 : index
    %c5_170 = arith.constant 5 : index
    %369 = memref.load %arg4[%c4_169, %c5_170] : memref<8x36xf32, #tpu.memory_space<smem>>
    %370 = vector.broadcast %369 : f32 to vector<14x14xf32>
    %371 = arith.mulf %370, %352 : vector<14x14xf32>
    %372 = arith.addf %339, %371 : vector<14x14xf32>
    %c5_171 = arith.constant 5 : index
    %c5_172 = arith.constant 5 : index
    %373 = memref.load %arg4[%c5_171, %c5_172] : memref<8x36xf32, #tpu.memory_space<smem>>
    %374 = vector.broadcast %373 : f32 to vector<14x14xf32>
    %375 = arith.mulf %374, %352 : vector<14x14xf32>
    %376 = arith.addf %343, %375 : vector<14x14xf32>
    %c6_173 = arith.constant 6 : index
    %c5_174 = arith.constant 5 : index
    %377 = memref.load %arg4[%c6_173, %c5_174] : memref<8x36xf32, #tpu.memory_space<smem>>
    %378 = vector.broadcast %377 : f32 to vector<14x14xf32>
    %379 = arith.mulf %378, %352 : vector<14x14xf32>
    %380 = arith.addf %347, %379 : vector<14x14xf32>
    %c7_175 = arith.constant 7 : index
    %c5_176 = arith.constant 5 : index
    %381 = memref.load %arg4[%c7_175, %c5_176] : memref<8x36xf32, #tpu.memory_space<smem>>
    %382 = vector.broadcast %381 : f32 to vector<14x14xf32>
    %383 = arith.mulf %382, %352 : vector<14x14xf32>
    %384 = arith.addf %351, %383 : vector<14x14xf32>
    %385 = vector.extract_strided_slice %50 {offsets = [2, 0], sizes = [14, 14], strides = [1, 1]} : vector<16x16xf32> to vector<14x14xf32>
    %c0_177 = arith.constant 0 : index
    %c6_178 = arith.constant 6 : index
    %386 = memref.load %arg4[%c0_177, %c6_178] : memref<8x36xf32, #tpu.memory_space<smem>>
    %387 = vector.broadcast %386 : f32 to vector<14x14xf32>
    %388 = arith.mulf %387, %385 : vector<14x14xf32>
    %389 = arith.addf %356, %388 : vector<14x14xf32>
    %c1_179 = arith.constant 1 : index
    %c6_180 = arith.constant 6 : index
    %390 = memref.load %arg4[%c1_179, %c6_180] : memref<8x36xf32, #tpu.memory_space<smem>>
    %391 = vector.broadcast %390 : f32 to vector<14x14xf32>
    %392 = arith.mulf %391, %385 : vector<14x14xf32>
    %393 = arith.addf %360, %392 : vector<14x14xf32>
    %c2_181 = arith.constant 2 : index
    %c6_182 = arith.constant 6 : index
    %394 = memref.load %arg4[%c2_181, %c6_182] : memref<8x36xf32, #tpu.memory_space<smem>>
    %395 = vector.broadcast %394 : f32 to vector<14x14xf32>
    %396 = arith.mulf %395, %385 : vector<14x14xf32>
    %397 = arith.addf %364, %396 : vector<14x14xf32>
    %c3_183 = arith.constant 3 : index
    %c6_184 = arith.constant 6 : index
    %398 = memref.load %arg4[%c3_183, %c6_184] : memref<8x36xf32, #tpu.memory_space<smem>>
    %399 = vector.broadcast %398 : f32 to vector<14x14xf32>
    %400 = arith.mulf %399, %385 : vector<14x14xf32>
    %401 = arith.addf %368, %400 : vector<14x14xf32>
    %c4_185 = arith.constant 4 : index
    %c6_186 = arith.constant 6 : index
    %402 = memref.load %arg4[%c4_185, %c6_186] : memref<8x36xf32, #tpu.memory_space<smem>>
    %403 = vector.broadcast %402 : f32 to vector<14x14xf32>
    %404 = arith.mulf %403, %385 : vector<14x14xf32>
    %405 = arith.addf %372, %404 : vector<14x14xf32>
    %c5_187 = arith.constant 5 : index
    %c6_188 = arith.constant 6 : index
    %406 = memref.load %arg4[%c5_187, %c6_188] : memref<8x36xf32, #tpu.memory_space<smem>>
    %407 = vector.broadcast %406 : f32 to vector<14x14xf32>
    %408 = arith.mulf %407, %385 : vector<14x14xf32>
    %409 = arith.addf %376, %408 : vector<14x14xf32>
    %c6_189 = arith.constant 6 : index
    %c6_190 = arith.constant 6 : index
    %410 = memref.load %arg4[%c6_189, %c6_190] : memref<8x36xf32, #tpu.memory_space<smem>>
    %411 = vector.broadcast %410 : f32 to vector<14x14xf32>
    %412 = arith.mulf %411, %385 : vector<14x14xf32>
    %413 = arith.addf %380, %412 : vector<14x14xf32>
    %c7_191 = arith.constant 7 : index
    %c6_192 = arith.constant 6 : index
    %414 = memref.load %arg4[%c7_191, %c6_192] : memref<8x36xf32, #tpu.memory_space<smem>>
    %415 = vector.broadcast %414 : f32 to vector<14x14xf32>
    %416 = arith.mulf %415, %385 : vector<14x14xf32>
    %417 = arith.addf %384, %416 : vector<14x14xf32>
    %418 = vector.extract_strided_slice %50 {offsets = [2, 1], sizes = [14, 14], strides = [1, 1]} : vector<16x16xf32> to vector<14x14xf32>
    %c0_193 = arith.constant 0 : index
    %c7_194 = arith.constant 7 : index
    %419 = memref.load %arg4[%c0_193, %c7_194] : memref<8x36xf32, #tpu.memory_space<smem>>
    %420 = vector.broadcast %419 : f32 to vector<14x14xf32>
    %421 = arith.mulf %420, %418 : vector<14x14xf32>
    %422 = arith.addf %389, %421 : vector<14x14xf32>
    %c1_195 = arith.constant 1 : index
    %c7_196 = arith.constant 7 : index
    %423 = memref.load %arg4[%c1_195, %c7_196] : memref<8x36xf32, #tpu.memory_space<smem>>
    %424 = vector.broadcast %423 : f32 to vector<14x14xf32>
    %425 = arith.mulf %424, %418 : vector<14x14xf32>
    %426 = arith.addf %393, %425 : vector<14x14xf32>
    %c2_197 = arith.constant 2 : index
    %c7_198 = arith.constant 7 : index
    %427 = memref.load %arg4[%c2_197, %c7_198] : memref<8x36xf32, #tpu.memory_space<smem>>
    %428 = vector.broadcast %427 : f32 to vector<14x14xf32>
    %429 = arith.mulf %428, %418 : vector<14x14xf32>
    %430 = arith.addf %397, %429 : vector<14x14xf32>
    %c3_199 = arith.constant 3 : index
    %c7_200 = arith.constant 7 : index
    %431 = memref.load %arg4[%c3_199, %c7_200] : memref<8x36xf32, #tpu.memory_space<smem>>
    %432 = vector.broadcast %431 : f32 to vector<14x14xf32>
    %433 = arith.mulf %432, %418 : vector<14x14xf32>
    %434 = arith.addf %401, %433 : vector<14x14xf32>
    %c4_201 = arith.constant 4 : index
    %c7_202 = arith.constant 7 : index
    %435 = memref.load %arg4[%c4_201, %c7_202] : memref<8x36xf32, #tpu.memory_space<smem>>
    %436 = vector.broadcast %435 : f32 to vector<14x14xf32>
    %437 = arith.mulf %436, %418 : vector<14x14xf32>
    %438 = arith.addf %405, %437 : vector<14x14xf32>
    %c5_203 = arith.constant 5 : index
    %c7_204 = arith.constant 7 : index
    %439 = memref.load %arg4[%c5_203, %c7_204] : memref<8x36xf32, #tpu.memory_space<smem>>
    %440 = vector.broadcast %439 : f32 to vector<14x14xf32>
    %441 = arith.mulf %440, %418 : vector<14x14xf32>
    %442 = arith.addf %409, %441 : vector<14x14xf32>
    %c6_205 = arith.constant 6 : index
    %c7_206 = arith.constant 7 : index
    %443 = memref.load %arg4[%c6_205, %c7_206] : memref<8x36xf32, #tpu.memory_space<smem>>
    %444 = vector.broadcast %443 : f32 to vector<14x14xf32>
    %445 = arith.mulf %444, %418 : vector<14x14xf32>
    %446 = arith.addf %413, %445 : vector<14x14xf32>
    %c7_207 = arith.constant 7 : index
    %c7_208 = arith.constant 7 : index
    %447 = memref.load %arg4[%c7_207, %c7_208] : memref<8x36xf32, #tpu.memory_space<smem>>
    %448 = vector.broadcast %447 : f32 to vector<14x14xf32>
    %449 = arith.mulf %448, %418 : vector<14x14xf32>
    %450 = arith.addf %417, %449 : vector<14x14xf32>
    %451 = vector.extract_strided_slice %50 {offsets = [2, 2], sizes = [14, 14], strides = [1, 1]} : vector<16x16xf32> to vector<14x14xf32>
    %c0_209 = arith.constant 0 : index
    %c8_210 = arith.constant 8 : index
    %452 = memref.load %arg4[%c0_209, %c8_210] : memref<8x36xf32, #tpu.memory_space<smem>>
    %453 = vector.broadcast %452 : f32 to vector<14x14xf32>
    %454 = arith.mulf %453, %451 : vector<14x14xf32>
    %455 = arith.addf %422, %454 : vector<14x14xf32>
    %c1_211 = arith.constant 1 : index
    %c8_212 = arith.constant 8 : index
    %456 = memref.load %arg4[%c1_211, %c8_212] : memref<8x36xf32, #tpu.memory_space<smem>>
    %457 = vector.broadcast %456 : f32 to vector<14x14xf32>
    %458 = arith.mulf %457, %451 : vector<14x14xf32>
    %459 = arith.addf %426, %458 : vector<14x14xf32>
    %c2_213 = arith.constant 2 : index
    %c8_214 = arith.constant 8 : index
    %460 = memref.load %arg4[%c2_213, %c8_214] : memref<8x36xf32, #tpu.memory_space<smem>>
    %461 = vector.broadcast %460 : f32 to vector<14x14xf32>
    %462 = arith.mulf %461, %451 : vector<14x14xf32>
    %463 = arith.addf %430, %462 : vector<14x14xf32>
    %c3_215 = arith.constant 3 : index
    %c8_216 = arith.constant 8 : index
    %464 = memref.load %arg4[%c3_215, %c8_216] : memref<8x36xf32, #tpu.memory_space<smem>>
    %465 = vector.broadcast %464 : f32 to vector<14x14xf32>
    %466 = arith.mulf %465, %451 : vector<14x14xf32>
    %467 = arith.addf %434, %466 : vector<14x14xf32>
    %c4_217 = arith.constant 4 : index
    %c8_218 = arith.constant 8 : index
    %468 = memref.load %arg4[%c4_217, %c8_218] : memref<8x36xf32, #tpu.memory_space<smem>>
    %469 = vector.broadcast %468 : f32 to vector<14x14xf32>
    %470 = arith.mulf %469, %451 : vector<14x14xf32>
    %471 = arith.addf %438, %470 : vector<14x14xf32>
    %c5_219 = arith.constant 5 : index
    %c8_220 = arith.constant 8 : index
    %472 = memref.load %arg4[%c5_219, %c8_220] : memref<8x36xf32, #tpu.memory_space<smem>>
    %473 = vector.broadcast %472 : f32 to vector<14x14xf32>
    %474 = arith.mulf %473, %451 : vector<14x14xf32>
    %475 = arith.addf %442, %474 : vector<14x14xf32>
    %c6_221 = arith.constant 6 : index
    %c8_222 = arith.constant 8 : index
    %476 = memref.load %arg4[%c6_221, %c8_222] : memref<8x36xf32, #tpu.memory_space<smem>>
    %477 = vector.broadcast %476 : f32 to vector<14x14xf32>
    %478 = arith.mulf %477, %451 : vector<14x14xf32>
    %479 = arith.addf %446, %478 : vector<14x14xf32>
    %c7_223 = arith.constant 7 : index
    %c8_224 = arith.constant 8 : index
    %480 = memref.load %arg4[%c7_223, %c8_224] : memref<8x36xf32, #tpu.memory_space<smem>>
    %481 = vector.broadcast %480 : f32 to vector<14x14xf32>
    %482 = arith.mulf %481, %451 : vector<14x14xf32>
    %483 = arith.addf %450, %482 : vector<14x14xf32>
    %484 = vector.extract_strided_slice %90 {offsets = [0, 0], sizes = [14, 14], strides = [1, 1]} : vector<16x16xf32> to vector<14x14xf32>
    %c0_225 = arith.constant 0 : index
    %c9 = arith.constant 9 : index
    %485 = memref.load %arg4[%c0_225, %c9] : memref<8x36xf32, #tpu.memory_space<smem>>
    %486 = vector.broadcast %485 : f32 to vector<14x14xf32>
    %487 = arith.mulf %486, %484 : vector<14x14xf32>
    %488 = arith.addf %455, %487 : vector<14x14xf32>
    %c1_226 = arith.constant 1 : index
    %c9_227 = arith.constant 9 : index
    %489 = memref.load %arg4[%c1_226, %c9_227] : memref<8x36xf32, #tpu.memory_space<smem>>
    %490 = vector.broadcast %489 : f32 to vector<14x14xf32>
    %491 = arith.mulf %490, %484 : vector<14x14xf32>
    %492 = arith.addf %459, %491 : vector<14x14xf32>
    %c2_228 = arith.constant 2 : index
    %c9_229 = arith.constant 9 : index
    %493 = memref.load %arg4[%c2_228, %c9_229] : memref<8x36xf32, #tpu.memory_space<smem>>
    %494 = vector.broadcast %493 : f32 to vector<14x14xf32>
    %495 = arith.mulf %494, %484 : vector<14x14xf32>
    %496 = arith.addf %463, %495 : vector<14x14xf32>
    %c3_230 = arith.constant 3 : index
    %c9_231 = arith.constant 9 : index
    %497 = memref.load %arg4[%c3_230, %c9_231] : memref<8x36xf32, #tpu.memory_space<smem>>
    %498 = vector.broadcast %497 : f32 to vector<14x14xf32>
    %499 = arith.mulf %498, %484 : vector<14x14xf32>
    %500 = arith.addf %467, %499 : vector<14x14xf32>
    %c4_232 = arith.constant 4 : index
    %c9_233 = arith.constant 9 : index
    %501 = memref.load %arg4[%c4_232, %c9_233] : memref<8x36xf32, #tpu.memory_space<smem>>
    %502 = vector.broadcast %501 : f32 to vector<14x14xf32>
    %503 = arith.mulf %502, %484 : vector<14x14xf32>
    %504 = arith.addf %471, %503 : vector<14x14xf32>
    %c5_234 = arith.constant 5 : index
    %c9_235 = arith.constant 9 : index
    %505 = memref.load %arg4[%c5_234, %c9_235] : memref<8x36xf32, #tpu.memory_space<smem>>
    %506 = vector.broadcast %505 : f32 to vector<14x14xf32>
    %507 = arith.mulf %506, %484 : vector<14x14xf32>
    %508 = arith.addf %475, %507 : vector<14x14xf32>
    %c6_236 = arith.constant 6 : index
    %c9_237 = arith.constant 9 : index
    %509 = memref.load %arg4[%c6_236, %c9_237] : memref<8x36xf32, #tpu.memory_space<smem>>
    %510 = vector.broadcast %509 : f32 to vector<14x14xf32>
    %511 = arith.mulf %510, %484 : vector<14x14xf32>
    %512 = arith.addf %479, %511 : vector<14x14xf32>
    %c7_238 = arith.constant 7 : index
    %c9_239 = arith.constant 9 : index
    %513 = memref.load %arg4[%c7_238, %c9_239] : memref<8x36xf32, #tpu.memory_space<smem>>
    %514 = vector.broadcast %513 : f32 to vector<14x14xf32>
    %515 = arith.mulf %514, %484 : vector<14x14xf32>
    %516 = arith.addf %483, %515 : vector<14x14xf32>
    %517 = vector.extract_strided_slice %90 {offsets = [0, 1], sizes = [14, 14], strides = [1, 1]} : vector<16x16xf32> to vector<14x14xf32>
    %c0_240 = arith.constant 0 : index
    %c10 = arith.constant 10 : index
    %518 = memref.load %arg4[%c0_240, %c10] : memref<8x36xf32, #tpu.memory_space<smem>>
    %519 = vector.broadcast %518 : f32 to vector<14x14xf32>
    %520 = arith.mulf %519, %517 : vector<14x14xf32>
    %521 = arith.addf %488, %520 : vector<14x14xf32>
    %c1_241 = arith.constant 1 : index
    %c10_242 = arith.constant 10 : index
    %522 = memref.load %arg4[%c1_241, %c10_242] : memref<8x36xf32, #tpu.memory_space<smem>>
    %523 = vector.broadcast %522 : f32 to vector<14x14xf32>
    %524 = arith.mulf %523, %517 : vector<14x14xf32>
    %525 = arith.addf %492, %524 : vector<14x14xf32>
    %c2_243 = arith.constant 2 : index
    %c10_244 = arith.constant 10 : index
    %526 = memref.load %arg4[%c2_243, %c10_244] : memref<8x36xf32, #tpu.memory_space<smem>>
    %527 = vector.broadcast %526 : f32 to vector<14x14xf32>
    %528 = arith.mulf %527, %517 : vector<14x14xf32>
    %529 = arith.addf %496, %528 : vector<14x14xf32>
    %c3_245 = arith.constant 3 : index
    %c10_246 = arith.constant 10 : index
    %530 = memref.load %arg4[%c3_245, %c10_246] : memref<8x36xf32, #tpu.memory_space<smem>>
    %531 = vector.broadcast %530 : f32 to vector<14x14xf32>
    %532 = arith.mulf %531, %517 : vector<14x14xf32>
    %533 = arith.addf %500, %532 : vector<14x14xf32>
    %c4_247 = arith.constant 4 : index
    %c10_248 = arith.constant 10 : index
    %534 = memref.load %arg4[%c4_247, %c10_248] : memref<8x36xf32, #tpu.memory_space<smem>>
    %535 = vector.broadcast %534 : f32 to vector<14x14xf32>
    %536 = arith.mulf %535, %517 : vector<14x14xf32>
    %537 = arith.addf %504, %536 : vector<14x14xf32>
    %c5_249 = arith.constant 5 : index
    %c10_250 = arith.constant 10 : index
    %538 = memref.load %arg4[%c5_249, %c10_250] : memref<8x36xf32, #tpu.memory_space<smem>>
    %539 = vector.broadcast %538 : f32 to vector<14x14xf32>
    %540 = arith.mulf %539, %517 : vector<14x14xf32>
    %541 = arith.addf %508, %540 : vector<14x14xf32>
    %c6_251 = arith.constant 6 : index
    %c10_252 = arith.constant 10 : index
    %542 = memref.load %arg4[%c6_251, %c10_252] : memref<8x36xf32, #tpu.memory_space<smem>>
    %543 = vector.broadcast %542 : f32 to vector<14x14xf32>
    %544 = arith.mulf %543, %517 : vector<14x14xf32>
    %545 = arith.addf %512, %544 : vector<14x14xf32>
    %c7_253 = arith.constant 7 : index
    %c10_254 = arith.constant 10 : index
    %546 = memref.load %arg4[%c7_253, %c10_254] : memref<8x36xf32, #tpu.memory_space<smem>>
    %547 = vector.broadcast %546 : f32 to vector<14x14xf32>
    %548 = arith.mulf %547, %517 : vector<14x14xf32>
    %549 = arith.addf %516, %548 : vector<14x14xf32>
    %550 = vector.extract_strided_slice %90 {offsets = [0, 2], sizes = [14, 14], strides = [1, 1]} : vector<16x16xf32> to vector<14x14xf32>
    %c0_255 = arith.constant 0 : index
    %c11 = arith.constant 11 : index
    %551 = memref.load %arg4[%c0_255, %c11] : memref<8x36xf32, #tpu.memory_space<smem>>
    %552 = vector.broadcast %551 : f32 to vector<14x14xf32>
    %553 = arith.mulf %552, %550 : vector<14x14xf32>
    %554 = arith.addf %521, %553 : vector<14x14xf32>
    %c1_256 = arith.constant 1 : index
    %c11_257 = arith.constant 11 : index
    %555 = memref.load %arg4[%c1_256, %c11_257] : memref<8x36xf32, #tpu.memory_space<smem>>
    %556 = vector.broadcast %555 : f32 to vector<14x14xf32>
    %557 = arith.mulf %556, %550 : vector<14x14xf32>
    %558 = arith.addf %525, %557 : vector<14x14xf32>
    %c2_258 = arith.constant 2 : index
    %c11_259 = arith.constant 11 : index
    %559 = memref.load %arg4[%c2_258, %c11_259] : memref<8x36xf32, #tpu.memory_space<smem>>
    %560 = vector.broadcast %559 : f32 to vector<14x14xf32>
    %561 = arith.mulf %560, %550 : vector<14x14xf32>
    %562 = arith.addf %529, %561 : vector<14x14xf32>
    %c3_260 = arith.constant 3 : index
    %c11_261 = arith.constant 11 : index
    %563 = memref.load %arg4[%c3_260, %c11_261] : memref<8x36xf32, #tpu.memory_space<smem>>
    %564 = vector.broadcast %563 : f32 to vector<14x14xf32>
    %565 = arith.mulf %564, %550 : vector<14x14xf32>
    %566 = arith.addf %533, %565 : vector<14x14xf32>
    %c4_262 = arith.constant 4 : index
    %c11_263 = arith.constant 11 : index
    %567 = memref.load %arg4[%c4_262, %c11_263] : memref<8x36xf32, #tpu.memory_space<smem>>
    %568 = vector.broadcast %567 : f32 to vector<14x14xf32>
    %569 = arith.mulf %568, %550 : vector<14x14xf32>
    %570 = arith.addf %537, %569 : vector<14x14xf32>
    %c5_264 = arith.constant 5 : index
    %c11_265 = arith.constant 11 : index
    %571 = memref.load %arg4[%c5_264, %c11_265] : memref<8x36xf32, #tpu.memory_space<smem>>
    %572 = vector.broadcast %571 : f32 to vector<14x14xf32>
    %573 = arith.mulf %572, %550 : vector<14x14xf32>
    %574 = arith.addf %541, %573 : vector<14x14xf32>
    %c6_266 = arith.constant 6 : index
    %c11_267 = arith.constant 11 : index
    %575 = memref.load %arg4[%c6_266, %c11_267] : memref<8x36xf32, #tpu.memory_space<smem>>
    %576 = vector.broadcast %575 : f32 to vector<14x14xf32>
    %577 = arith.mulf %576, %550 : vector<14x14xf32>
    %578 = arith.addf %545, %577 : vector<14x14xf32>
    %c7_268 = arith.constant 7 : index
    %c11_269 = arith.constant 11 : index
    %579 = memref.load %arg4[%c7_268, %c11_269] : memref<8x36xf32, #tpu.memory_space<smem>>
    %580 = vector.broadcast %579 : f32 to vector<14x14xf32>
    %581 = arith.mulf %580, %550 : vector<14x14xf32>
    %582 = arith.addf %549, %581 : vector<14x14xf32>
    %583 = vector.extract_strided_slice %90 {offsets = [1, 0], sizes = [14, 14], strides = [1, 1]} : vector<16x16xf32> to vector<14x14xf32>
    %c0_270 = arith.constant 0 : index
    %c12 = arith.constant 12 : index
    %584 = memref.load %arg4[%c0_270, %c12] : memref<8x36xf32, #tpu.memory_space<smem>>
    %585 = vector.broadcast %584 : f32 to vector<14x14xf32>
    %586 = arith.mulf %585, %583 : vector<14x14xf32>
    %587 = arith.addf %554, %586 : vector<14x14xf32>
    %c1_271 = arith.constant 1 : index
    %c12_272 = arith.constant 12 : index
    %588 = memref.load %arg4[%c1_271, %c12_272] : memref<8x36xf32, #tpu.memory_space<smem>>
    %589 = vector.broadcast %588 : f32 to vector<14x14xf32>
    %590 = arith.mulf %589, %583 : vector<14x14xf32>
    %591 = arith.addf %558, %590 : vector<14x14xf32>
    %c2_273 = arith.constant 2 : index
    %c12_274 = arith.constant 12 : index
    %592 = memref.load %arg4[%c2_273, %c12_274] : memref<8x36xf32, #tpu.memory_space<smem>>
    %593 = vector.broadcast %592 : f32 to vector<14x14xf32>
    %594 = arith.mulf %593, %583 : vector<14x14xf32>
    %595 = arith.addf %562, %594 : vector<14x14xf32>
    %c3_275 = arith.constant 3 : index
    %c12_276 = arith.constant 12 : index
    %596 = memref.load %arg4[%c3_275, %c12_276] : memref<8x36xf32, #tpu.memory_space<smem>>
    %597 = vector.broadcast %596 : f32 to vector<14x14xf32>
    %598 = arith.mulf %597, %583 : vector<14x14xf32>
    %599 = arith.addf %566, %598 : vector<14x14xf32>
    %c4_277 = arith.constant 4 : index
    %c12_278 = arith.constant 12 : index
    %600 = memref.load %arg4[%c4_277, %c12_278] : memref<8x36xf32, #tpu.memory_space<smem>>
    %601 = vector.broadcast %600 : f32 to vector<14x14xf32>
    %602 = arith.mulf %601, %583 : vector<14x14xf32>
    %603 = arith.addf %570, %602 : vector<14x14xf32>
    %c5_279 = arith.constant 5 : index
    %c12_280 = arith.constant 12 : index
    %604 = memref.load %arg4[%c5_279, %c12_280] : memref<8x36xf32, #tpu.memory_space<smem>>
    %605 = vector.broadcast %604 : f32 to vector<14x14xf32>
    %606 = arith.mulf %605, %583 : vector<14x14xf32>
    %607 = arith.addf %574, %606 : vector<14x14xf32>
    %c6_281 = arith.constant 6 : index
    %c12_282 = arith.constant 12 : index
    %608 = memref.load %arg4[%c6_281, %c12_282] : memref<8x36xf32, #tpu.memory_space<smem>>
    %609 = vector.broadcast %608 : f32 to vector<14x14xf32>
    %610 = arith.mulf %609, %583 : vector<14x14xf32>
    %611 = arith.addf %578, %610 : vector<14x14xf32>
    %c7_283 = arith.constant 7 : index
    %c12_284 = arith.constant 12 : index
    %612 = memref.load %arg4[%c7_283, %c12_284] : memref<8x36xf32, #tpu.memory_space<smem>>
    %613 = vector.broadcast %612 : f32 to vector<14x14xf32>
    %614 = arith.mulf %613, %583 : vector<14x14xf32>
    %615 = arith.addf %582, %614 : vector<14x14xf32>
    %616 = vector.extract_strided_slice %90 {offsets = [1, 1], sizes = [14, 14], strides = [1, 1]} : vector<16x16xf32> to vector<14x14xf32>
    %c0_285 = arith.constant 0 : index
    %c13 = arith.constant 13 : index
    %617 = memref.load %arg4[%c0_285, %c13] : memref<8x36xf32, #tpu.memory_space<smem>>
    %618 = vector.broadcast %617 : f32 to vector<14x14xf32>
    %619 = arith.mulf %618, %616 : vector<14x14xf32>
    %620 = arith.addf %587, %619 : vector<14x14xf32>
    %c1_286 = arith.constant 1 : index
    %c13_287 = arith.constant 13 : index
    %621 = memref.load %arg4[%c1_286, %c13_287] : memref<8x36xf32, #tpu.memory_space<smem>>
    %622 = vector.broadcast %621 : f32 to vector<14x14xf32>
    %623 = arith.mulf %622, %616 : vector<14x14xf32>
    %624 = arith.addf %591, %623 : vector<14x14xf32>
    %c2_288 = arith.constant 2 : index
    %c13_289 = arith.constant 13 : index
    %625 = memref.load %arg4[%c2_288, %c13_289] : memref<8x36xf32, #tpu.memory_space<smem>>
    %626 = vector.broadcast %625 : f32 to vector<14x14xf32>
    %627 = arith.mulf %626, %616 : vector<14x14xf32>
    %628 = arith.addf %595, %627 : vector<14x14xf32>
    %c3_290 = arith.constant 3 : index
    %c13_291 = arith.constant 13 : index
    %629 = memref.load %arg4[%c3_290, %c13_291] : memref<8x36xf32, #tpu.memory_space<smem>>
    %630 = vector.broadcast %629 : f32 to vector<14x14xf32>
    %631 = arith.mulf %630, %616 : vector<14x14xf32>
    %632 = arith.addf %599, %631 : vector<14x14xf32>
    %c4_292 = arith.constant 4 : index
    %c13_293 = arith.constant 13 : index
    %633 = memref.load %arg4[%c4_292, %c13_293] : memref<8x36xf32, #tpu.memory_space<smem>>
    %634 = vector.broadcast %633 : f32 to vector<14x14xf32>
    %635 = arith.mulf %634, %616 : vector<14x14xf32>
    %636 = arith.addf %603, %635 : vector<14x14xf32>
    %c5_294 = arith.constant 5 : index
    %c13_295 = arith.constant 13 : index
    %637 = memref.load %arg4[%c5_294, %c13_295] : memref<8x36xf32, #tpu.memory_space<smem>>
    %638 = vector.broadcast %637 : f32 to vector<14x14xf32>
    %639 = arith.mulf %638, %616 : vector<14x14xf32>
    %640 = arith.addf %607, %639 : vector<14x14xf32>
    %c6_296 = arith.constant 6 : index
    %c13_297 = arith.constant 13 : index
    %641 = memref.load %arg4[%c6_296, %c13_297] : memref<8x36xf32, #tpu.memory_space<smem>>
    %642 = vector.broadcast %641 : f32 to vector<14x14xf32>
    %643 = arith.mulf %642, %616 : vector<14x14xf32>
    %644 = arith.addf %611, %643 : vector<14x14xf32>
    %c7_298 = arith.constant 7 : index
    %c13_299 = arith.constant 13 : index
    %645 = memref.load %arg4[%c7_298, %c13_299] : memref<8x36xf32, #tpu.memory_space<smem>>
    %646 = vector.broadcast %645 : f32 to vector<14x14xf32>
    %647 = arith.mulf %646, %616 : vector<14x14xf32>
    %648 = arith.addf %615, %647 : vector<14x14xf32>
    %649 = vector.extract_strided_slice %90 {offsets = [1, 2], sizes = [14, 14], strides = [1, 1]} : vector<16x16xf32> to vector<14x14xf32>
    %c0_300 = arith.constant 0 : index
    %c14 = arith.constant 14 : index
    %650 = memref.load %arg4[%c0_300, %c14] : memref<8x36xf32, #tpu.memory_space<smem>>
    %651 = vector.broadcast %650 : f32 to vector<14x14xf32>
    %652 = arith.mulf %651, %649 : vector<14x14xf32>
    %653 = arith.addf %620, %652 : vector<14x14xf32>
    %c1_301 = arith.constant 1 : index
    %c14_302 = arith.constant 14 : index
    %654 = memref.load %arg4[%c1_301, %c14_302] : memref<8x36xf32, #tpu.memory_space<smem>>
    %655 = vector.broadcast %654 : f32 to vector<14x14xf32>
    %656 = arith.mulf %655, %649 : vector<14x14xf32>
    %657 = arith.addf %624, %656 : vector<14x14xf32>
    %c2_303 = arith.constant 2 : index
    %c14_304 = arith.constant 14 : index
    %658 = memref.load %arg4[%c2_303, %c14_304] : memref<8x36xf32, #tpu.memory_space<smem>>
    %659 = vector.broadcast %658 : f32 to vector<14x14xf32>
    %660 = arith.mulf %659, %649 : vector<14x14xf32>
    %661 = arith.addf %628, %660 : vector<14x14xf32>
    %c3_305 = arith.constant 3 : index
    %c14_306 = arith.constant 14 : index
    %662 = memref.load %arg4[%c3_305, %c14_306] : memref<8x36xf32, #tpu.memory_space<smem>>
    %663 = vector.broadcast %662 : f32 to vector<14x14xf32>
    %664 = arith.mulf %663, %649 : vector<14x14xf32>
    %665 = arith.addf %632, %664 : vector<14x14xf32>
    %c4_307 = arith.constant 4 : index
    %c14_308 = arith.constant 14 : index
    %666 = memref.load %arg4[%c4_307, %c14_308] : memref<8x36xf32, #tpu.memory_space<smem>>
    %667 = vector.broadcast %666 : f32 to vector<14x14xf32>
    %668 = arith.mulf %667, %649 : vector<14x14xf32>
    %669 = arith.addf %636, %668 : vector<14x14xf32>
    %c5_309 = arith.constant 5 : index
    %c14_310 = arith.constant 14 : index
    %670 = memref.load %arg4[%c5_309, %c14_310] : memref<8x36xf32, #tpu.memory_space<smem>>
    %671 = vector.broadcast %670 : f32 to vector<14x14xf32>
    %672 = arith.mulf %671, %649 : vector<14x14xf32>
    %673 = arith.addf %640, %672 : vector<14x14xf32>
    %c6_311 = arith.constant 6 : index
    %c14_312 = arith.constant 14 : index
    %674 = memref.load %arg4[%c6_311, %c14_312] : memref<8x36xf32, #tpu.memory_space<smem>>
    %675 = vector.broadcast %674 : f32 to vector<14x14xf32>
    %676 = arith.mulf %675, %649 : vector<14x14xf32>
    %677 = arith.addf %644, %676 : vector<14x14xf32>
    %c7_313 = arith.constant 7 : index
    %c14_314 = arith.constant 14 : index
    %678 = memref.load %arg4[%c7_313, %c14_314] : memref<8x36xf32, #tpu.memory_space<smem>>
    %679 = vector.broadcast %678 : f32 to vector<14x14xf32>
    %680 = arith.mulf %679, %649 : vector<14x14xf32>
    %681 = arith.addf %648, %680 : vector<14x14xf32>
    %682 = vector.extract_strided_slice %90 {offsets = [2, 0], sizes = [14, 14], strides = [1, 1]} : vector<16x16xf32> to vector<14x14xf32>
    %c0_315 = arith.constant 0 : index
    %c15 = arith.constant 15 : index
    %683 = memref.load %arg4[%c0_315, %c15] : memref<8x36xf32, #tpu.memory_space<smem>>
    %684 = vector.broadcast %683 : f32 to vector<14x14xf32>
    %685 = arith.mulf %684, %682 : vector<14x14xf32>
    %686 = arith.addf %653, %685 : vector<14x14xf32>
    %c1_316 = arith.constant 1 : index
    %c15_317 = arith.constant 15 : index
    %687 = memref.load %arg4[%c1_316, %c15_317] : memref<8x36xf32, #tpu.memory_space<smem>>
    %688 = vector.broadcast %687 : f32 to vector<14x14xf32>
    %689 = arith.mulf %688, %682 : vector<14x14xf32>
    %690 = arith.addf %657, %689 : vector<14x14xf32>
    %c2_318 = arith.constant 2 : index
    %c15_319 = arith.constant 15 : index
    %691 = memref.load %arg4[%c2_318, %c15_319] : memref<8x36xf32, #tpu.memory_space<smem>>
    %692 = vector.broadcast %691 : f32 to vector<14x14xf32>
    %693 = arith.mulf %692, %682 : vector<14x14xf32>
    %694 = arith.addf %661, %693 : vector<14x14xf32>
    %c3_320 = arith.constant 3 : index
    %c15_321 = arith.constant 15 : index
    %695 = memref.load %arg4[%c3_320, %c15_321] : memref<8x36xf32, #tpu.memory_space<smem>>
    %696 = vector.broadcast %695 : f32 to vector<14x14xf32>
    %697 = arith.mulf %696, %682 : vector<14x14xf32>
    %698 = arith.addf %665, %697 : vector<14x14xf32>
    %c4_322 = arith.constant 4 : index
    %c15_323 = arith.constant 15 : index
    %699 = memref.load %arg4[%c4_322, %c15_323] : memref<8x36xf32, #tpu.memory_space<smem>>
    %700 = vector.broadcast %699 : f32 to vector<14x14xf32>
    %701 = arith.mulf %700, %682 : vector<14x14xf32>
    %702 = arith.addf %669, %701 : vector<14x14xf32>
    %c5_324 = arith.constant 5 : index
    %c15_325 = arith.constant 15 : index
    %703 = memref.load %arg4[%c5_324, %c15_325] : memref<8x36xf32, #tpu.memory_space<smem>>
    %704 = vector.broadcast %703 : f32 to vector<14x14xf32>
    %705 = arith.mulf %704, %682 : vector<14x14xf32>
    %706 = arith.addf %673, %705 : vector<14x14xf32>
    %c6_326 = arith.constant 6 : index
    %c15_327 = arith.constant 15 : index
    %707 = memref.load %arg4[%c6_326, %c15_327] : memref<8x36xf32, #tpu.memory_space<smem>>
    %708 = vector.broadcast %707 : f32 to vector<14x14xf32>
    %709 = arith.mulf %708, %682 : vector<14x14xf32>
    %710 = arith.addf %677, %709 : vector<14x14xf32>
    %c7_328 = arith.constant 7 : index
    %c15_329 = arith.constant 15 : index
    %711 = memref.load %arg4[%c7_328, %c15_329] : memref<8x36xf32, #tpu.memory_space<smem>>
    %712 = vector.broadcast %711 : f32 to vector<14x14xf32>
    %713 = arith.mulf %712, %682 : vector<14x14xf32>
    %714 = arith.addf %681, %713 : vector<14x14xf32>
    %715 = vector.extract_strided_slice %90 {offsets = [2, 1], sizes = [14, 14], strides = [1, 1]} : vector<16x16xf32> to vector<14x14xf32>
    %c0_330 = arith.constant 0 : index
    %c16 = arith.constant 16 : index
    %716 = memref.load %arg4[%c0_330, %c16] : memref<8x36xf32, #tpu.memory_space<smem>>
    %717 = vector.broadcast %716 : f32 to vector<14x14xf32>
    %718 = arith.mulf %717, %715 : vector<14x14xf32>
    %719 = arith.addf %686, %718 : vector<14x14xf32>
    %c1_331 = arith.constant 1 : index
    %c16_332 = arith.constant 16 : index
    %720 = memref.load %arg4[%c1_331, %c16_332] : memref<8x36xf32, #tpu.memory_space<smem>>
    %721 = vector.broadcast %720 : f32 to vector<14x14xf32>
    %722 = arith.mulf %721, %715 : vector<14x14xf32>
    %723 = arith.addf %690, %722 : vector<14x14xf32>
    %c2_333 = arith.constant 2 : index
    %c16_334 = arith.constant 16 : index
    %724 = memref.load %arg4[%c2_333, %c16_334] : memref<8x36xf32, #tpu.memory_space<smem>>
    %725 = vector.broadcast %724 : f32 to vector<14x14xf32>
    %726 = arith.mulf %725, %715 : vector<14x14xf32>
    %727 = arith.addf %694, %726 : vector<14x14xf32>
    %c3_335 = arith.constant 3 : index
    %c16_336 = arith.constant 16 : index
    %728 = memref.load %arg4[%c3_335, %c16_336] : memref<8x36xf32, #tpu.memory_space<smem>>
    %729 = vector.broadcast %728 : f32 to vector<14x14xf32>
    %730 = arith.mulf %729, %715 : vector<14x14xf32>
    %731 = arith.addf %698, %730 : vector<14x14xf32>
    %c4_337 = arith.constant 4 : index
    %c16_338 = arith.constant 16 : index
    %732 = memref.load %arg4[%c4_337, %c16_338] : memref<8x36xf32, #tpu.memory_space<smem>>
    %733 = vector.broadcast %732 : f32 to vector<14x14xf32>
    %734 = arith.mulf %733, %715 : vector<14x14xf32>
    %735 = arith.addf %702, %734 : vector<14x14xf32>
    %c5_339 = arith.constant 5 : index
    %c16_340 = arith.constant 16 : index
    %736 = memref.load %arg4[%c5_339, %c16_340] : memref<8x36xf32, #tpu.memory_space<smem>>
    %737 = vector.broadcast %736 : f32 to vector<14x14xf32>
    %738 = arith.mulf %737, %715 : vector<14x14xf32>
    %739 = arith.addf %706, %738 : vector<14x14xf32>
    %c6_341 = arith.constant 6 : index
    %c16_342 = arith.constant 16 : index
    %740 = memref.load %arg4[%c6_341, %c16_342] : memref<8x36xf32, #tpu.memory_space<smem>>
    %741 = vector.broadcast %740 : f32 to vector<14x14xf32>
    %742 = arith.mulf %741, %715 : vector<14x14xf32>
    %743 = arith.addf %710, %742 : vector<14x14xf32>
    %c7_343 = arith.constant 7 : index
    %c16_344 = arith.constant 16 : index
    %744 = memref.load %arg4[%c7_343, %c16_344] : memref<8x36xf32, #tpu.memory_space<smem>>
    %745 = vector.broadcast %744 : f32 to vector<14x14xf32>
    %746 = arith.mulf %745, %715 : vector<14x14xf32>
    %747 = arith.addf %714, %746 : vector<14x14xf32>
    %748 = vector.extract_strided_slice %90 {offsets = [2, 2], sizes = [14, 14], strides = [1, 1]} : vector<16x16xf32> to vector<14x14xf32>
    %c0_345 = arith.constant 0 : index
    %c17 = arith.constant 17 : index
    %749 = memref.load %arg4[%c0_345, %c17] : memref<8x36xf32, #tpu.memory_space<smem>>
    %750 = vector.broadcast %749 : f32 to vector<14x14xf32>
    %751 = arith.mulf %750, %748 : vector<14x14xf32>
    %752 = arith.addf %719, %751 : vector<14x14xf32>
    %c1_346 = arith.constant 1 : index
    %c17_347 = arith.constant 17 : index
    %753 = memref.load %arg4[%c1_346, %c17_347] : memref<8x36xf32, #tpu.memory_space<smem>>
    %754 = vector.broadcast %753 : f32 to vector<14x14xf32>
    %755 = arith.mulf %754, %748 : vector<14x14xf32>
    %756 = arith.addf %723, %755 : vector<14x14xf32>
    %c2_348 = arith.constant 2 : index
    %c17_349 = arith.constant 17 : index
    %757 = memref.load %arg4[%c2_348, %c17_349] : memref<8x36xf32, #tpu.memory_space<smem>>
    %758 = vector.broadcast %757 : f32 to vector<14x14xf32>
    %759 = arith.mulf %758, %748 : vector<14x14xf32>
    %760 = arith.addf %727, %759 : vector<14x14xf32>
    %c3_350 = arith.constant 3 : index
    %c17_351 = arith.constant 17 : index
    %761 = memref.load %arg4[%c3_350, %c17_351] : memref<8x36xf32, #tpu.memory_space<smem>>
    %762 = vector.broadcast %761 : f32 to vector<14x14xf32>
    %763 = arith.mulf %762, %748 : vector<14x14xf32>
    %764 = arith.addf %731, %763 : vector<14x14xf32>
    %c4_352 = arith.constant 4 : index
    %c17_353 = arith.constant 17 : index
    %765 = memref.load %arg4[%c4_352, %c17_353] : memref<8x36xf32, #tpu.memory_space<smem>>
    %766 = vector.broadcast %765 : f32 to vector<14x14xf32>
    %767 = arith.mulf %766, %748 : vector<14x14xf32>
    %768 = arith.addf %735, %767 : vector<14x14xf32>
    %c5_354 = arith.constant 5 : index
    %c17_355 = arith.constant 17 : index
    %769 = memref.load %arg4[%c5_354, %c17_355] : memref<8x36xf32, #tpu.memory_space<smem>>
    %770 = vector.broadcast %769 : f32 to vector<14x14xf32>
    %771 = arith.mulf %770, %748 : vector<14x14xf32>
    %772 = arith.addf %739, %771 : vector<14x14xf32>
    %c6_356 = arith.constant 6 : index
    %c17_357 = arith.constant 17 : index
    %773 = memref.load %arg4[%c6_356, %c17_357] : memref<8x36xf32, #tpu.memory_space<smem>>
    %774 = vector.broadcast %773 : f32 to vector<14x14xf32>
    %775 = arith.mulf %774, %748 : vector<14x14xf32>
    %776 = arith.addf %743, %775 : vector<14x14xf32>
    %c7_358 = arith.constant 7 : index
    %c17_359 = arith.constant 17 : index
    %777 = memref.load %arg4[%c7_358, %c17_359] : memref<8x36xf32, #tpu.memory_space<smem>>
    %778 = vector.broadcast %777 : f32 to vector<14x14xf32>
    %779 = arith.mulf %778, %748 : vector<14x14xf32>
    %780 = arith.addf %747, %779 : vector<14x14xf32>
    %781 = vector.extract_strided_slice %130 {offsets = [0, 0], sizes = [14, 14], strides = [1, 1]} : vector<16x16xf32> to vector<14x14xf32>
    %c0_360 = arith.constant 0 : index
    %c18 = arith.constant 18 : index
    %782 = memref.load %arg4[%c0_360, %c18] : memref<8x36xf32, #tpu.memory_space<smem>>
    %783 = vector.broadcast %782 : f32 to vector<14x14xf32>
    %784 = arith.mulf %783, %781 : vector<14x14xf32>
    %785 = arith.addf %752, %784 : vector<14x14xf32>
    %c1_361 = arith.constant 1 : index
    %c18_362 = arith.constant 18 : index
    %786 = memref.load %arg4[%c1_361, %c18_362] : memref<8x36xf32, #tpu.memory_space<smem>>
    %787 = vector.broadcast %786 : f32 to vector<14x14xf32>
    %788 = arith.mulf %787, %781 : vector<14x14xf32>
    %789 = arith.addf %756, %788 : vector<14x14xf32>
    %c2_363 = arith.constant 2 : index
    %c18_364 = arith.constant 18 : index
    %790 = memref.load %arg4[%c2_363, %c18_364] : memref<8x36xf32, #tpu.memory_space<smem>>
    %791 = vector.broadcast %790 : f32 to vector<14x14xf32>
    %792 = arith.mulf %791, %781 : vector<14x14xf32>
    %793 = arith.addf %760, %792 : vector<14x14xf32>
    %c3_365 = arith.constant 3 : index
    %c18_366 = arith.constant 18 : index
    %794 = memref.load %arg4[%c3_365, %c18_366] : memref<8x36xf32, #tpu.memory_space<smem>>
    %795 = vector.broadcast %794 : f32 to vector<14x14xf32>
    %796 = arith.mulf %795, %781 : vector<14x14xf32>
    %797 = arith.addf %764, %796 : vector<14x14xf32>
    %c4_367 = arith.constant 4 : index
    %c18_368 = arith.constant 18 : index
    %798 = memref.load %arg4[%c4_367, %c18_368] : memref<8x36xf32, #tpu.memory_space<smem>>
    %799 = vector.broadcast %798 : f32 to vector<14x14xf32>
    %800 = arith.mulf %799, %781 : vector<14x14xf32>
    %801 = arith.addf %768, %800 : vector<14x14xf32>
    %c5_369 = arith.constant 5 : index
    %c18_370 = arith.constant 18 : index
    %802 = memref.load %arg4[%c5_369, %c18_370] : memref<8x36xf32, #tpu.memory_space<smem>>
    %803 = vector.broadcast %802 : f32 to vector<14x14xf32>
    %804 = arith.mulf %803, %781 : vector<14x14xf32>
    %805 = arith.addf %772, %804 : vector<14x14xf32>
    %c6_371 = arith.constant 6 : index
    %c18_372 = arith.constant 18 : index
    %806 = memref.load %arg4[%c6_371, %c18_372] : memref<8x36xf32, #tpu.memory_space<smem>>
    %807 = vector.broadcast %806 : f32 to vector<14x14xf32>
    %808 = arith.mulf %807, %781 : vector<14x14xf32>
    %809 = arith.addf %776, %808 : vector<14x14xf32>
    %c7_373 = arith.constant 7 : index
    %c18_374 = arith.constant 18 : index
    %810 = memref.load %arg4[%c7_373, %c18_374] : memref<8x36xf32, #tpu.memory_space<smem>>
    %811 = vector.broadcast %810 : f32 to vector<14x14xf32>
    %812 = arith.mulf %811, %781 : vector<14x14xf32>
    %813 = arith.addf %780, %812 : vector<14x14xf32>
    %814 = vector.extract_strided_slice %130 {offsets = [0, 1], sizes = [14, 14], strides = [1, 1]} : vector<16x16xf32> to vector<14x14xf32>
    %c0_375 = arith.constant 0 : index
    %c19 = arith.constant 19 : index
    %815 = memref.load %arg4[%c0_375, %c19] : memref<8x36xf32, #tpu.memory_space<smem>>
    %816 = vector.broadcast %815 : f32 to vector<14x14xf32>
    %817 = arith.mulf %816, %814 : vector<14x14xf32>
    %818 = arith.addf %785, %817 : vector<14x14xf32>
    %c1_376 = arith.constant 1 : index
    %c19_377 = arith.constant 19 : index
    %819 = memref.load %arg4[%c1_376, %c19_377] : memref<8x36xf32, #tpu.memory_space<smem>>
    %820 = vector.broadcast %819 : f32 to vector<14x14xf32>
    %821 = arith.mulf %820, %814 : vector<14x14xf32>
    %822 = arith.addf %789, %821 : vector<14x14xf32>
    %c2_378 = arith.constant 2 : index
    %c19_379 = arith.constant 19 : index
    %823 = memref.load %arg4[%c2_378, %c19_379] : memref<8x36xf32, #tpu.memory_space<smem>>
    %824 = vector.broadcast %823 : f32 to vector<14x14xf32>
    %825 = arith.mulf %824, %814 : vector<14x14xf32>
    %826 = arith.addf %793, %825 : vector<14x14xf32>
    %c3_380 = arith.constant 3 : index
    %c19_381 = arith.constant 19 : index
    %827 = memref.load %arg4[%c3_380, %c19_381] : memref<8x36xf32, #tpu.memory_space<smem>>
    %828 = vector.broadcast %827 : f32 to vector<14x14xf32>
    %829 = arith.mulf %828, %814 : vector<14x14xf32>
    %830 = arith.addf %797, %829 : vector<14x14xf32>
    %c4_382 = arith.constant 4 : index
    %c19_383 = arith.constant 19 : index
    %831 = memref.load %arg4[%c4_382, %c19_383] : memref<8x36xf32, #tpu.memory_space<smem>>
    %832 = vector.broadcast %831 : f32 to vector<14x14xf32>
    %833 = arith.mulf %832, %814 : vector<14x14xf32>
    %834 = arith.addf %801, %833 : vector<14x14xf32>
    %c5_384 = arith.constant 5 : index
    %c19_385 = arith.constant 19 : index
    %835 = memref.load %arg4[%c5_384, %c19_385] : memref<8x36xf32, #tpu.memory_space<smem>>
    %836 = vector.broadcast %835 : f32 to vector<14x14xf32>
    %837 = arith.mulf %836, %814 : vector<14x14xf32>
    %838 = arith.addf %805, %837 : vector<14x14xf32>
    %c6_386 = arith.constant 6 : index
    %c19_387 = arith.constant 19 : index
    %839 = memref.load %arg4[%c6_386, %c19_387] : memref<8x36xf32, #tpu.memory_space<smem>>
    %840 = vector.broadcast %839 : f32 to vector<14x14xf32>
    %841 = arith.mulf %840, %814 : vector<14x14xf32>
    %842 = arith.addf %809, %841 : vector<14x14xf32>
    %c7_388 = arith.constant 7 : index
    %c19_389 = arith.constant 19 : index
    %843 = memref.load %arg4[%c7_388, %c19_389] : memref<8x36xf32, #tpu.memory_space<smem>>
    %844 = vector.broadcast %843 : f32 to vector<14x14xf32>
    %845 = arith.mulf %844, %814 : vector<14x14xf32>
    %846 = arith.addf %813, %845 : vector<14x14xf32>
    %847 = vector.extract_strided_slice %130 {offsets = [0, 2], sizes = [14, 14], strides = [1, 1]} : vector<16x16xf32> to vector<14x14xf32>
    %c0_390 = arith.constant 0 : index
    %c20 = arith.constant 20 : index
    %848 = memref.load %arg4[%c0_390, %c20] : memref<8x36xf32, #tpu.memory_space<smem>>
    %849 = vector.broadcast %848 : f32 to vector<14x14xf32>
    %850 = arith.mulf %849, %847 : vector<14x14xf32>
    %851 = arith.addf %818, %850 : vector<14x14xf32>
    %c1_391 = arith.constant 1 : index
    %c20_392 = arith.constant 20 : index
    %852 = memref.load %arg4[%c1_391, %c20_392] : memref<8x36xf32, #tpu.memory_space<smem>>
    %853 = vector.broadcast %852 : f32 to vector<14x14xf32>
    %854 = arith.mulf %853, %847 : vector<14x14xf32>
    %855 = arith.addf %822, %854 : vector<14x14xf32>
    %c2_393 = arith.constant 2 : index
    %c20_394 = arith.constant 20 : index
    %856 = memref.load %arg4[%c2_393, %c20_394] : memref<8x36xf32, #tpu.memory_space<smem>>
    %857 = vector.broadcast %856 : f32 to vector<14x14xf32>
    %858 = arith.mulf %857, %847 : vector<14x14xf32>
    %859 = arith.addf %826, %858 : vector<14x14xf32>
    %c3_395 = arith.constant 3 : index
    %c20_396 = arith.constant 20 : index
    %860 = memref.load %arg4[%c3_395, %c20_396] : memref<8x36xf32, #tpu.memory_space<smem>>
    %861 = vector.broadcast %860 : f32 to vector<14x14xf32>
    %862 = arith.mulf %861, %847 : vector<14x14xf32>
    %863 = arith.addf %830, %862 : vector<14x14xf32>
    %c4_397 = arith.constant 4 : index
    %c20_398 = arith.constant 20 : index
    %864 = memref.load %arg4[%c4_397, %c20_398] : memref<8x36xf32, #tpu.memory_space<smem>>
    %865 = vector.broadcast %864 : f32 to vector<14x14xf32>
    %866 = arith.mulf %865, %847 : vector<14x14xf32>
    %867 = arith.addf %834, %866 : vector<14x14xf32>
    %c5_399 = arith.constant 5 : index
    %c20_400 = arith.constant 20 : index
    %868 = memref.load %arg4[%c5_399, %c20_400] : memref<8x36xf32, #tpu.memory_space<smem>>
    %869 = vector.broadcast %868 : f32 to vector<14x14xf32>
    %870 = arith.mulf %869, %847 : vector<14x14xf32>
    %871 = arith.addf %838, %870 : vector<14x14xf32>
    %c6_401 = arith.constant 6 : index
    %c20_402 = arith.constant 20 : index
    %872 = memref.load %arg4[%c6_401, %c20_402] : memref<8x36xf32, #tpu.memory_space<smem>>
    %873 = vector.broadcast %872 : f32 to vector<14x14xf32>
    %874 = arith.mulf %873, %847 : vector<14x14xf32>
    %875 = arith.addf %842, %874 : vector<14x14xf32>
    %c7_403 = arith.constant 7 : index
    %c20_404 = arith.constant 20 : index
    %876 = memref.load %arg4[%c7_403, %c20_404] : memref<8x36xf32, #tpu.memory_space<smem>>
    %877 = vector.broadcast %876 : f32 to vector<14x14xf32>
    %878 = arith.mulf %877, %847 : vector<14x14xf32>
    %879 = arith.addf %846, %878 : vector<14x14xf32>
    %880 = vector.extract_strided_slice %130 {offsets = [1, 0], sizes = [14, 14], strides = [1, 1]} : vector<16x16xf32> to vector<14x14xf32>
    %c0_405 = arith.constant 0 : index
    %c21 = arith.constant 21 : index
    %881 = memref.load %arg4[%c0_405, %c21] : memref<8x36xf32, #tpu.memory_space<smem>>
    %882 = vector.broadcast %881 : f32 to vector<14x14xf32>
    %883 = arith.mulf %882, %880 : vector<14x14xf32>
    %884 = arith.addf %851, %883 : vector<14x14xf32>
    %c1_406 = arith.constant 1 : index
    %c21_407 = arith.constant 21 : index
    %885 = memref.load %arg4[%c1_406, %c21_407] : memref<8x36xf32, #tpu.memory_space<smem>>
    %886 = vector.broadcast %885 : f32 to vector<14x14xf32>
    %887 = arith.mulf %886, %880 : vector<14x14xf32>
    %888 = arith.addf %855, %887 : vector<14x14xf32>
    %c2_408 = arith.constant 2 : index
    %c21_409 = arith.constant 21 : index
    %889 = memref.load %arg4[%c2_408, %c21_409] : memref<8x36xf32, #tpu.memory_space<smem>>
    %890 = vector.broadcast %889 : f32 to vector<14x14xf32>
    %891 = arith.mulf %890, %880 : vector<14x14xf32>
    %892 = arith.addf %859, %891 : vector<14x14xf32>
    %c3_410 = arith.constant 3 : index
    %c21_411 = arith.constant 21 : index
    %893 = memref.load %arg4[%c3_410, %c21_411] : memref<8x36xf32, #tpu.memory_space<smem>>
    %894 = vector.broadcast %893 : f32 to vector<14x14xf32>
    %895 = arith.mulf %894, %880 : vector<14x14xf32>
    %896 = arith.addf %863, %895 : vector<14x14xf32>
    %c4_412 = arith.constant 4 : index
    %c21_413 = arith.constant 21 : index
    %897 = memref.load %arg4[%c4_412, %c21_413] : memref<8x36xf32, #tpu.memory_space<smem>>
    %898 = vector.broadcast %897 : f32 to vector<14x14xf32>
    %899 = arith.mulf %898, %880 : vector<14x14xf32>
    %900 = arith.addf %867, %899 : vector<14x14xf32>
    %c5_414 = arith.constant 5 : index
    %c21_415 = arith.constant 21 : index
    %901 = memref.load %arg4[%c5_414, %c21_415] : memref<8x36xf32, #tpu.memory_space<smem>>
    %902 = vector.broadcast %901 : f32 to vector<14x14xf32>
    %903 = arith.mulf %902, %880 : vector<14x14xf32>
    %904 = arith.addf %871, %903 : vector<14x14xf32>
    %c6_416 = arith.constant 6 : index
    %c21_417 = arith.constant 21 : index
    %905 = memref.load %arg4[%c6_416, %c21_417] : memref<8x36xf32, #tpu.memory_space<smem>>
    %906 = vector.broadcast %905 : f32 to vector<14x14xf32>
    %907 = arith.mulf %906, %880 : vector<14x14xf32>
    %908 = arith.addf %875, %907 : vector<14x14xf32>
    %c7_418 = arith.constant 7 : index
    %c21_419 = arith.constant 21 : index
    %909 = memref.load %arg4[%c7_418, %c21_419] : memref<8x36xf32, #tpu.memory_space<smem>>
    %910 = vector.broadcast %909 : f32 to vector<14x14xf32>
    %911 = arith.mulf %910, %880 : vector<14x14xf32>
    %912 = arith.addf %879, %911 : vector<14x14xf32>
    %913 = vector.extract_strided_slice %130 {offsets = [1, 1], sizes = [14, 14], strides = [1, 1]} : vector<16x16xf32> to vector<14x14xf32>
    %c0_420 = arith.constant 0 : index
    %c22 = arith.constant 22 : index
    %914 = memref.load %arg4[%c0_420, %c22] : memref<8x36xf32, #tpu.memory_space<smem>>
    %915 = vector.broadcast %914 : f32 to vector<14x14xf32>
    %916 = arith.mulf %915, %913 : vector<14x14xf32>
    %917 = arith.addf %884, %916 : vector<14x14xf32>
    %c1_421 = arith.constant 1 : index
    %c22_422 = arith.constant 22 : index
    %918 = memref.load %arg4[%c1_421, %c22_422] : memref<8x36xf32, #tpu.memory_space<smem>>
    %919 = vector.broadcast %918 : f32 to vector<14x14xf32>
    %920 = arith.mulf %919, %913 : vector<14x14xf32>
    %921 = arith.addf %888, %920 : vector<14x14xf32>
    %c2_423 = arith.constant 2 : index
    %c22_424 = arith.constant 22 : index
    %922 = memref.load %arg4[%c2_423, %c22_424] : memref<8x36xf32, #tpu.memory_space<smem>>
    %923 = vector.broadcast %922 : f32 to vector<14x14xf32>
    %924 = arith.mulf %923, %913 : vector<14x14xf32>
    %925 = arith.addf %892, %924 : vector<14x14xf32>
    %c3_425 = arith.constant 3 : index
    %c22_426 = arith.constant 22 : index
    %926 = memref.load %arg4[%c3_425, %c22_426] : memref<8x36xf32, #tpu.memory_space<smem>>
    %927 = vector.broadcast %926 : f32 to vector<14x14xf32>
    %928 = arith.mulf %927, %913 : vector<14x14xf32>
    %929 = arith.addf %896, %928 : vector<14x14xf32>
    %c4_427 = arith.constant 4 : index
    %c22_428 = arith.constant 22 : index
    %930 = memref.load %arg4[%c4_427, %c22_428] : memref<8x36xf32, #tpu.memory_space<smem>>
    %931 = vector.broadcast %930 : f32 to vector<14x14xf32>
    %932 = arith.mulf %931, %913 : vector<14x14xf32>
    %933 = arith.addf %900, %932 : vector<14x14xf32>
    %c5_429 = arith.constant 5 : index
    %c22_430 = arith.constant 22 : index
    %934 = memref.load %arg4[%c5_429, %c22_430] : memref<8x36xf32, #tpu.memory_space<smem>>
    %935 = vector.broadcast %934 : f32 to vector<14x14xf32>
    %936 = arith.mulf %935, %913 : vector<14x14xf32>
    %937 = arith.addf %904, %936 : vector<14x14xf32>
    %c6_431 = arith.constant 6 : index
    %c22_432 = arith.constant 22 : index
    %938 = memref.load %arg4[%c6_431, %c22_432] : memref<8x36xf32, #tpu.memory_space<smem>>
    %939 = vector.broadcast %938 : f32 to vector<14x14xf32>
    %940 = arith.mulf %939, %913 : vector<14x14xf32>
    %941 = arith.addf %908, %940 : vector<14x14xf32>
    %c7_433 = arith.constant 7 : index
    %c22_434 = arith.constant 22 : index
    %942 = memref.load %arg4[%c7_433, %c22_434] : memref<8x36xf32, #tpu.memory_space<smem>>
    %943 = vector.broadcast %942 : f32 to vector<14x14xf32>
    %944 = arith.mulf %943, %913 : vector<14x14xf32>
    %945 = arith.addf %912, %944 : vector<14x14xf32>
    %946 = vector.extract_strided_slice %130 {offsets = [1, 2], sizes = [14, 14], strides = [1, 1]} : vector<16x16xf32> to vector<14x14xf32>
    %c0_435 = arith.constant 0 : index
    %c23 = arith.constant 23 : index
    %947 = memref.load %arg4[%c0_435, %c23] : memref<8x36xf32, #tpu.memory_space<smem>>
    %948 = vector.broadcast %947 : f32 to vector<14x14xf32>
    %949 = arith.mulf %948, %946 : vector<14x14xf32>
    %950 = arith.addf %917, %949 : vector<14x14xf32>
    %c1_436 = arith.constant 1 : index
    %c23_437 = arith.constant 23 : index
    %951 = memref.load %arg4[%c1_436, %c23_437] : memref<8x36xf32, #tpu.memory_space<smem>>
    %952 = vector.broadcast %951 : f32 to vector<14x14xf32>
    %953 = arith.mulf %952, %946 : vector<14x14xf32>
    %954 = arith.addf %921, %953 : vector<14x14xf32>
    %c2_438 = arith.constant 2 : index
    %c23_439 = arith.constant 23 : index
    %955 = memref.load %arg4[%c2_438, %c23_439] : memref<8x36xf32, #tpu.memory_space<smem>>
    %956 = vector.broadcast %955 : f32 to vector<14x14xf32>
    %957 = arith.mulf %956, %946 : vector<14x14xf32>
    %958 = arith.addf %925, %957 : vector<14x14xf32>
    %c3_440 = arith.constant 3 : index
    %c23_441 = arith.constant 23 : index
    %959 = memref.load %arg4[%c3_440, %c23_441] : memref<8x36xf32, #tpu.memory_space<smem>>
    %960 = vector.broadcast %959 : f32 to vector<14x14xf32>
    %961 = arith.mulf %960, %946 : vector<14x14xf32>
    %962 = arith.addf %929, %961 : vector<14x14xf32>
    %c4_442 = arith.constant 4 : index
    %c23_443 = arith.constant 23 : index
    %963 = memref.load %arg4[%c4_442, %c23_443] : memref<8x36xf32, #tpu.memory_space<smem>>
    %964 = vector.broadcast %963 : f32 to vector<14x14xf32>
    %965 = arith.mulf %964, %946 : vector<14x14xf32>
    %966 = arith.addf %933, %965 : vector<14x14xf32>
    %c5_444 = arith.constant 5 : index
    %c23_445 = arith.constant 23 : index
    %967 = memref.load %arg4[%c5_444, %c23_445] : memref<8x36xf32, #tpu.memory_space<smem>>
    %968 = vector.broadcast %967 : f32 to vector<14x14xf32>
    %969 = arith.mulf %968, %946 : vector<14x14xf32>
    %970 = arith.addf %937, %969 : vector<14x14xf32>
    %c6_446 = arith.constant 6 : index
    %c23_447 = arith.constant 23 : index
    %971 = memref.load %arg4[%c6_446, %c23_447] : memref<8x36xf32, #tpu.memory_space<smem>>
    %972 = vector.broadcast %971 : f32 to vector<14x14xf32>
    %973 = arith.mulf %972, %946 : vector<14x14xf32>
    %974 = arith.addf %941, %973 : vector<14x14xf32>
    %c7_448 = arith.constant 7 : index
    %c23_449 = arith.constant 23 : index
    %975 = memref.load %arg4[%c7_448, %c23_449] : memref<8x36xf32, #tpu.memory_space<smem>>
    %976 = vector.broadcast %975 : f32 to vector<14x14xf32>
    %977 = arith.mulf %976, %946 : vector<14x14xf32>
    %978 = arith.addf %945, %977 : vector<14x14xf32>
    %979 = vector.extract_strided_slice %130 {offsets = [2, 0], sizes = [14, 14], strides = [1, 1]} : vector<16x16xf32> to vector<14x14xf32>
    %c0_450 = arith.constant 0 : index
    %c24 = arith.constant 24 : index
    %980 = memref.load %arg4[%c0_450, %c24] : memref<8x36xf32, #tpu.memory_space<smem>>
    %981 = vector.broadcast %980 : f32 to vector<14x14xf32>
    %982 = arith.mulf %981, %979 : vector<14x14xf32>
    %983 = arith.addf %950, %982 : vector<14x14xf32>
    %c1_451 = arith.constant 1 : index
    %c24_452 = arith.constant 24 : index
    %984 = memref.load %arg4[%c1_451, %c24_452] : memref<8x36xf32, #tpu.memory_space<smem>>
    %985 = vector.broadcast %984 : f32 to vector<14x14xf32>
    %986 = arith.mulf %985, %979 : vector<14x14xf32>
    %987 = arith.addf %954, %986 : vector<14x14xf32>
    %c2_453 = arith.constant 2 : index
    %c24_454 = arith.constant 24 : index
    %988 = memref.load %arg4[%c2_453, %c24_454] : memref<8x36xf32, #tpu.memory_space<smem>>
    %989 = vector.broadcast %988 : f32 to vector<14x14xf32>
    %990 = arith.mulf %989, %979 : vector<14x14xf32>
    %991 = arith.addf %958, %990 : vector<14x14xf32>
    %c3_455 = arith.constant 3 : index
    %c24_456 = arith.constant 24 : index
    %992 = memref.load %arg4[%c3_455, %c24_456] : memref<8x36xf32, #tpu.memory_space<smem>>
    %993 = vector.broadcast %992 : f32 to vector<14x14xf32>
    %994 = arith.mulf %993, %979 : vector<14x14xf32>
    %995 = arith.addf %962, %994 : vector<14x14xf32>
    %c4_457 = arith.constant 4 : index
    %c24_458 = arith.constant 24 : index
    %996 = memref.load %arg4[%c4_457, %c24_458] : memref<8x36xf32, #tpu.memory_space<smem>>
    %997 = vector.broadcast %996 : f32 to vector<14x14xf32>
    %998 = arith.mulf %997, %979 : vector<14x14xf32>
    %999 = arith.addf %966, %998 : vector<14x14xf32>
    %c5_459 = arith.constant 5 : index
    %c24_460 = arith.constant 24 : index
    %1000 = memref.load %arg4[%c5_459, %c24_460] : memref<8x36xf32, #tpu.memory_space<smem>>
    %1001 = vector.broadcast %1000 : f32 to vector<14x14xf32>
    %1002 = arith.mulf %1001, %979 : vector<14x14xf32>
    %1003 = arith.addf %970, %1002 : vector<14x14xf32>
    %c6_461 = arith.constant 6 : index
    %c24_462 = arith.constant 24 : index
    %1004 = memref.load %arg4[%c6_461, %c24_462] : memref<8x36xf32, #tpu.memory_space<smem>>
    %1005 = vector.broadcast %1004 : f32 to vector<14x14xf32>
    %1006 = arith.mulf %1005, %979 : vector<14x14xf32>
    %1007 = arith.addf %974, %1006 : vector<14x14xf32>
    %c7_463 = arith.constant 7 : index
    %c24_464 = arith.constant 24 : index
    %1008 = memref.load %arg4[%c7_463, %c24_464] : memref<8x36xf32, #tpu.memory_space<smem>>
    %1009 = vector.broadcast %1008 : f32 to vector<14x14xf32>
    %1010 = arith.mulf %1009, %979 : vector<14x14xf32>
    %1011 = arith.addf %978, %1010 : vector<14x14xf32>
    %1012 = vector.extract_strided_slice %130 {offsets = [2, 1], sizes = [14, 14], strides = [1, 1]} : vector<16x16xf32> to vector<14x14xf32>
    %c0_465 = arith.constant 0 : index
    %c25 = arith.constant 25 : index
    %1013 = memref.load %arg4[%c0_465, %c25] : memref<8x36xf32, #tpu.memory_space<smem>>
    %1014 = vector.broadcast %1013 : f32 to vector<14x14xf32>
    %1015 = arith.mulf %1014, %1012 : vector<14x14xf32>
    %1016 = arith.addf %983, %1015 : vector<14x14xf32>
    %c1_466 = arith.constant 1 : index
    %c25_467 = arith.constant 25 : index
    %1017 = memref.load %arg4[%c1_466, %c25_467] : memref<8x36xf32, #tpu.memory_space<smem>>
    %1018 = vector.broadcast %1017 : f32 to vector<14x14xf32>
    %1019 = arith.mulf %1018, %1012 : vector<14x14xf32>
    %1020 = arith.addf %987, %1019 : vector<14x14xf32>
    %c2_468 = arith.constant 2 : index
    %c25_469 = arith.constant 25 : index
    %1021 = memref.load %arg4[%c2_468, %c25_469] : memref<8x36xf32, #tpu.memory_space<smem>>
    %1022 = vector.broadcast %1021 : f32 to vector<14x14xf32>
    %1023 = arith.mulf %1022, %1012 : vector<14x14xf32>
    %1024 = arith.addf %991, %1023 : vector<14x14xf32>
    %c3_470 = arith.constant 3 : index
    %c25_471 = arith.constant 25 : index
    %1025 = memref.load %arg4[%c3_470, %c25_471] : memref<8x36xf32, #tpu.memory_space<smem>>
    %1026 = vector.broadcast %1025 : f32 to vector<14x14xf32>
    %1027 = arith.mulf %1026, %1012 : vector<14x14xf32>
    %1028 = arith.addf %995, %1027 : vector<14x14xf32>
    %c4_472 = arith.constant 4 : index
    %c25_473 = arith.constant 25 : index
    %1029 = memref.load %arg4[%c4_472, %c25_473] : memref<8x36xf32, #tpu.memory_space<smem>>
    %1030 = vector.broadcast %1029 : f32 to vector<14x14xf32>
    %1031 = arith.mulf %1030, %1012 : vector<14x14xf32>
    %1032 = arith.addf %999, %1031 : vector<14x14xf32>
    %c5_474 = arith.constant 5 : index
    %c25_475 = arith.constant 25 : index
    %1033 = memref.load %arg4[%c5_474, %c25_475] : memref<8x36xf32, #tpu.memory_space<smem>>
    %1034 = vector.broadcast %1033 : f32 to vector<14x14xf32>
    %1035 = arith.mulf %1034, %1012 : vector<14x14xf32>
    %1036 = arith.addf %1003, %1035 : vector<14x14xf32>
    %c6_476 = arith.constant 6 : index
    %c25_477 = arith.constant 25 : index
    %1037 = memref.load %arg4[%c6_476, %c25_477] : memref<8x36xf32, #tpu.memory_space<smem>>
    %1038 = vector.broadcast %1037 : f32 to vector<14x14xf32>
    %1039 = arith.mulf %1038, %1012 : vector<14x14xf32>
    %1040 = arith.addf %1007, %1039 : vector<14x14xf32>
    %c7_478 = arith.constant 7 : index
    %c25_479 = arith.constant 25 : index
    %1041 = memref.load %arg4[%c7_478, %c25_479] : memref<8x36xf32, #tpu.memory_space<smem>>
    %1042 = vector.broadcast %1041 : f32 to vector<14x14xf32>
    %1043 = arith.mulf %1042, %1012 : vector<14x14xf32>
    %1044 = arith.addf %1011, %1043 : vector<14x14xf32>
    %1045 = vector.extract_strided_slice %130 {offsets = [2, 2], sizes = [14, 14], strides = [1, 1]} : vector<16x16xf32> to vector<14x14xf32>
    %c0_480 = arith.constant 0 : index
    %c26 = arith.constant 26 : index
    %1046 = memref.load %arg4[%c0_480, %c26] : memref<8x36xf32, #tpu.memory_space<smem>>
    %1047 = vector.broadcast %1046 : f32 to vector<14x14xf32>
    %1048 = arith.mulf %1047, %1045 : vector<14x14xf32>
    %1049 = arith.addf %1016, %1048 : vector<14x14xf32>
    %c1_481 = arith.constant 1 : index
    %c26_482 = arith.constant 26 : index
    %1050 = memref.load %arg4[%c1_481, %c26_482] : memref<8x36xf32, #tpu.memory_space<smem>>
    %1051 = vector.broadcast %1050 : f32 to vector<14x14xf32>
    %1052 = arith.mulf %1051, %1045 : vector<14x14xf32>
    %1053 = arith.addf %1020, %1052 : vector<14x14xf32>
    %c2_483 = arith.constant 2 : index
    %c26_484 = arith.constant 26 : index
    %1054 = memref.load %arg4[%c2_483, %c26_484] : memref<8x36xf32, #tpu.memory_space<smem>>
    %1055 = vector.broadcast %1054 : f32 to vector<14x14xf32>
    %1056 = arith.mulf %1055, %1045 : vector<14x14xf32>
    %1057 = arith.addf %1024, %1056 : vector<14x14xf32>
    %c3_485 = arith.constant 3 : index
    %c26_486 = arith.constant 26 : index
    %1058 = memref.load %arg4[%c3_485, %c26_486] : memref<8x36xf32, #tpu.memory_space<smem>>
    %1059 = vector.broadcast %1058 : f32 to vector<14x14xf32>
    %1060 = arith.mulf %1059, %1045 : vector<14x14xf32>
    %1061 = arith.addf %1028, %1060 : vector<14x14xf32>
    %c4_487 = arith.constant 4 : index
    %c26_488 = arith.constant 26 : index
    %1062 = memref.load %arg4[%c4_487, %c26_488] : memref<8x36xf32, #tpu.memory_space<smem>>
    %1063 = vector.broadcast %1062 : f32 to vector<14x14xf32>
    %1064 = arith.mulf %1063, %1045 : vector<14x14xf32>
    %1065 = arith.addf %1032, %1064 : vector<14x14xf32>
    %c5_489 = arith.constant 5 : index
    %c26_490 = arith.constant 26 : index
    %1066 = memref.load %arg4[%c5_489, %c26_490] : memref<8x36xf32, #tpu.memory_space<smem>>
    %1067 = vector.broadcast %1066 : f32 to vector<14x14xf32>
    %1068 = arith.mulf %1067, %1045 : vector<14x14xf32>
    %1069 = arith.addf %1036, %1068 : vector<14x14xf32>
    %c6_491 = arith.constant 6 : index
    %c26_492 = arith.constant 26 : index
    %1070 = memref.load %arg4[%c6_491, %c26_492] : memref<8x36xf32, #tpu.memory_space<smem>>
    %1071 = vector.broadcast %1070 : f32 to vector<14x14xf32>
    %1072 = arith.mulf %1071, %1045 : vector<14x14xf32>
    %1073 = arith.addf %1040, %1072 : vector<14x14xf32>
    %c7_493 = arith.constant 7 : index
    %c26_494 = arith.constant 26 : index
    %1074 = memref.load %arg4[%c7_493, %c26_494] : memref<8x36xf32, #tpu.memory_space<smem>>
    %1075 = vector.broadcast %1074 : f32 to vector<14x14xf32>
    %1076 = arith.mulf %1075, %1045 : vector<14x14xf32>
    %1077 = arith.addf %1044, %1076 : vector<14x14xf32>
    %1078 = vector.extract_strided_slice %170 {offsets = [0, 0], sizes = [14, 14], strides = [1, 1]} : vector<16x16xf32> to vector<14x14xf32>
    %c0_495 = arith.constant 0 : index
    %c27 = arith.constant 27 : index
    %1079 = memref.load %arg4[%c0_495, %c27] : memref<8x36xf32, #tpu.memory_space<smem>>
    %1080 = vector.broadcast %1079 : f32 to vector<14x14xf32>
    %1081 = arith.mulf %1080, %1078 : vector<14x14xf32>
    %1082 = arith.addf %1049, %1081 : vector<14x14xf32>
    %c1_496 = arith.constant 1 : index
    %c27_497 = arith.constant 27 : index
    %1083 = memref.load %arg4[%c1_496, %c27_497] : memref<8x36xf32, #tpu.memory_space<smem>>
    %1084 = vector.broadcast %1083 : f32 to vector<14x14xf32>
    %1085 = arith.mulf %1084, %1078 : vector<14x14xf32>
    %1086 = arith.addf %1053, %1085 : vector<14x14xf32>
    %c2_498 = arith.constant 2 : index
    %c27_499 = arith.constant 27 : index
    %1087 = memref.load %arg4[%c2_498, %c27_499] : memref<8x36xf32, #tpu.memory_space<smem>>
    %1088 = vector.broadcast %1087 : f32 to vector<14x14xf32>
    %1089 = arith.mulf %1088, %1078 : vector<14x14xf32>
    %1090 = arith.addf %1057, %1089 : vector<14x14xf32>
    %c3_500 = arith.constant 3 : index
    %c27_501 = arith.constant 27 : index
    %1091 = memref.load %arg4[%c3_500, %c27_501] : memref<8x36xf32, #tpu.memory_space<smem>>
    %1092 = vector.broadcast %1091 : f32 to vector<14x14xf32>
    %1093 = arith.mulf %1092, %1078 : vector<14x14xf32>
    %1094 = arith.addf %1061, %1093 : vector<14x14xf32>
    %c4_502 = arith.constant 4 : index
    %c27_503 = arith.constant 27 : index
    %1095 = memref.load %arg4[%c4_502, %c27_503] : memref<8x36xf32, #tpu.memory_space<smem>>
    %1096 = vector.broadcast %1095 : f32 to vector<14x14xf32>
    %1097 = arith.mulf %1096, %1078 : vector<14x14xf32>
    %1098 = arith.addf %1065, %1097 : vector<14x14xf32>
    %c5_504 = arith.constant 5 : index
    %c27_505 = arith.constant 27 : index
    %1099 = memref.load %arg4[%c5_504, %c27_505] : memref<8x36xf32, #tpu.memory_space<smem>>
    %1100 = vector.broadcast %1099 : f32 to vector<14x14xf32>
    %1101 = arith.mulf %1100, %1078 : vector<14x14xf32>
    %1102 = arith.addf %1069, %1101 : vector<14x14xf32>
    %c6_506 = arith.constant 6 : index
    %c27_507 = arith.constant 27 : index
    %1103 = memref.load %arg4[%c6_506, %c27_507] : memref<8x36xf32, #tpu.memory_space<smem>>
    %1104 = vector.broadcast %1103 : f32 to vector<14x14xf32>
    %1105 = arith.mulf %1104, %1078 : vector<14x14xf32>
    %1106 = arith.addf %1073, %1105 : vector<14x14xf32>
    %c7_508 = arith.constant 7 : index
    %c27_509 = arith.constant 27 : index
    %1107 = memref.load %arg4[%c7_508, %c27_509] : memref<8x36xf32, #tpu.memory_space<smem>>
    %1108 = vector.broadcast %1107 : f32 to vector<14x14xf32>
    %1109 = arith.mulf %1108, %1078 : vector<14x14xf32>
    %1110 = arith.addf %1077, %1109 : vector<14x14xf32>
    %1111 = vector.extract_strided_slice %170 {offsets = [0, 1], sizes = [14, 14], strides = [1, 1]} : vector<16x16xf32> to vector<14x14xf32>
    %c0_510 = arith.constant 0 : index
    %c28 = arith.constant 28 : index
    %1112 = memref.load %arg4[%c0_510, %c28] : memref<8x36xf32, #tpu.memory_space<smem>>
    %1113 = vector.broadcast %1112 : f32 to vector<14x14xf32>
    %1114 = arith.mulf %1113, %1111 : vector<14x14xf32>
    %1115 = arith.addf %1082, %1114 : vector<14x14xf32>
    %c1_511 = arith.constant 1 : index
    %c28_512 = arith.constant 28 : index
    %1116 = memref.load %arg4[%c1_511, %c28_512] : memref<8x36xf32, #tpu.memory_space<smem>>
    %1117 = vector.broadcast %1116 : f32 to vector<14x14xf32>
    %1118 = arith.mulf %1117, %1111 : vector<14x14xf32>
    %1119 = arith.addf %1086, %1118 : vector<14x14xf32>
    %c2_513 = arith.constant 2 : index
    %c28_514 = arith.constant 28 : index
    %1120 = memref.load %arg4[%c2_513, %c28_514] : memref<8x36xf32, #tpu.memory_space<smem>>
    %1121 = vector.broadcast %1120 : f32 to vector<14x14xf32>
    %1122 = arith.mulf %1121, %1111 : vector<14x14xf32>
    %1123 = arith.addf %1090, %1122 : vector<14x14xf32>
    %c3_515 = arith.constant 3 : index
    %c28_516 = arith.constant 28 : index
    %1124 = memref.load %arg4[%c3_515, %c28_516] : memref<8x36xf32, #tpu.memory_space<smem>>
    %1125 = vector.broadcast %1124 : f32 to vector<14x14xf32>
    %1126 = arith.mulf %1125, %1111 : vector<14x14xf32>
    %1127 = arith.addf %1094, %1126 : vector<14x14xf32>
    %c4_517 = arith.constant 4 : index
    %c28_518 = arith.constant 28 : index
    %1128 = memref.load %arg4[%c4_517, %c28_518] : memref<8x36xf32, #tpu.memory_space<smem>>
    %1129 = vector.broadcast %1128 : f32 to vector<14x14xf32>
    %1130 = arith.mulf %1129, %1111 : vector<14x14xf32>
    %1131 = arith.addf %1098, %1130 : vector<14x14xf32>
    %c5_519 = arith.constant 5 : index
    %c28_520 = arith.constant 28 : index
    %1132 = memref.load %arg4[%c5_519, %c28_520] : memref<8x36xf32, #tpu.memory_space<smem>>
    %1133 = vector.broadcast %1132 : f32 to vector<14x14xf32>
    %1134 = arith.mulf %1133, %1111 : vector<14x14xf32>
    %1135 = arith.addf %1102, %1134 : vector<14x14xf32>
    %c6_521 = arith.constant 6 : index
    %c28_522 = arith.constant 28 : index
    %1136 = memref.load %arg4[%c6_521, %c28_522] : memref<8x36xf32, #tpu.memory_space<smem>>
    %1137 = vector.broadcast %1136 : f32 to vector<14x14xf32>
    %1138 = arith.mulf %1137, %1111 : vector<14x14xf32>
    %1139 = arith.addf %1106, %1138 : vector<14x14xf32>
    %c7_523 = arith.constant 7 : index
    %c28_524 = arith.constant 28 : index
    %1140 = memref.load %arg4[%c7_523, %c28_524] : memref<8x36xf32, #tpu.memory_space<smem>>
    %1141 = vector.broadcast %1140 : f32 to vector<14x14xf32>
    %1142 = arith.mulf %1141, %1111 : vector<14x14xf32>
    %1143 = arith.addf %1110, %1142 : vector<14x14xf32>
    %1144 = vector.extract_strided_slice %170 {offsets = [0, 2], sizes = [14, 14], strides = [1, 1]} : vector<16x16xf32> to vector<14x14xf32>
    %c0_525 = arith.constant 0 : index
    %c29 = arith.constant 29 : index
    %1145 = memref.load %arg4[%c0_525, %c29] : memref<8x36xf32, #tpu.memory_space<smem>>
    %1146 = vector.broadcast %1145 : f32 to vector<14x14xf32>
    %1147 = arith.mulf %1146, %1144 : vector<14x14xf32>
    %1148 = arith.addf %1115, %1147 : vector<14x14xf32>
    %c1_526 = arith.constant 1 : index
    %c29_527 = arith.constant 29 : index
    %1149 = memref.load %arg4[%c1_526, %c29_527] : memref<8x36xf32, #tpu.memory_space<smem>>
    %1150 = vector.broadcast %1149 : f32 to vector<14x14xf32>
    %1151 = arith.mulf %1150, %1144 : vector<14x14xf32>
    %1152 = arith.addf %1119, %1151 : vector<14x14xf32>
    %c2_528 = arith.constant 2 : index
    %c29_529 = arith.constant 29 : index
    %1153 = memref.load %arg4[%c2_528, %c29_529] : memref<8x36xf32, #tpu.memory_space<smem>>
    %1154 = vector.broadcast %1153 : f32 to vector<14x14xf32>
    %1155 = arith.mulf %1154, %1144 : vector<14x14xf32>
    %1156 = arith.addf %1123, %1155 : vector<14x14xf32>
    %c3_530 = arith.constant 3 : index
    %c29_531 = arith.constant 29 : index
    %1157 = memref.load %arg4[%c3_530, %c29_531] : memref<8x36xf32, #tpu.memory_space<smem>>
    %1158 = vector.broadcast %1157 : f32 to vector<14x14xf32>
    %1159 = arith.mulf %1158, %1144 : vector<14x14xf32>
    %1160 = arith.addf %1127, %1159 : vector<14x14xf32>
    %c4_532 = arith.constant 4 : index
    %c29_533 = arith.constant 29 : index
    %1161 = memref.load %arg4[%c4_532, %c29_533] : memref<8x36xf32, #tpu.memory_space<smem>>
    %1162 = vector.broadcast %1161 : f32 to vector<14x14xf32>
    %1163 = arith.mulf %1162, %1144 : vector<14x14xf32>
    %1164 = arith.addf %1131, %1163 : vector<14x14xf32>
    %c5_534 = arith.constant 5 : index
    %c29_535 = arith.constant 29 : index
    %1165 = memref.load %arg4[%c5_534, %c29_535] : memref<8x36xf32, #tpu.memory_space<smem>>
    %1166 = vector.broadcast %1165 : f32 to vector<14x14xf32>
    %1167 = arith.mulf %1166, %1144 : vector<14x14xf32>
    %1168 = arith.addf %1135, %1167 : vector<14x14xf32>
    %c6_536 = arith.constant 6 : index
    %c29_537 = arith.constant 29 : index
    %1169 = memref.load %arg4[%c6_536, %c29_537] : memref<8x36xf32, #tpu.memory_space<smem>>
    %1170 = vector.broadcast %1169 : f32 to vector<14x14xf32>
    %1171 = arith.mulf %1170, %1144 : vector<14x14xf32>
    %1172 = arith.addf %1139, %1171 : vector<14x14xf32>
    %c7_538 = arith.constant 7 : index
    %c29_539 = arith.constant 29 : index
    %1173 = memref.load %arg4[%c7_538, %c29_539] : memref<8x36xf32, #tpu.memory_space<smem>>
    %1174 = vector.broadcast %1173 : f32 to vector<14x14xf32>
    %1175 = arith.mulf %1174, %1144 : vector<14x14xf32>
    %1176 = arith.addf %1143, %1175 : vector<14x14xf32>
    %1177 = vector.extract_strided_slice %170 {offsets = [1, 0], sizes = [14, 14], strides = [1, 1]} : vector<16x16xf32> to vector<14x14xf32>
    %c0_540 = arith.constant 0 : index
    %c30 = arith.constant 30 : index
    %1178 = memref.load %arg4[%c0_540, %c30] : memref<8x36xf32, #tpu.memory_space<smem>>
    %1179 = vector.broadcast %1178 : f32 to vector<14x14xf32>
    %1180 = arith.mulf %1179, %1177 : vector<14x14xf32>
    %1181 = arith.addf %1148, %1180 : vector<14x14xf32>
    %c1_541 = arith.constant 1 : index
    %c30_542 = arith.constant 30 : index
    %1182 = memref.load %arg4[%c1_541, %c30_542] : memref<8x36xf32, #tpu.memory_space<smem>>
    %1183 = vector.broadcast %1182 : f32 to vector<14x14xf32>
    %1184 = arith.mulf %1183, %1177 : vector<14x14xf32>
    %1185 = arith.addf %1152, %1184 : vector<14x14xf32>
    %c2_543 = arith.constant 2 : index
    %c30_544 = arith.constant 30 : index
    %1186 = memref.load %arg4[%c2_543, %c30_544] : memref<8x36xf32, #tpu.memory_space<smem>>
    %1187 = vector.broadcast %1186 : f32 to vector<14x14xf32>
    %1188 = arith.mulf %1187, %1177 : vector<14x14xf32>
    %1189 = arith.addf %1156, %1188 : vector<14x14xf32>
    %c3_545 = arith.constant 3 : index
    %c30_546 = arith.constant 30 : index
    %1190 = memref.load %arg4[%c3_545, %c30_546] : memref<8x36xf32, #tpu.memory_space<smem>>
    %1191 = vector.broadcast %1190 : f32 to vector<14x14xf32>
    %1192 = arith.mulf %1191, %1177 : vector<14x14xf32>
    %1193 = arith.addf %1160, %1192 : vector<14x14xf32>
    %c4_547 = arith.constant 4 : index
    %c30_548 = arith.constant 30 : index
    %1194 = memref.load %arg4[%c4_547, %c30_548] : memref<8x36xf32, #tpu.memory_space<smem>>
    %1195 = vector.broadcast %1194 : f32 to vector<14x14xf32>
    %1196 = arith.mulf %1195, %1177 : vector<14x14xf32>
    %1197 = arith.addf %1164, %1196 : vector<14x14xf32>
    %c5_549 = arith.constant 5 : index
    %c30_550 = arith.constant 30 : index
    %1198 = memref.load %arg4[%c5_549, %c30_550] : memref<8x36xf32, #tpu.memory_space<smem>>
    %1199 = vector.broadcast %1198 : f32 to vector<14x14xf32>
    %1200 = arith.mulf %1199, %1177 : vector<14x14xf32>
    %1201 = arith.addf %1168, %1200 : vector<14x14xf32>
    %c6_551 = arith.constant 6 : index
    %c30_552 = arith.constant 30 : index
    %1202 = memref.load %arg4[%c6_551, %c30_552] : memref<8x36xf32, #tpu.memory_space<smem>>
    %1203 = vector.broadcast %1202 : f32 to vector<14x14xf32>
    %1204 = arith.mulf %1203, %1177 : vector<14x14xf32>
    %1205 = arith.addf %1172, %1204 : vector<14x14xf32>
    %c7_553 = arith.constant 7 : index
    %c30_554 = arith.constant 30 : index
    %1206 = memref.load %arg4[%c7_553, %c30_554] : memref<8x36xf32, #tpu.memory_space<smem>>
    %1207 = vector.broadcast %1206 : f32 to vector<14x14xf32>
    %1208 = arith.mulf %1207, %1177 : vector<14x14xf32>
    %1209 = arith.addf %1176, %1208 : vector<14x14xf32>
    %1210 = vector.extract_strided_slice %170 {offsets = [1, 1], sizes = [14, 14], strides = [1, 1]} : vector<16x16xf32> to vector<14x14xf32>
    %c0_555 = arith.constant 0 : index
    %c31 = arith.constant 31 : index
    %1211 = memref.load %arg4[%c0_555, %c31] : memref<8x36xf32, #tpu.memory_space<smem>>
    %1212 = vector.broadcast %1211 : f32 to vector<14x14xf32>
    %1213 = arith.mulf %1212, %1210 : vector<14x14xf32>
    %1214 = arith.addf %1181, %1213 : vector<14x14xf32>
    %c1_556 = arith.constant 1 : index
    %c31_557 = arith.constant 31 : index
    %1215 = memref.load %arg4[%c1_556, %c31_557] : memref<8x36xf32, #tpu.memory_space<smem>>
    %1216 = vector.broadcast %1215 : f32 to vector<14x14xf32>
    %1217 = arith.mulf %1216, %1210 : vector<14x14xf32>
    %1218 = arith.addf %1185, %1217 : vector<14x14xf32>
    %c2_558 = arith.constant 2 : index
    %c31_559 = arith.constant 31 : index
    %1219 = memref.load %arg4[%c2_558, %c31_559] : memref<8x36xf32, #tpu.memory_space<smem>>
    %1220 = vector.broadcast %1219 : f32 to vector<14x14xf32>
    %1221 = arith.mulf %1220, %1210 : vector<14x14xf32>
    %1222 = arith.addf %1189, %1221 : vector<14x14xf32>
    %c3_560 = arith.constant 3 : index
    %c31_561 = arith.constant 31 : index
    %1223 = memref.load %arg4[%c3_560, %c31_561] : memref<8x36xf32, #tpu.memory_space<smem>>
    %1224 = vector.broadcast %1223 : f32 to vector<14x14xf32>
    %1225 = arith.mulf %1224, %1210 : vector<14x14xf32>
    %1226 = arith.addf %1193, %1225 : vector<14x14xf32>
    %c4_562 = arith.constant 4 : index
    %c31_563 = arith.constant 31 : index
    %1227 = memref.load %arg4[%c4_562, %c31_563] : memref<8x36xf32, #tpu.memory_space<smem>>
    %1228 = vector.broadcast %1227 : f32 to vector<14x14xf32>
    %1229 = arith.mulf %1228, %1210 : vector<14x14xf32>
    %1230 = arith.addf %1197, %1229 : vector<14x14xf32>
    %c5_564 = arith.constant 5 : index
    %c31_565 = arith.constant 31 : index
    %1231 = memref.load %arg4[%c5_564, %c31_565] : memref<8x36xf32, #tpu.memory_space<smem>>
    %1232 = vector.broadcast %1231 : f32 to vector<14x14xf32>
    %1233 = arith.mulf %1232, %1210 : vector<14x14xf32>
    %1234 = arith.addf %1201, %1233 : vector<14x14xf32>
    %c6_566 = arith.constant 6 : index
    %c31_567 = arith.constant 31 : index
    %1235 = memref.load %arg4[%c6_566, %c31_567] : memref<8x36xf32, #tpu.memory_space<smem>>
    %1236 = vector.broadcast %1235 : f32 to vector<14x14xf32>
    %1237 = arith.mulf %1236, %1210 : vector<14x14xf32>
    %1238 = arith.addf %1205, %1237 : vector<14x14xf32>
    %c7_568 = arith.constant 7 : index
    %c31_569 = arith.constant 31 : index
    %1239 = memref.load %arg4[%c7_568, %c31_569] : memref<8x36xf32, #tpu.memory_space<smem>>
    %1240 = vector.broadcast %1239 : f32 to vector<14x14xf32>
    %1241 = arith.mulf %1240, %1210 : vector<14x14xf32>
    %1242 = arith.addf %1209, %1241 : vector<14x14xf32>
    %1243 = vector.extract_strided_slice %170 {offsets = [1, 2], sizes = [14, 14], strides = [1, 1]} : vector<16x16xf32> to vector<14x14xf32>
    %c0_570 = arith.constant 0 : index
    %c32 = arith.constant 32 : index
    %1244 = memref.load %arg4[%c0_570, %c32] : memref<8x36xf32, #tpu.memory_space<smem>>
    %1245 = vector.broadcast %1244 : f32 to vector<14x14xf32>
    %1246 = arith.mulf %1245, %1243 : vector<14x14xf32>
    %1247 = arith.addf %1214, %1246 : vector<14x14xf32>
    %c1_571 = arith.constant 1 : index
    %c32_572 = arith.constant 32 : index
    %1248 = memref.load %arg4[%c1_571, %c32_572] : memref<8x36xf32, #tpu.memory_space<smem>>
    %1249 = vector.broadcast %1248 : f32 to vector<14x14xf32>
    %1250 = arith.mulf %1249, %1243 : vector<14x14xf32>
    %1251 = arith.addf %1218, %1250 : vector<14x14xf32>
    %c2_573 = arith.constant 2 : index
    %c32_574 = arith.constant 32 : index
    %1252 = memref.load %arg4[%c2_573, %c32_574] : memref<8x36xf32, #tpu.memory_space<smem>>
    %1253 = vector.broadcast %1252 : f32 to vector<14x14xf32>
    %1254 = arith.mulf %1253, %1243 : vector<14x14xf32>
    %1255 = arith.addf %1222, %1254 : vector<14x14xf32>
    %c3_575 = arith.constant 3 : index
    %c32_576 = arith.constant 32 : index
    %1256 = memref.load %arg4[%c3_575, %c32_576] : memref<8x36xf32, #tpu.memory_space<smem>>
    %1257 = vector.broadcast %1256 : f32 to vector<14x14xf32>
    %1258 = arith.mulf %1257, %1243 : vector<14x14xf32>
    %1259 = arith.addf %1226, %1258 : vector<14x14xf32>
    %c4_577 = arith.constant 4 : index
    %c32_578 = arith.constant 32 : index
    %1260 = memref.load %arg4[%c4_577, %c32_578] : memref<8x36xf32, #tpu.memory_space<smem>>
    %1261 = vector.broadcast %1260 : f32 to vector<14x14xf32>
    %1262 = arith.mulf %1261, %1243 : vector<14x14xf32>
    %1263 = arith.addf %1230, %1262 : vector<14x14xf32>
    %c5_579 = arith.constant 5 : index
    %c32_580 = arith.constant 32 : index
    %1264 = memref.load %arg4[%c5_579, %c32_580] : memref<8x36xf32, #tpu.memory_space<smem>>
    %1265 = vector.broadcast %1264 : f32 to vector<14x14xf32>
    %1266 = arith.mulf %1265, %1243 : vector<14x14xf32>
    %1267 = arith.addf %1234, %1266 : vector<14x14xf32>
    %c6_581 = arith.constant 6 : index
    %c32_582 = arith.constant 32 : index
    %1268 = memref.load %arg4[%c6_581, %c32_582] : memref<8x36xf32, #tpu.memory_space<smem>>
    %1269 = vector.broadcast %1268 : f32 to vector<14x14xf32>
    %1270 = arith.mulf %1269, %1243 : vector<14x14xf32>
    %1271 = arith.addf %1238, %1270 : vector<14x14xf32>
    %c7_583 = arith.constant 7 : index
    %c32_584 = arith.constant 32 : index
    %1272 = memref.load %arg4[%c7_583, %c32_584] : memref<8x36xf32, #tpu.memory_space<smem>>
    %1273 = vector.broadcast %1272 : f32 to vector<14x14xf32>
    %1274 = arith.mulf %1273, %1243 : vector<14x14xf32>
    %1275 = arith.addf %1242, %1274 : vector<14x14xf32>
    %1276 = vector.extract_strided_slice %170 {offsets = [2, 0], sizes = [14, 14], strides = [1, 1]} : vector<16x16xf32> to vector<14x14xf32>
    %c0_585 = arith.constant 0 : index
    %c33 = arith.constant 33 : index
    %1277 = memref.load %arg4[%c0_585, %c33] : memref<8x36xf32, #tpu.memory_space<smem>>
    %1278 = vector.broadcast %1277 : f32 to vector<14x14xf32>
    %1279 = arith.mulf %1278, %1276 : vector<14x14xf32>
    %1280 = arith.addf %1247, %1279 : vector<14x14xf32>
    %c1_586 = arith.constant 1 : index
    %c33_587 = arith.constant 33 : index
    %1281 = memref.load %arg4[%c1_586, %c33_587] : memref<8x36xf32, #tpu.memory_space<smem>>
    %1282 = vector.broadcast %1281 : f32 to vector<14x14xf32>
    %1283 = arith.mulf %1282, %1276 : vector<14x14xf32>
    %1284 = arith.addf %1251, %1283 : vector<14x14xf32>
    %c2_588 = arith.constant 2 : index
    %c33_589 = arith.constant 33 : index
    %1285 = memref.load %arg4[%c2_588, %c33_589] : memref<8x36xf32, #tpu.memory_space<smem>>
    %1286 = vector.broadcast %1285 : f32 to vector<14x14xf32>
    %1287 = arith.mulf %1286, %1276 : vector<14x14xf32>
    %1288 = arith.addf %1255, %1287 : vector<14x14xf32>
    %c3_590 = arith.constant 3 : index
    %c33_591 = arith.constant 33 : index
    %1289 = memref.load %arg4[%c3_590, %c33_591] : memref<8x36xf32, #tpu.memory_space<smem>>
    %1290 = vector.broadcast %1289 : f32 to vector<14x14xf32>
    %1291 = arith.mulf %1290, %1276 : vector<14x14xf32>
    %1292 = arith.addf %1259, %1291 : vector<14x14xf32>
    %c4_592 = arith.constant 4 : index
    %c33_593 = arith.constant 33 : index
    %1293 = memref.load %arg4[%c4_592, %c33_593] : memref<8x36xf32, #tpu.memory_space<smem>>
    %1294 = vector.broadcast %1293 : f32 to vector<14x14xf32>
    %1295 = arith.mulf %1294, %1276 : vector<14x14xf32>
    %1296 = arith.addf %1263, %1295 : vector<14x14xf32>
    %c5_594 = arith.constant 5 : index
    %c33_595 = arith.constant 33 : index
    %1297 = memref.load %arg4[%c5_594, %c33_595] : memref<8x36xf32, #tpu.memory_space<smem>>
    %1298 = vector.broadcast %1297 : f32 to vector<14x14xf32>
    %1299 = arith.mulf %1298, %1276 : vector<14x14xf32>
    %1300 = arith.addf %1267, %1299 : vector<14x14xf32>
    %c6_596 = arith.constant 6 : index
    %c33_597 = arith.constant 33 : index
    %1301 = memref.load %arg4[%c6_596, %c33_597] : memref<8x36xf32, #tpu.memory_space<smem>>
    %1302 = vector.broadcast %1301 : f32 to vector<14x14xf32>
    %1303 = arith.mulf %1302, %1276 : vector<14x14xf32>
    %1304 = arith.addf %1271, %1303 : vector<14x14xf32>
    %c7_598 = arith.constant 7 : index
    %c33_599 = arith.constant 33 : index
    %1305 = memref.load %arg4[%c7_598, %c33_599] : memref<8x36xf32, #tpu.memory_space<smem>>
    %1306 = vector.broadcast %1305 : f32 to vector<14x14xf32>
    %1307 = arith.mulf %1306, %1276 : vector<14x14xf32>
    %1308 = arith.addf %1275, %1307 : vector<14x14xf32>
    %1309 = vector.extract_strided_slice %170 {offsets = [2, 1], sizes = [14, 14], strides = [1, 1]} : vector<16x16xf32> to vector<14x14xf32>
    %c0_600 = arith.constant 0 : index
    %c34 = arith.constant 34 : index
    %1310 = memref.load %arg4[%c0_600, %c34] : memref<8x36xf32, #tpu.memory_space<smem>>
    %1311 = vector.broadcast %1310 : f32 to vector<14x14xf32>
    %1312 = arith.mulf %1311, %1309 : vector<14x14xf32>
    %1313 = arith.addf %1280, %1312 : vector<14x14xf32>
    %c1_601 = arith.constant 1 : index
    %c34_602 = arith.constant 34 : index
    %1314 = memref.load %arg4[%c1_601, %c34_602] : memref<8x36xf32, #tpu.memory_space<smem>>
    %1315 = vector.broadcast %1314 : f32 to vector<14x14xf32>
    %1316 = arith.mulf %1315, %1309 : vector<14x14xf32>
    %1317 = arith.addf %1284, %1316 : vector<14x14xf32>
    %c2_603 = arith.constant 2 : index
    %c34_604 = arith.constant 34 : index
    %1318 = memref.load %arg4[%c2_603, %c34_604] : memref<8x36xf32, #tpu.memory_space<smem>>
    %1319 = vector.broadcast %1318 : f32 to vector<14x14xf32>
    %1320 = arith.mulf %1319, %1309 : vector<14x14xf32>
    %1321 = arith.addf %1288, %1320 : vector<14x14xf32>
    %c3_605 = arith.constant 3 : index
    %c34_606 = arith.constant 34 : index
    %1322 = memref.load %arg4[%c3_605, %c34_606] : memref<8x36xf32, #tpu.memory_space<smem>>
    %1323 = vector.broadcast %1322 : f32 to vector<14x14xf32>
    %1324 = arith.mulf %1323, %1309 : vector<14x14xf32>
    %1325 = arith.addf %1292, %1324 : vector<14x14xf32>
    %c4_607 = arith.constant 4 : index
    %c34_608 = arith.constant 34 : index
    %1326 = memref.load %arg4[%c4_607, %c34_608] : memref<8x36xf32, #tpu.memory_space<smem>>
    %1327 = vector.broadcast %1326 : f32 to vector<14x14xf32>
    %1328 = arith.mulf %1327, %1309 : vector<14x14xf32>
    %1329 = arith.addf %1296, %1328 : vector<14x14xf32>
    %c5_609 = arith.constant 5 : index
    %c34_610 = arith.constant 34 : index
    %1330 = memref.load %arg4[%c5_609, %c34_610] : memref<8x36xf32, #tpu.memory_space<smem>>
    %1331 = vector.broadcast %1330 : f32 to vector<14x14xf32>
    %1332 = arith.mulf %1331, %1309 : vector<14x14xf32>
    %1333 = arith.addf %1300, %1332 : vector<14x14xf32>
    %c6_611 = arith.constant 6 : index
    %c34_612 = arith.constant 34 : index
    %1334 = memref.load %arg4[%c6_611, %c34_612] : memref<8x36xf32, #tpu.memory_space<smem>>
    %1335 = vector.broadcast %1334 : f32 to vector<14x14xf32>
    %1336 = arith.mulf %1335, %1309 : vector<14x14xf32>
    %1337 = arith.addf %1304, %1336 : vector<14x14xf32>
    %c7_613 = arith.constant 7 : index
    %c34_614 = arith.constant 34 : index
    %1338 = memref.load %arg4[%c7_613, %c34_614] : memref<8x36xf32, #tpu.memory_space<smem>>
    %1339 = vector.broadcast %1338 : f32 to vector<14x14xf32>
    %1340 = arith.mulf %1339, %1309 : vector<14x14xf32>
    %1341 = arith.addf %1308, %1340 : vector<14x14xf32>
    %1342 = vector.extract_strided_slice %170 {offsets = [2, 2], sizes = [14, 14], strides = [1, 1]} : vector<16x16xf32> to vector<14x14xf32>
    %c0_615 = arith.constant 0 : index
    %c35 = arith.constant 35 : index
    %1343 = memref.load %arg4[%c0_615, %c35] : memref<8x36xf32, #tpu.memory_space<smem>>
    %1344 = vector.broadcast %1343 : f32 to vector<14x14xf32>
    %1345 = arith.mulf %1344, %1342 : vector<14x14xf32>
    %1346 = arith.addf %1313, %1345 : vector<14x14xf32>
    %c1_616 = arith.constant 1 : index
    %c35_617 = arith.constant 35 : index
    %1347 = memref.load %arg4[%c1_616, %c35_617] : memref<8x36xf32, #tpu.memory_space<smem>>
    %1348 = vector.broadcast %1347 : f32 to vector<14x14xf32>
    %1349 = arith.mulf %1348, %1342 : vector<14x14xf32>
    %1350 = arith.addf %1317, %1349 : vector<14x14xf32>
    %c2_618 = arith.constant 2 : index
    %c35_619 = arith.constant 35 : index
    %1351 = memref.load %arg4[%c2_618, %c35_619] : memref<8x36xf32, #tpu.memory_space<smem>>
    %1352 = vector.broadcast %1351 : f32 to vector<14x14xf32>
    %1353 = arith.mulf %1352, %1342 : vector<14x14xf32>
    %1354 = arith.addf %1321, %1353 : vector<14x14xf32>
    %c3_620 = arith.constant 3 : index
    %c35_621 = arith.constant 35 : index
    %1355 = memref.load %arg4[%c3_620, %c35_621] : memref<8x36xf32, #tpu.memory_space<smem>>
    %1356 = vector.broadcast %1355 : f32 to vector<14x14xf32>
    %1357 = arith.mulf %1356, %1342 : vector<14x14xf32>
    %1358 = arith.addf %1325, %1357 : vector<14x14xf32>
    %c4_622 = arith.constant 4 : index
    %c35_623 = arith.constant 35 : index
    %1359 = memref.load %arg4[%c4_622, %c35_623] : memref<8x36xf32, #tpu.memory_space<smem>>
    %1360 = vector.broadcast %1359 : f32 to vector<14x14xf32>
    %1361 = arith.mulf %1360, %1342 : vector<14x14xf32>
    %1362 = arith.addf %1329, %1361 : vector<14x14xf32>
    %c5_624 = arith.constant 5 : index
    %c35_625 = arith.constant 35 : index
    %1363 = memref.load %arg4[%c5_624, %c35_625] : memref<8x36xf32, #tpu.memory_space<smem>>
    %1364 = vector.broadcast %1363 : f32 to vector<14x14xf32>
    %1365 = arith.mulf %1364, %1342 : vector<14x14xf32>
    %1366 = arith.addf %1333, %1365 : vector<14x14xf32>
    %c6_626 = arith.constant 6 : index
    %c35_627 = arith.constant 35 : index
    %1367 = memref.load %arg4[%c6_626, %c35_627] : memref<8x36xf32, #tpu.memory_space<smem>>
    %1368 = vector.broadcast %1367 : f32 to vector<14x14xf32>
    %1369 = arith.mulf %1368, %1342 : vector<14x14xf32>
    %1370 = arith.addf %1337, %1369 : vector<14x14xf32>
    %c7_628 = arith.constant 7 : index
    %c35_629 = arith.constant 35 : index
    %1371 = memref.load %arg4[%c7_628, %c35_629] : memref<8x36xf32, #tpu.memory_space<smem>>
    %1372 = vector.broadcast %1371 : f32 to vector<14x14xf32>
    %1373 = arith.mulf %1372, %1342 : vector<14x14xf32>
    %1374 = arith.addf %1341, %1373 : vector<14x14xf32>
    %cst_630 = arith.constant 0.000000e+00 : f32
    %1375 = vector.broadcast %cst_630 : f32 to vector<14x14xf32>
    %1376 = arith.maximumf %1346, %1375 : vector<14x14xf32>
    %1377 = vector.shape_cast %1376 : vector<14x14xf32> to vector<1x14x14xf32>
    %cst_631 = arith.constant dense<0xFF800000> : vector<1xf32>
    %1378 = vector.multi_reduction <maximumf>, %1377, %cst_631 [1, 2] : vector<1x14x14xf32> to vector<1xf32>
    %1379 = vector.shape_cast %1378 : vector<1xf32> to vector<1x1x1xf32>
    %1380 = vector.extract %1379[0, 0, 0] : f32 from vector<1x1x1xf32>
    %1381 = vector.broadcast %1380 : f32 to vector<1x1xf32>
    %cst_632 = arith.constant 0.000000e+00 : f32
    %1382 = vector.broadcast %cst_632 : f32 to vector<14x14xf32>
    %1383 = arith.maximumf %1350, %1382 : vector<14x14xf32>
    %1384 = vector.shape_cast %1383 : vector<14x14xf32> to vector<1x14x14xf32>
    %cst_633 = arith.constant dense<0xFF800000> : vector<1xf32>
    %1385 = vector.multi_reduction <maximumf>, %1384, %cst_633 [1, 2] : vector<1x14x14xf32> to vector<1xf32>
    %1386 = vector.shape_cast %1385 : vector<1xf32> to vector<1x1x1xf32>
    %1387 = vector.extract %1386[0, 0, 0] : f32 from vector<1x1x1xf32>
    %1388 = vector.broadcast %1387 : f32 to vector<1x1xf32>
    %cst_634 = arith.constant 0.000000e+00 : f32
    %1389 = vector.broadcast %cst_634 : f32 to vector<14x14xf32>
    %1390 = arith.maximumf %1354, %1389 : vector<14x14xf32>
    %1391 = vector.shape_cast %1390 : vector<14x14xf32> to vector<1x14x14xf32>
    %cst_635 = arith.constant dense<0xFF800000> : vector<1xf32>
    %1392 = vector.multi_reduction <maximumf>, %1391, %cst_635 [1, 2] : vector<1x14x14xf32> to vector<1xf32>
    %1393 = vector.shape_cast %1392 : vector<1xf32> to vector<1x1x1xf32>
    %1394 = vector.extract %1393[0, 0, 0] : f32 from vector<1x1x1xf32>
    %1395 = vector.broadcast %1394 : f32 to vector<1x1xf32>
    %cst_636 = arith.constant 0.000000e+00 : f32
    %1396 = vector.broadcast %cst_636 : f32 to vector<14x14xf32>
    %1397 = arith.maximumf %1358, %1396 : vector<14x14xf32>
    %1398 = vector.shape_cast %1397 : vector<14x14xf32> to vector<1x14x14xf32>
    %cst_637 = arith.constant dense<0xFF800000> : vector<1xf32>
    %1399 = vector.multi_reduction <maximumf>, %1398, %cst_637 [1, 2] : vector<1x14x14xf32> to vector<1xf32>
    %1400 = vector.shape_cast %1399 : vector<1xf32> to vector<1x1x1xf32>
    %1401 = vector.extract %1400[0, 0, 0] : f32 from vector<1x1x1xf32>
    %1402 = vector.broadcast %1401 : f32 to vector<1x1xf32>
    %cst_638 = arith.constant 0.000000e+00 : f32
    %1403 = vector.broadcast %cst_638 : f32 to vector<14x14xf32>
    %1404 = arith.maximumf %1362, %1403 : vector<14x14xf32>
    %1405 = vector.shape_cast %1404 : vector<14x14xf32> to vector<1x14x14xf32>
    %cst_639 = arith.constant dense<0xFF800000> : vector<1xf32>
    %1406 = vector.multi_reduction <maximumf>, %1405, %cst_639 [1, 2] : vector<1x14x14xf32> to vector<1xf32>
    %1407 = vector.shape_cast %1406 : vector<1xf32> to vector<1x1x1xf32>
    %1408 = vector.extract %1407[0, 0, 0] : f32 from vector<1x1x1xf32>
    %1409 = vector.broadcast %1408 : f32 to vector<1x1xf32>
    %cst_640 = arith.constant 0.000000e+00 : f32
    %1410 = vector.broadcast %cst_640 : f32 to vector<14x14xf32>
    %1411 = arith.maximumf %1366, %1410 : vector<14x14xf32>
    %1412 = vector.shape_cast %1411 : vector<14x14xf32> to vector<1x14x14xf32>
    %cst_641 = arith.constant dense<0xFF800000> : vector<1xf32>
    %1413 = vector.multi_reduction <maximumf>, %1412, %cst_641 [1, 2] : vector<1x14x14xf32> to vector<1xf32>
    %1414 = vector.shape_cast %1413 : vector<1xf32> to vector<1x1x1xf32>
    %1415 = vector.extract %1414[0, 0, 0] : f32 from vector<1x1x1xf32>
    %1416 = vector.broadcast %1415 : f32 to vector<1x1xf32>
    %cst_642 = arith.constant 0.000000e+00 : f32
    %1417 = vector.broadcast %cst_642 : f32 to vector<14x14xf32>
    %1418 = arith.maximumf %1370, %1417 : vector<14x14xf32>
    %1419 = vector.shape_cast %1418 : vector<14x14xf32> to vector<1x14x14xf32>
    %cst_643 = arith.constant dense<0xFF800000> : vector<1xf32>
    %1420 = vector.multi_reduction <maximumf>, %1419, %cst_643 [1, 2] : vector<1x14x14xf32> to vector<1xf32>
    %1421 = vector.shape_cast %1420 : vector<1xf32> to vector<1x1x1xf32>
    %1422 = vector.extract %1421[0, 0, 0] : f32 from vector<1x1x1xf32>
    %1423 = vector.broadcast %1422 : f32 to vector<1x1xf32>
    %cst_644 = arith.constant 0.000000e+00 : f32
    %1424 = vector.broadcast %cst_644 : f32 to vector<14x14xf32>
    %1425 = arith.maximumf %1374, %1424 : vector<14x14xf32>
    %1426 = vector.shape_cast %1425 : vector<14x14xf32> to vector<1x14x14xf32>
    %cst_645 = arith.constant dense<0xFF800000> : vector<1xf32>
    %1427 = vector.multi_reduction <maximumf>, %1426, %cst_645 [1, 2] : vector<1x14x14xf32> to vector<1xf32>
    %1428 = vector.shape_cast %1427 : vector<1xf32> to vector<1x1x1xf32>
    %1429 = vector.extract %1428[0, 0, 0] : f32 from vector<1x1x1xf32>
    %1430 = vector.broadcast %1429 : f32 to vector<1x1xf32>
    %1431 = tpu.concatenate %1381, %1388, %1395, %1402, %1409, %1416, %1423, %1430 in 1 : vector<1x1xf32>, vector<1x1xf32>, vector<1x1xf32>, vector<1x1xf32>, vector<1x1xf32>, vector<1x1xf32>, vector<1x1xf32>, vector<1x1xf32> -> vector<1x8xf32>
    %c0_646 = arith.constant 0 : index
    %c0_647 = arith.constant 0 : index
    %c0_648 = arith.constant 0 : index
    %1432 = vector.load %arg6[%c0_646, %c0_647, %c0_648] : memref<1x1x8xf32, #tpu.memory_space<vmem>>, vector<1x1x8xf32>
    %1433 = vector.shape_cast %1432 : vector<1x1x8xf32> to vector<1x8xf32>
    %1434 = vector.shape_cast %1431 : vector<1x8xf32> to vector<1x1x8xf32>
    tpu.vector_store %arg6[%c0_646, %c0_647, %c0_648], %1434 {strides = array<i32>} : memref<1x1x8xf32, #tpu.memory_space<vmem>>, vector<1x1x8xf32>,
    return
  }
  func.func @transform_0(%arg0: i32) -> (i32, i32, i32) {
    %c0_i32 = arith.constant 0 : i32
    %c0_i32_0 = arith.constant 0 : i32
    %c0_i32_1 = arith.constant 0 : i32
    return %arg0, %c0_i32, %c0_i32_0 : i32, i32, i32
  }
  func.func @transform_1(%arg0: i32) -> (i32, i32) {
    %c0_i32 = arith.constant 0 : i32
    %c0_i32_0 = arith.constant 0 : i32
    %c0_i32_1 = arith.constant 0 : i32
    return %c0_i32, %c0_i32_0 : i32, i32
  }
  func.func @transform_2(%arg0: i32) -> i32 {
    %c0_i32 = arith.constant 0 : i32
    %c0_i32_0 = arith.constant 0 : i32
    return %c0_i32 : i32
  }
  func.func @transform_3(%arg0: i32) -> (i32, i32) {
    %c0_i32 = arith.constant 0 : i32
    %c0_i32_0 = arith.constant 0 : i32
    %c0_i32_1 = arith.constant 0 : i32
    return %c0_i32, %c0_i32_0 : i32, i32
  }
  func.func @transform_4(%arg0: i32) -> i32 {
    %c0_i32 = arith.constant 0 : i32
    %c0_i32_0 = arith.constant 0 : i32
    return %c0_i32 : i32
  }
  func.func @transform_5(%arg0: i32) -> (i32, i32, i32) {
    %c0_i32 = arith.constant 0 : i32
    %c0_i32_0 = arith.constant 0 : i32
    %c0_i32_1 = arith.constant 0 : i32
    return %arg0, %c0_i32, %c0_i32_0 : i32, i32, i32
  }
}

</mosaic_0001>

<llo_original>
// kernel: fcn_forward.1
$region0: #{fcn_forward.1}
  #allocation0 [shape = 'u32[]', space=smem, size = 0x4, offset = 0x4, fixed_abs, tag = 'smem constant byte address 0x4 - core index']
  #allocation1 [shape = 'u32[144,128]{1,0:T(1,128)}', space=vmem, size = 0x12000, scoped, tag = 'internal scratch']
  %s0 = inlined_call_operand.vmem [shape: f32[2,18,18], index: 0, kind: input, shape index: {}]
  %s1 = inlined_call_operand.vmem [shape: f32[4,9], index: 1, kind: input, shape index: {}]
  %s2 = inlined_call_operand.vmem [shape: f32[4], index: 2, kind: input, shape index: {}]
  %s3 = inlined_call_operand.vmem [shape: f32[8,36], index: 3, kind: input, shape index: {}]
  %s4 = inlined_call_operand.vmem [shape: f32[8], index: 4, kind: input, shape index: {}]
  %s5 = inlined_call_operand.hbm [shape: f32[2,1,8], index: 5, kind: output, shape index: {}]
  %s6 = sld [smem:[#allocation0]]
  $region69: #{fcn_forward.1} parent=0
    _
  %s8 = ssub.s32 1, %s6
  %s9 = scalar_select 0, %s8, %s6
  $region1: #{fcn_forward.1} parent=0
    #allocation2 [shape = 'u8[2048]{0}', space=smem, size = 0x800, scoped, tag = 'input window, operand 1, single buffered']
    #allocation3 [shape = 's32[2]{0}', space=sflag, size = 0x8, scoped, tag = 'scoped memory for fcn_forward.1']
    #allocation4 [shape = 's32[2]{0}', space=sflag, size = 0x8, scoped, tag = 'scoped memory for fcn_forward.1']
    #allocation5 [shape = 'u8[512]{0}', space=smem, size = 0x200, scoped, tag = 'input window, operand 2, single buffered']
    #allocation6 [shape = 's32[1]{0}', space=sflag, size = 0x4, scoped, tag = 'scoped memory for fcn_forward.1']
    #allocation7 [shape = 'u8[4096]{0}', space=smem, size = 0x1000, scoped, tag = 'input window, operand 3, single buffered']
    #allocation8 [shape = 'u8[512]{0}', space=smem, size = 0x200, scoped, tag = 'input window, operand 4, single buffered']
    #allocation9 [shape = 's32[1]{0}', space=sflag, size = 0x4, scoped, tag = 'scoped memory for fcn_forward.1']
    #allocation10 [shape = 'u8[1024]{0}', space=vmem, size = 0x400, scoped, tag = 'output window, operand 0']
    %10 = vsyncpa [#allocation4], 0
    %11 = vsyncpa [#allocation6], 0
    %12 = vsyncpa [#allocation9], 0
    %13 = vsyncpa [#allocation3], 0
    %s14 = scalar_lea.sflag [#allocation3], 1
    %15 = vsyncpa %s14, 0
    loop: start=0, step=1, limit=4
    $region2: #{fcn_forward.1} parent=1 // loop_pre_header
      _
    $region3: #{fcn_forward.1} parent=1 // loop_header
      %s17 = sphi 0, %s21
      %p18 = scmp.ge.s32.totalorder %s17, 4
      %s27 = sphi 0, %s29
      %s30 = sphi 0, %s27
      %s31 = sphi 0, %s30
      %s47 = sphi 0, %s31
      %s51 = sphi 0, %s51
      %s53 = sphi 0, %s51
      %s54 = sphi 0, %s53
      %s68 = sphi 0, %s54
      %s72 = sphi 0, %s72
      %s74 = sphi 0, %s72
      %s75 = sphi 0, %s74
      %s89 = sphi 0, %s75
      %s93 = sphi 0, %s93
      %s95 = sphi 0, %s93
      %s96 = sphi 0, %s95
      %s110 = sphi 0, %s96
      %s114 = sphi 0, %s114
      %s116 = sphi 0, %s114
      %s117 = sphi 0, %s116
      %s131 = sphi 0, %s117
      %s137 = sphi 0, %s139
      %s140 = sphi 0, %s137
      %s141 = sphi 0, %s140
      %s157 = sphi 0, %s141
    $region4: #{fcn_forward.1} parent=1 // loop_header_branch
      %20 = sbr.rel (%p18) target = $region8
    $region5: #{fcn_forward.1} parent=1 // loop_body
      %s22 = ssub.s32 %s17, 1
      %s23 = ssub.s32 %s17, 2
      %s24 = sadd.s32 %s17, 1
      %s25 = ssub.s32 %s17, %s24
      %p26 = scmp.eq.s32.totalorder %s25, 0
      %s28 = sadd.s32 %s27, 1
      %s29 = scalar_select %p26, %s27, %s28
      %p32 = pneg %p26
      %p33 = scmp.eq.s32.totalorder %s17, 1
      %p34 = por %p32, %p33
      %p35 = scmp.ne.s32.totalorder %s27, %s30
      %p36 = scmp.eq.s32.totalorder %s17, 0
      %p37 = por %p35, %p36
      %p38 = scmp.ne.s32.totalorder %s27, %s30
      %p39 = scmp.eq.s32.totalorder %s22, 1
      %p40 = por %p38, %p39
      %p41 = scmp.ne.s32.totalorder %s30, %s31
      %p42 = scmp.eq.s32.totalorder %s22, 0
      %p43 = por %p41, %p42
      %p44 = scmp.ne.s32.totalorder %s30, %s31
      %p45 = scmp.eq.s32.totalorder %s23, 1
      %p46 = por %p44, %p45
      %p48 = scmp.ne.s32.totalorder %s31, %s47
      %p49 = scmp.eq.s32.totalorder %s23, 0
      %p50 = por %p48, %p49
      %s52 = sadd.s32 %s51, 1
      %p55 = scmp.eq.s32.totalorder %s17, 1
      %p56 = scmp.ne.s32.totalorder %s51, %s53
      %p57 = scmp.eq.s32.totalorder %s17, 0
      %p58 = por %p56, %p57
      %p59 = scmp.ne.s32.totalorder %s51, %s53
      %p60 = scmp.eq.s32.totalorder %s22, 1
      %p61 = por %p59, %p60
      %p62 = scmp.ne.s32.totalorder %s53, %s54
      %p63 = scmp.eq.s32.totalorder %s22, 0
      %p64 = por %p62, %p63
      %p65 = scmp.ne.s32.totalorder %s53, %s54
      %p66 = scmp.eq.s32.totalorder %s23, 1
      %p67 = por %p65, %p66
      %p69 = scmp.ne.s32.totalorder %s54, %s68
      %p70 = scmp.eq.s32.totalorder %s23, 0
      %p71 = por %p69, %p70
      %s73 = sadd.s32 %s72, 1
      %p76 = scmp.eq.s32.totalorder %s17, 1
      %p77 = scmp.ne.s32.totalorder %s72, %s74
      %p78 = scmp.eq.s32.totalorder %s17, 0
      %p79 = por %p77, %p78
      %p80 = scmp.ne.s32.totalorder %s72, %s74
      %p81 = scmp.eq.s32.totalorder %s22, 1
      %p82 = por %p80, %p81
      %p83 = scmp.ne.s32.totalorder %s74, %s75
      %p84 = scmp.eq.s32.totalorder %s22, 0
      %p85 = por %p83, %p84
      %p86 = scmp.ne.s32.totalorder %s74, %s75
      %p87 = scmp.eq.s32.totalorder %s23, 1
      %p88 = por %p86, %p87
      %p90 = scmp.ne.s32.totalorder %s75, %s89
      %p91 = scmp.eq.s32.totalorder %s23, 0
      %p92 = por %p90, %p91
      %s94 = sadd.s32 %s93, 1
      %p97 = scmp.eq.s32.totalorder %s17, 1
      %p98 = scmp.ne.s32.totalorder %s93, %s95
      %p99 = scmp.eq.s32.totalorder %s17, 0
      %p100 = por %p98, %p99
      %p101 = scmp.ne.s32.totalorder %s93, %s95
      %p102 = scmp.eq.s32.totalorder %s22, 1
      %p103 = por %p101, %p102
      %p104 = scmp.ne.s32.totalorder %s95, %s96
      %p105 = scmp.eq.s32.totalorder %s22, 0
      %p106 = por %p104, %p105
      %p107 = scmp.ne.s32.totalorder %s95, %s96
      %p108 = scmp.eq.s32.totalorder %s23, 1
      %p109 = por %p107, %p108
      %p111 = scmp.ne.s32.totalorder %s96, %s110
      %p112 = scmp.eq.s32.totalorder %s23, 0
      %p113 = por %p111, %p112
      %s115 = sadd.s32 %s114, 1
      %p118 = scmp.eq.s32.totalorder %s17, 1
      %p119 = scmp.ne.s32.totalorder %s114, %s116
      %p120 = scmp.eq.s32.totalorder %s17, 0
      %p121 = por %p119, %p120
      %p122 = scmp.ne.s32.totalorder %s114, %s116
      %p123 = scmp.eq.s32.totalorder %s22, 1
      %p124 = por %p122, %p123
      %p125 = scmp.ne.s32.totalorder %s116, %s117
      %p126 = scmp.eq.s32.totalorder %s22, 0
      %p127 = por %p125, %p126
      %p128 = scmp.ne.s32.totalorder %s116, %s117
      %p129 = scmp.eq.s32.totalorder %s23, 1
      %p130 = por %p128, %p129
      %p132 = scmp.ne.s32.totalorder %s117, %s131
      %p133 = scmp.eq.s32.totalorder %s23, 0
      %p134 = por %p132, %p133
      %s135 = ssub.s32 %s17, %s24
      %p136 = scmp.eq.s32.totalorder %s135, 0
      %s138 = sadd.s32 %s137, 1
      %s139 = scalar_select %p136, %s137, %s138
      %p142 = pneg %p136
      %p143 = scmp.eq.s32.totalorder %s17, 1
      %p144 = por %p142, %p143
      %p145 = scmp.ne.s32.totalorder %s137, %s140
      %p146 = scmp.eq.s32.totalorder %s17, 0
      %p147 = por %p145, %p146
      %p148 = scmp.ne.s32.totalorder %s137, %s140
      %p149 = scmp.eq.s32.totalorder %s22, 1
      %p150 = por %p148, %p149
      %p151 = scmp.ne.s32.totalorder %s140, %s141
      %p152 = scmp.eq.s32.totalorder %s22, 0
      %p153 = por %p151, %p152
      %p154 = scmp.ne.s32.totalorder %s140, %s141
      %p155 = scmp.eq.s32.totalorder %s23, 1
      %p156 = por %p154, %p155
      %p158 = scmp.ne.s32.totalorder %s141, %s157
      %p159 = scmp.eq.s32.totalorder %s23, 0
      %p160 = por %p158, %p159
      %p161 = scmp.le.s32.totalorder 1, %s17
      %p162 = scmp.lt.s32.totalorder %s17, 3
      %p163 = pnand %p161, %p162
      %p164 = pneg %p163
      // Predicated region
      $region9: #{fcn_forward.1} parent=5 // pred_check
        _
      $region10: #{fcn_forward.1} parent=5 // pred_check_branch
        %166 = sbr.rel (%p163) target = $region12
      $region11: #{fcn_forward.1} parent=5 // pred_region
        %s167 = ssub.s32 %s17, 1
        // Predicated region
        $region13: #{fcn_forward.1} parent=11 // pred_check
          %p168 = pneg %p64
        $region14: #{fcn_forward.1} parent=11 // pred_check_branch
          %170 = sbr.rel (%p168) target = $region16
        $region15: #{fcn_forward.1} parent=11 // pred_region
          %s172 = ssub.s32 64, 64
          %173 = vsyncadd [#allocation4], %s172
          %s175 = sshll.u32 %s1, 4
          %s176 = int_to_ptr.vmem [resolvable:$true] %s175
          %178 = dma.vmem_to_smem %s176, 64, [#allocation2], [#allocation4]
        $region16: #{fcn_forward.1} parent=11 // pred_fallthru
          _
        // Predicated region
        $region17: #{fcn_forward.1} parent=11 // pred_check
          %p179 = pneg %p85
        $region18: #{fcn_forward.1} parent=11 // pred_check_branch
          %181 = sbr.rel (%p179) target = $region20
        $region19: #{fcn_forward.1} parent=11 // pred_region
          %s183 = ssub.s32 16, 16
          %184 = vsyncadd [#allocation6], %s183
          %s186 = sshll.u32 %s2, 4
          %s187 = int_to_ptr.vmem [resolvable:$true] %s186
          %189 = dma.vmem_to_smem %s187, 16, [#allocation5], [#allocation6]
        $region20: #{fcn_forward.1} parent=11 // pred_fallthru
          _
        // Predicated region
        $region21: #{fcn_forward.1} parent=11 // pred_check
          %p190 = pneg %p106
        $region22: #{fcn_forward.1} parent=11 // pred_check_branch
          %192 = sbr.rel (%p190) target = $region24
        $region23: #{fcn_forward.1} parent=11 // pred_region
          %s194 = ssub.s32 128, 128
          %195 = vsyncadd [#allocation6], %s194
          %s197 = sshll.u32 %s3, 4
          %s198 = int_to_ptr.vmem [resolvable:$true] %s197
          %200 = dma.vmem_to_smem %s198, 128, [#allocation7], [#allocation6]
        $region24: #{fcn_forward.1} parent=11 // pred_fallthru
          _
        // Predicated region
        $region25: #{fcn_forward.1} parent=11 // pred_check
          %p201 = pneg %p127
        $region26: #{fcn_forward.1} parent=11 // pred_check_branch
          %203 = sbr.rel (%p201) target = $region28
        $region27: #{fcn_forward.1} parent=11 // pred_region
          %s205 = ssub.s32 16, 16
          %206 = vsyncadd [#allocation9], %s205
          %s208 = sshll.u32 %s4, 4
          %s209 = int_to_ptr.vmem [resolvable:$true] %s208
          %211 = dma.vmem_to_smem %s209, 16, [#allocation8], [#allocation9]
        $region28: #{fcn_forward.1} parent=11 // pred_fallthru
          _
      $region12: #{fcn_forward.1} parent=5 // pred_fallthru
        _
      %p212 = scmp.lt.s32.totalorder %s17, 2
      // Predicated region
      $region29: #{fcn_forward.1} parent=5 // pred_check
        %p213 = pneg %p212
      $region30: #{fcn_forward.1} parent=5 // pred_check_branch
        %215 = sbr.rel (%p213) target = $region32
      $region31: #{fcn_forward.1} parent=5 // pred_region
        // Predicated region
        $region33: #{fcn_forward.1} parent=31 // pred_check
          %p216 = pneg %p37
        $region34: #{fcn_forward.1} parent=31 // pred_check_branch
          %218 = sbr.rel (%p216) target = $region36
        $region35: #{fcn_forward.1} parent=31 // pred_region
          %p219 = scmp.lt.s32.totalorder %s17, 1
          %s220 = scalar_select %p219, %s17, 1
          %s221 = smul.addr %s220, 3
          %s222 = smul.addr %s221, 8
          %s223 = scalar_lea.vmem %s0, %s222
        $region36: #{fcn_forward.1} parent=31 // pred_fallthru
          _
      $region32: #{fcn_forward.1} parent=5 // pred_fallthru
        _
      %p224 = scmp.le.s32.totalorder 1, %s17
      %p225 = scmp.lt.s32.totalorder %s17, 3
      %p226 = pnand %p224, %p225
      %p227 = pneg %p226
      // Predicated region
      $region37: #{fcn_forward.1} parent=5 // pred_check
        _
      $region38: #{fcn_forward.1} parent=5 // pred_check_branch
        %229 = sbr.rel (%p226) target = $region40
      $region39: #{fcn_forward.1} parent=5 // pred_region
        %s230 = ssub.s32 %s17, 1
        // Predicated region
        $region41: #{fcn_forward.1} parent=39 // pred_check
          %p231 = pneg %p64
        $region42: #{fcn_forward.1} parent=39 // pred_check_branch
          %233 = sbr.rel (%p231) target = $region44
        $region43: #{fcn_forward.1} parent=39 // pred_region
          %234 = dma.done [#allocation4], 64
        $region44: #{fcn_forward.1} parent=39 // pred_fallthru
          _
        // Predicated region
        $region45: #{fcn_forward.1} parent=39 // pred_check
          %p235 = pneg %p85
        $region46: #{fcn_forward.1} parent=39 // pred_check_branch
          %237 = sbr.rel (%p235) target = $region48
        $region47: #{fcn_forward.1} parent=39 // pred_region
          %238 = dma.done [#allocation6], 16
        $region48: #{fcn_forward.1} parent=39 // pred_fallthru
          _
        // Predicated region
        $region49: #{fcn_forward.1} parent=39 // pred_check
          %p239 = pneg %p106
        $region50: #{fcn_forward.1} parent=39 // pred_check_branch
          %241 = sbr.rel (%p239) target = $region52
        $region51: #{fcn_forward.1} parent=39 // pred_region
          %242 = dma.done [#allocation6], 128
        $region52: #{fcn_forward.1} parent=39 // pred_fallthru
          _
        // Predicated region
        $region53: #{fcn_forward.1} parent=39 // pred_check
          %p243 = pneg %p127
        $region54: #{fcn_forward.1} parent=39 // pred_check_branch
          %245 = sbr.rel (%p243) target = $region56
        $region55: #{fcn_forward.1} parent=39 // pred_region
          %246 = dma.done [#allocation9], 16
        $region56: #{fcn_forward.1} parent=39 // pred_fallthru
          _
        %247 = sfence
        %p248 = scmp.lt.s32.totalorder %s22, 1
        %s249 = scalar_select %p248, %s22, 1
        %s250 = smul.addr %s249, 3
        %s251 = smul.addr %s250, 8
        %s252 = scalar_lea.vmem %s0, %s251
        %p253 = pneg %p43
        %p254 = pneg %p40
        %p255 = pneg %p64
        %p256 = pneg %p61
        %p257 = pneg %p85
        %p258 = pneg %p82
        %p259 = pneg %p106
        %p260 = pneg %p103
        %p261 = pneg %p127
        %p262 = pneg %p124
        %p263 = pneg %p153
        %p264 = pneg %p150
        %s265 = sand.u32 %s140, 1
        %s266 = scalar_lea.sflag [#allocation3], %s265
        %s267 = sand.u32 %s140, 1
        %s268 = scalar_lea.vmem [#allocation10], %s267
        %p269 = scmp.lt.s32.totalorder %s22, 1
        %s270 = scalar_select %p269, %s22, 1
        %s271 = smul.addr %s270, 3
        %s272 = smul.addr %s271, 8
        %s273 = scalar_lea.vmem %s0, %s272
        %v274 = vld [vmem:[%s273] sm:$0xff]
        %v275 = vld [vmem:[%s273 + $0x8] sm:$0xff]
        %v276 = vld [vmem:[%s273 + $0x10] sm:$0x3]
        %s277 = sld [smem:[#allocation5]]
        %v278 = vstv %s277
        %s279 = sld [smem:[#allocation2]]
        %v280 = vstv %s279
        %v281 = vmul.f32 %v280, %v274
        %v282 = vmul.f32 %v280, %v275
        %v283 = vadd.f32 %v278, %v281
        %v284 = vadd.f32 %v278, %v282
        %s285 = sld [smem:[#allocation2 + $0x1]]
        %v286 = vstv %s285
        %v287 = vmul.f32 %v286, %v274
        %v288 = vmul.f32 %v286, %v275
        %291 = vrot.lane.b32.xlu0 %v287, 127
        %v292 = vpop.permute.xlu0 %291
        %293 = vrot.lane.b32.xlu0 %v288, 127
        %v294 = vpop.permute.xlu0 %293
        %v297 = vadd.f32 %v283, %v292
        %v298 = vadd.f32 %v284, %v294
        %s299 = sld [smem:[#allocation2 + $0x2]]
        %v300 = vstv %s299
        %v301 = vmul.f32 %v300, %v274
        %v302 = vmul.f32 %v300, %v275
        %305 = vrot.lane.b32.xlu0 %v301, 126
        %v306 = vpop.permute.xlu0 %305
        %307 = vrot.lane.b32.xlu0 %v302, 126
        %v308 = vpop.permute.xlu0 %307
        %v311 = vadd.f32 %v297, %v306
        %v312 = vadd.f32 %v298, %v308
        %s313 = sld [smem:[#allocation2 + $0x3]]
        %v314 = vstv %s313
        %v315 = vmul.f32 %v314, %v274
        %v316 = vmul.f32 %v314, %v275
        %v317 = vmul.f32 %v314, %v276
        %vm321 = vcmask 1046528
        %v322 = vrot.slane %v315, 1
        %v323 = vrot.slane %v316, 1
        %v324 = vsel %vm321, %v322, %v323
        %v325 = vrot.slane %v317, 1
        %v326 = vsel %vm321, %v323, %v325
        %v329 = vadd.f32 %v311, %v324
        %v330 = vadd.f32 %v312, %v326
        %s331 = sld [smem:[#allocation2 + $0x4]]
        %v332 = vstv %s331
        %v333 = vmul.f32 %v332, %v274
        %v334 = vmul.f32 %v332, %v275
        %v335 = vmul.f32 %v332, %v276
        %v339 = vrot.slane %v333, 1
        %v340 = vrot.slane %v334, 1
        %v341 = vsel %vm321, %v339, %v340
        %v342 = vrot.slane %v335, 1
        %v343 = vsel %vm321, %v340, %v342
        %344 = vrot.lane.b32.xlu0 %v341, 127
        %v345 = vpop.permute.xlu0 %344
        %346 = vrot.lane.b32.xlu0 %v343, 127
        %v347 = vpop.permute.xlu0 %346
        %v350 = vadd.f32 %v329, %v345
        %v351 = vadd.f32 %v330, %v347
        %s352 = sld [smem:[#allocation2 + $0x5]]
        %v353 = vstv %s352
        %v354 = vmul.f32 %v353, %v274
        %v355 = vmul.f32 %v353, %v275
        %v356 = vmul.f32 %v353, %v276
        %v360 = vrot.slane %v354, 1
        %v361 = vrot.slane %v355, 1
        %v362 = vsel %vm321, %v360, %v361
        %v363 = vrot.slane %v356, 1
        %v364 = vsel %vm321, %v361, %v363
        %365 = vrot.lane.b32.xlu0 %v362, 126
        %v366 = vpop.permute.xlu0 %365
        %367 = vrot.lane.b32.xlu0 %v364, 126
        %v368 = vpop.permute.xlu0 %367
        %v371 = vadd.f32 %v350, %v366
        %v372 = vadd.f32 %v351, %v368
        %s373 = sld [smem:[#allocation2 + $0x6]]
        %v374 = vstv %s373
        %v375 = vmul.f32 %v374, %v274
        %v376 = vmul.f32 %v374, %v275
        %v377 = vmul.f32 %v374, %v276
        %vm381 = vcmask 1045504
        %v382 = vrot.slane %v375, 2
        %v383 = vrot.slane %v376, 2
        %v384 = vsel %vm381, %v382, %v383
        %v385 = vrot.slane %v377, 2
        %v386 = vsel %vm381, %v383, %v385
        %v389 = vadd.f32 %v371, %v384
        %v390 = vadd.f32 %v372, %v386
        %s391 = sld [smem:[#allocation2 + $0x7]]
        %v392 = vstv %s391
        %v393 = vmul.f32 %v392, %v274
        %v394 = vmul.f32 %v392, %v275
        %v395 = vmul.f32 %v392, %v276
        %v399 = vrot.slane %v393, 2
        %v400 = vrot.slane %v394, 2
        %v401 = vsel %vm381, %v399, %v400
        %v402 = vrot.slane %v395, 2
        %v403 = vsel %vm381, %v400, %v402
        %404 = vrot.lane.b32.xlu0 %v401, 127
        %v405 = vpop.permute.xlu0 %404
        %406 = vrot.lane.b32.xlu0 %v403, 127
        %v407 = vpop.permute.xlu0 %406
        %v410 = vadd.f32 %v389, %v405
        %v411 = vadd.f32 %v390, %v407
        %s412 = sld [smem:[#allocation2 + $0x8]]
        %v413 = vstv %s412
        %v414 = vmul.f32 %v413, %v274
        %v415 = vmul.f32 %v413, %v275
        %v416 = vmul.f32 %v413, %v276
        %v420 = vrot.slane %v414, 2
        %v421 = vrot.slane %v415, 2
        %v422 = vsel %vm381, %v420, %v421
        %v423 = vrot.slane %v416, 2
        %v424 = vsel %vm381, %v421, %v423
        %425 = vrot.lane.b32.xlu0 %v422, 126
        %v426 = vpop.permute.xlu0 %425
        %427 = vrot.lane.b32.xlu0 %v424, 126
        %v428 = vpop.permute.xlu0 %427
        %v431 = vadd.f32 %v410, %v426
        %v432 = vadd.f32 %v411, %v428
        %v433 = vmax.f32 %v431, 0.0
        %v434 = vmax.f32 %v432, 0.0
        %s435 = sld [smem:[#allocation5 + $0x1]]
        %v436 = vstv %s435
        %s437 = sld [smem:[#allocation2 + $0x80]]
        %v438 = vstv %s437
        %v439 = vmul.f32 %v438, %v274
        %v440 = vmul.f32 %v438, %v275
        %v441 = vadd.f32 %v436, %v439
        %v442 = vadd.f32 %v436, %v440
        %s443 = sld [smem:[#allocation2 + $0x81]]
        %v444 = vstv %s443
        %v445 = vmul.f32 %v444, %v274
        %v446 = vmul.f32 %v444, %v275
        %449 = vrot.lane.b32.xlu0 %v445, 127
        %v450 = vpop.permute.xlu0 %449
        %451 = vrot.lane.b32.xlu0 %v446, 127
        %v452 = vpop.permute.xlu0 %451
        %v455 = vadd.f32 %v441, %v450
        %v456 = vadd.f32 %v442, %v452
        %s457 = sld [smem:[#allocation2 + $0x82]]
        %v458 = vstv %s457
        %v459 = vmul.f32 %v458, %v274
        %v460 = vmul.f32 %v458, %v275
        %463 = vrot.lane.b32.xlu0 %v459, 126
        %v464 = vpop.permute.xlu0 %463
        %465 = vrot.lane.b32.xlu0 %v460, 126
        %v466 = vpop.permute.xlu0 %465
        %v469 = vadd.f32 %v455, %v464
        %v470 = vadd.f32 %v456, %v466
        %s471 = sld [smem:[#allocation2 + $0x83]]
        %v472 = vstv %s471
        %v473 = vmul.f32 %v472, %v274
        %v474 = vmul.f32 %v472, %v275
        %v475 = vmul.f32 %v472, %v276
        %v479 = vrot.slane %v473, 1
        %v480 = vrot.slane %v474, 1
        %v481 = vsel %vm321, %v479, %v480
        %v482 = vrot.slane %v475, 1
        %v483 = vsel %vm321, %v480, %v482
        %v486 = vadd.f32 %v469, %v481
        %v487 = vadd.f32 %v470, %v483
        %s488 = sld [smem:[#allocation2 + $0x84]]
        %v489 = vstv %s488
        %v490 = vmul.f32 %v489, %v274
        %v491 = vmul.f32 %v489, %v275
        %v492 = vmul.f32 %v489, %v276
        %v496 = vrot.slane %v490, 1
        %v497 = vrot.slane %v491, 1
        %v498 = vsel %vm321, %v496, %v497
        %v499 = vrot.slane %v492, 1
        %v500 = vsel %vm321, %v497, %v499
        %501 = vrot.lane.b32.xlu0 %v498, 127
        %v502 = vpop.permute.xlu0 %501
        %503 = vrot.lane.b32.xlu0 %v500, 127
        %v504 = vpop.permute.xlu0 %503
        %v507 = vadd.f32 %v486, %v502
        %v508 = vadd.f32 %v487, %v504
        %s509 = sld [smem:[#allocation2 + $0x85]]
        %v510 = vstv %s509
        %v511 = vmul.f32 %v510, %v274
        %v512 = vmul.f32 %v510, %v275
        %v513 = vmul.f32 %v510, %v276
        %v517 = vrot.slane %v511, 1
        %v518 = vrot.slane %v512, 1
        %v519 = vsel %vm321, %v517, %v518
        %v520 = vrot.slane %v513, 1
        %v521 = vsel %vm321, %v518, %v520
        %522 = vrot.lane.b32.xlu0 %v519, 126
        %v523 = vpop.permute.xlu0 %522
        %524 = vrot.lane.b32.xlu0 %v521, 126
        %v525 = vpop.permute.xlu0 %524
        %v528 = vadd.f32 %v507, %v523
        %v529 = vadd.f32 %v508, %v525
        %s530 = sld [smem:[#allocation2 + $0x86]]
        %v531 = vstv %s530
        %v532 = vmul.f32 %v531, %v274
        %v533 = vmul.f32 %v531, %v275
        %v534 = vmul.f32 %v531, %v276
        %v538 = vrot.slane %v532, 2
        %v539 = vrot.slane %v533, 2
        %v540 = vsel %vm381, %v538, %v539
        %v541 = vrot.slane %v534, 2
        %v542 = vsel %vm381, %v539, %v541
        %v545 = vadd.f32 %v528, %v540
        %v546 = vadd.f32 %v529, %v542
        %s547 = sld [smem:[#allocation2 + $0x87]]
        %v548 = vstv %s547
        %v549 = vmul.f32 %v548, %v274
        %v550 = vmul.f32 %v548, %v275
        %v551 = vmul.f32 %v548, %v276
        %v555 = vrot.slane %v549, 2
        %v556 = vrot.slane %v550, 2
        %v557 = vsel %vm381, %v555, %v556
        %v558 = vrot.slane %v551, 2
        %v559 = vsel %vm381, %v556, %v558
        %560 = vrot.lane.b32.xlu0 %v557, 127
        %v561 = vpop.permute.xlu0 %560
        %562 = vrot.lane.b32.xlu0 %v559, 127
        %v563 = vpop.permute.xlu0 %562
        %v566 = vadd.f32 %v545, %v561
        %v567 = vadd.f32 %v546, %v563
        %s568 = sld [smem:[#allocation2 + $0x88]]
        %v569 = vstv %s568
        %v570 = vmul.f32 %v569, %v274
        %v571 = vmul.f32 %v569, %v275
        %v572 = vmul.f32 %v569, %v276
        %v576 = vrot.slane %v570, 2
        %v577 = vrot.slane %v571, 2
        %v578 = vsel %vm381, %v576, %v577
        %v579 = vrot.slane %v572, 2
        %v580 = vsel %vm381, %v577, %v579
        %581 = vrot.lane.b32.xlu0 %v578, 126
        %v582 = vpop.permute.xlu0 %581
        %583 = vrot.lane.b32.xlu0 %v580, 126
        %v584 = vpop.permute.xlu0 %583
        %v587 = vadd.f32 %v566, %v582
        %v588 = vadd.f32 %v567, %v584
        %v589 = vmax.f32 %v587, 0.0
        %v590 = vmax.f32 %v588, 0.0
        %s591 = sld [smem:[#allocation5 + $0x2]]
        %v592 = vstv %s591
        %s593 = sld [smem:[#allocation2 + $0x100]]
        %v594 = vstv %s593
        %v595 = vmul.f32 %v594, %v274
        %v596 = vmul.f32 %v594, %v275
        %v597 = vadd.f32 %v592, %v595
        %v598 = vadd.f32 %v592, %v596
        %s599 = sld [smem:[#allocation2 + $0x101]]
        %v600 = vstv %s599
        %v601 = vmul.f32 %v600, %v274
        %v602 = vmul.f32 %v600, %v275
        %605 = vrot.lane.b32.xlu0 %v601, 127
        %v606 = vpop.permute.xlu0 %605
        %607 = vrot.lane.b32.xlu0 %v602, 127
        %v608 = vpop.permute.xlu0 %607
        %v611 = vadd.f32 %v597, %v606
        %v612 = vadd.f32 %v598, %v608
        %s613 = sld [smem:[#allocation2 + $0x102]]
        %v614 = vstv %s613
        %v615 = vmul.f32 %v614, %v274
        %v616 = vmul.f32 %v614, %v275
        %619 = vrot.lane.b32.xlu0 %v615, 126
        %v620 = vpop.permute.xlu0 %619
        %621 = vrot.lane.b32.xlu0 %v616, 126
        %v622 = vpop.permute.xlu0 %621
        %v625 = vadd.f32 %v611, %v620
        %v626 = vadd.f32 %v612, %v622
        %s627 = sld [smem:[#allocation2 + $0x103]]
        %v628 = vstv %s627
        %v629 = vmul.f32 %v628, %v274
        %v630 = vmul.f32 %v628, %v275
        %v631 = vmul.f32 %v628, %v276
        %v635 = vrot.slane %v629, 1
        %v636 = vrot.slane %v630, 1
        %v637 = vsel %vm321, %v635, %v636
        %v638 = vrot.slane %v631, 1
        %v639 = vsel %vm321, %v636, %v638
        %v642 = vadd.f32 %v625, %v637
        %v643 = vadd.f32 %v626, %v639
        %s644 = sld [smem:[#allocation2 + $0x104]]
        %v645 = vstv %s644
        %v646 = vmul.f32 %v645, %v274
        %v647 = vmul.f32 %v645, %v275
        %v648 = vmul.f32 %v645, %v276
        %v652 = vrot.slane %v646, 1
        %v653 = vrot.slane %v647, 1
        %v654 = vsel %vm321, %v652, %v653
        %v655 = vrot.slane %v648, 1
        %v656 = vsel %vm321, %v653, %v655
        %657 = vrot.lane.b32.xlu0 %v654, 127
        %v658 = vpop.permute.xlu0 %657
        %659 = vrot.lane.b32.xlu0 %v656, 127
        %v660 = vpop.permute.xlu0 %659
        %v663 = vadd.f32 %v642, %v658
        %v664 = vadd.f32 %v643, %v660
        %s665 = sld [smem:[#allocation2 + $0x105]]
        %v666 = vstv %s665
        %v667 = vmul.f32 %v666, %v274
        %v668 = vmul.f32 %v666, %v275
        %v669 = vmul.f32 %v666, %v276
        %v673 = vrot.slane %v667, 1
        %v674 = vrot.slane %v668, 1
        %v675 = vsel %vm321, %v673, %v674
        %v676 = vrot.slane %v669, 1
        %v677 = vsel %vm321, %v674, %v676
        %678 = vrot.lane.b32.xlu0 %v675, 126
        %v679 = vpop.permute.xlu0 %678
        %680 = vrot.lane.b32.xlu0 %v677, 126
        %v681 = vpop.permute.xlu0 %680
        %v684 = vadd.f32 %v663, %v679
        %v685 = vadd.f32 %v664, %v681
        %s686 = sld [smem:[#allocation2 + $0x106]]
        %v687 = vstv %s686
        %v688 = vmul.f32 %v687, %v274
        %v689 = vmul.f32 %v687, %v275
        %v690 = vmul.f32 %v687, %v276
        %v694 = vrot.slane %v688, 2
        %v695 = vrot.slane %v689, 2
        %v696 = vsel %vm381, %v694, %v695
        %v697 = vrot.slane %v690, 2
        %v698 = vsel %vm381, %v695, %v697
        %v701 = vadd.f32 %v684, %v696
        %v702 = vadd.f32 %v685, %v698
        %s703 = sld [smem:[#allocation2 + $0x107]]
        %v704 = vstv %s703
        %v705 = vmul.f32 %v704, %v274
        %v706 = vmul.f32 %v704, %v275
        %v707 = vmul.f32 %v704, %v276
        %v711 = vrot.slane %v705, 2
        %v712 = vrot.slane %v706, 2
        %v713 = vsel %vm381, %v711, %v712
        %v714 = vrot.slane %v707, 2
        %v715 = vsel %vm381, %v712, %v714
        %716 = vrot.lane.b32.xlu0 %v713, 127
        %v717 = vpop.permute.xlu0 %716
        %718 = vrot.lane.b32.xlu0 %v715, 127
        %v719 = vpop.permute.xlu0 %718
        %v722 = vadd.f32 %v701, %v717
        %v723 = vadd.f32 %v702, %v719
        %s724 = sld [smem:[#allocation2 + $0x108]]
        %v725 = vstv %s724
        %v726 = vmul.f32 %v725, %v274
        %v727 = vmul.f32 %v725, %v275
        %v728 = vmul.f32 %v725, %v276
        %v732 = vrot.slane %v726, 2
        %v733 = vrot.slane %v727, 2
        %v734 = vsel %vm381, %v732, %v733
        %v735 = vrot.slane %v728, 2
        %v736 = vsel %vm381, %v733, %v735
        %737 = vrot.lane.b32.xlu0 %v734, 126
        %v738 = vpop.permute.xlu0 %737
        %739 = vrot.lane.b32.xlu0 %v736, 126
        %v740 = vpop.permute.xlu0 %739
        %v743 = vadd.f32 %v722, %v738
        %v744 = vadd.f32 %v723, %v740
        %v745 = vmax.f32 %v743, 0.0
        %v746 = vmax.f32 %v744, 0.0
        %s747 = sld [smem:[#allocation5 + $0x3]]
        %v748 = vstv %s747
        %s749 = sld [smem:[#allocation2 + $0x180]]
        %v750 = vstv %s749
        %v751 = vmul.f32 %v750, %v274
        %v752 = vmul.f32 %v750, %v275
        %v753 = vadd.f32 %v748, %v751
        %v754 = vadd.f32 %v748, %v752
        %s755 = sld [smem:[#allocation2 + $0x181]]
        %v756 = vstv %s755
        %v757 = vmul.f32 %v756, %v274
        %v758 = vmul.f32 %v756, %v275
        %761 = vrot.lane.b32.xlu0 %v757, 127
        %v762 = vpop.permute.xlu0 %761
        %763 = vrot.lane.b32.xlu0 %v758, 127
        %v764 = vpop.permute.xlu0 %763
        %v767 = vadd.f32 %v753, %v762
        %v768 = vadd.f32 %v754, %v764
        %s769 = sld [smem:[#allocation2 + $0x182]]
        %v770 = vstv %s769
        %v771 = vmul.f32 %v770, %v274
        %v772 = vmul.f32 %v770, %v275
        %775 = vrot.lane.b32.xlu0 %v771, 126
        %v776 = vpop.permute.xlu0 %775
        %777 = vrot.lane.b32.xlu0 %v772, 126
        %v778 = vpop.permute.xlu0 %777
        %v781 = vadd.f32 %v767, %v776
        %v782 = vadd.f32 %v768, %v778
        %s783 = sld [smem:[#allocation2 + $0x183]]
        %v784 = vstv %s783
        %v785 = vmul.f32 %v784, %v274
        %v786 = vmul.f32 %v784, %v275
        %v787 = vmul.f32 %v784, %v276
        %v791 = vrot.slane %v785, 1
        %v792 = vrot.slane %v786, 1
        %v793 = vsel %vm321, %v791, %v792
        %v794 = vrot.slane %v787, 1
        %v795 = vsel %vm321, %v792, %v794
        %v798 = vadd.f32 %v781, %v793
        %v799 = vadd.f32 %v782, %v795
        %s800 = sld [smem:[#allocation2 + $0x184]]
        %v801 = vstv %s800
        %v802 = vmul.f32 %v801, %v274
        %v803 = vmul.f32 %v801, %v275
        %v804 = vmul.f32 %v801, %v276
        %v808 = vrot.slane %v802, 1
        %v809 = vrot.slane %v803, 1
        %v810 = vsel %vm321, %v808, %v809
        %v811 = vrot.slane %v804, 1
        %v812 = vsel %vm321, %v809, %v811
        %813 = vrot.lane.b32.xlu0 %v810, 127
        %v814 = vpop.permute.xlu0 %813
        %815 = vrot.lane.b32.xlu0 %v812, 127
        %v816 = vpop.permute.xlu0 %815
        %v819 = vadd.f32 %v798, %v814
        %v820 = vadd.f32 %v799, %v816
        %s821 = sld [smem:[#allocation2 + $0x185]]
        %v822 = vstv %s821
        %v823 = vmul.f32 %v822, %v274
        %v824 = vmul.f32 %v822, %v275
        %v825 = vmul.f32 %v822, %v276
        %v829 = vrot.slane %v823, 1
        %v830 = vrot.slane %v824, 1
        %v831 = vsel %vm321, %v829, %v830
        %v832 = vrot.slane %v825, 1
        %v833 = vsel %vm321, %v830, %v832
        %834 = vrot.lane.b32.xlu0 %v831, 126
        %v835 = vpop.permute.xlu0 %834
        %836 = vrot.lane.b32.xlu0 %v833, 126
        %v837 = vpop.permute.xlu0 %836
        %v840 = vadd.f32 %v819, %v835
        %v841 = vadd.f32 %v820, %v837
        %s842 = sld [smem:[#allocation2 + $0x186]]
        %v843 = vstv %s842
        %v844 = vmul.f32 %v843, %v274
        %v845 = vmul.f32 %v843, %v275
        %v846 = vmul.f32 %v843, %v276
        %v850 = vrot.slane %v844, 2
        %v851 = vrot.slane %v845, 2
        %v852 = vsel %vm381, %v850, %v851
        %v853 = vrot.slane %v846, 2
        %v854 = vsel %vm381, %v851, %v853
        %v857 = vadd.f32 %v840, %v852
        %v858 = vadd.f32 %v841, %v854
        %s859 = sld [smem:[#allocation2 + $0x187]]
        %v860 = vstv %s859
        %v861 = vmul.f32 %v860, %v274
        %v862 = vmul.f32 %v860, %v275
        %v863 = vmul.f32 %v860, %v276
        %v867 = vrot.slane %v861, 2
        %v868 = vrot.slane %v862, 2
        %v869 = vsel %vm381, %v867, %v868
        %v870 = vrot.slane %v863, 2
        %v871 = vsel %vm381, %v868, %v870
        %872 = vrot.lane.b32.xlu0 %v869, 127
        %v873 = vpop.permute.xlu0 %872
        %874 = vrot.lane.b32.xlu0 %v871, 127
        %v875 = vpop.permute.xlu0 %874
        %v878 = vadd.f32 %v857, %v873
        %v879 = vadd.f32 %v858, %v875
        %s880 = sld [smem:[#allocation2 + $0x188]]
        %v881 = vstv %s880
        %v882 = vmul.f32 %v881, %v274
        %v883 = vmul.f32 %v881, %v275
        %v884 = vmul.f32 %v881, %v276
        %v888 = vrot.slane %v882, 2
        %v889 = vrot.slane %v883, 2
        %v890 = vsel %vm381, %v888, %v889
        %v891 = vrot.slane %v884, 2
        %v892 = vsel %vm381, %v889, %v891
        %893 = vrot.lane.b32.xlu0 %v890, 126
        %v894 = vpop.permute.xlu0 %893
        %895 = vrot.lane.b32.xlu0 %v892, 126
        %v896 = vpop.permute.xlu0 %895
        %v899 = vadd.f32 %v878, %v894
        %v900 = vadd.f32 %v879, %v896
        %v901 = vmax.f32 %v899, 0.0
        %v902 = vmax.f32 %v900, 0.0
        %s903 = sld [smem:[#allocation8]]
        %v904 = vstv %s903
        %s905 = sld [smem:[#allocation8 + $0x1]]
        %v906 = vstv %s905
        %s907 = sld [smem:[#allocation8 + $0x2]]
        %v908 = vstv %s907
        %s909 = sld [smem:[#allocation8 + $0x3]]
        %v910 = vstv %s909
        %s911 = sld [smem:[#allocation8 + $0x4]]
        %v912 = vstv %s911
        %s913 = sld [smem:[#allocation8 + $0x5]]
        %v914 = vstv %s913
        %s915 = sld [smem:[#allocation8 + $0x6]]
        %v916 = vstv %s915
        %s917 = sld [smem:[#allocation8 + $0x7]]
        %v918 = vstv %s917
        %s919 = sld [smem:[#allocation7]]
        %v920 = vstv %s919
        %v921 = vmul.f32 %v920, %v433
        %v922 = vmul.f32 %v920, %v434
        %v923 = vadd.f32 %v904, %v921
        %v924 = vadd.f32 %v904, %v922
        %s925 = sld [smem:[#allocation7 + $0x80]]
        %v926 = vstv %s925
        %v927 = vmul.f32 %v926, %v433
        %v928 = vmul.f32 %v926, %v434
        %v929 = vadd.f32 %v906, %v927
        %v930 = vadd.f32 %v906, %v928
        %s931 = sld [smem:[#allocation7 + $0x100]]
        %v932 = vstv %s931
        %v933 = vmul.f32 %v932, %v433
        %v934 = vmul.f32 %v932, %v434
        %v935 = vadd.f32 %v908, %v933
        %v936 = vadd.f32 %v908, %v934
        %s937 = sld [smem:[#allocation7 + $0x180]]
        %v938 = vstv %s937
        %v939 = vmul.f32 %v938, %v433
        %v940 = vmul.f32 %v938, %v434
        %v941 = vadd.f32 %v910, %v939
        %v942 = vadd.f32 %v910, %v940
        %s943 = sld [smem:[#allocation7 + $0x200]]
        %v944 = vstv %s943
        %v945 = vmul.f32 %v944, %v433
        %v946 = vmul.f32 %v944, %v434
        %v947 = vadd.f32 %v912, %v945
        %v948 = vadd.f32 %v912, %v946
        %s949 = sld [smem:[#allocation7 + $0x280]]
        %v950 = vstv %s949
        %v951 = vmul.f32 %v950, %v433
        %v952 = vmul.f32 %v950, %v434
        %v953 = vadd.f32 %v914, %v951
        %v954 = vadd.f32 %v914, %v952
        %s955 = sld [smem:[#allocation7 + $0x300]]
        %v956 = vstv %s955
        %v957 = vmul.f32 %v956, %v433
        %v958 = vmul.f32 %v956, %v434
        %v959 = vadd.f32 %v916, %v957
        %v960 = vadd.f32 %v916, %v958
        %s961 = sld [smem:[#allocation7 + $0x380]]
        %v962 = vstv %s961
        %v963 = vmul.f32 %v962, %v433
        %v964 = vmul.f32 %v962, %v434
        %v965 = vadd.f32 %v918, %v963
        %v966 = vadd.f32 %v918, %v964
        %s967 = sld [smem:[#allocation7 + $0x1]]
        %v968 = vstv %s967
        %v969 = vmul.f32 %v968, %v433
        %v970 = vmul.f32 %v968, %v434
        %973 = vrot.lane.b32.xlu0 %v969, 127
        %v974 = vpop.permute.xlu0 %973
        %975 = vrot.lane.b32.xlu0 %v970, 127
        %v976 = vpop.permute.xlu0 %975
        %v979 = vadd.f32 %v923, %v974
        %v980 = vadd.f32 %v924, %v976
        %s981 = sld [smem:[#allocation7 + $0x81]]
        %v982 = vstv %s981
        %v983 = vmul.f32 %v982, %v433
        %v984 = vmul.f32 %v982, %v434
        %987 = vrot.lane.b32.xlu0 %v983, 127
        %v988 = vpop.permute.xlu0 %987
        %989 = vrot.lane.b32.xlu0 %v984, 127
        %v990 = vpop.permute.xlu0 %989
        %v993 = vadd.f32 %v929, %v988
        %v994 = vadd.f32 %v930, %v990
        %s995 = sld [smem:[#allocation7 + $0x101]]
        %v996 = vstv %s995
        %v997 = vmul.f32 %v996, %v433
        %v998 = vmul.f32 %v996, %v434
        %1001 = vrot.lane.b32.xlu0 %v997, 127
        %v1002 = vpop.permute.xlu0 %1001
        %1003 = vrot.lane.b32.xlu0 %v998, 127
        %v1004 = vpop.permute.xlu0 %1003
        %v1007 = vadd.f32 %v935, %v1002
        %v1008 = vadd.f32 %v936, %v1004
        %s1009 = sld [smem:[#allocation7 + $0x181]]
        %v1010 = vstv %s1009
        %v1011 = vmul.f32 %v1010, %v433
        %v1012 = vmul.f32 %v1010, %v434
        %1015 = vrot.lane.b32.xlu0 %v1011, 127
        %v1016 = vpop.permute.xlu0 %1015
        %1017 = vrot.lane.b32.xlu0 %v1012, 127
        %v1018 = vpop.permute.xlu0 %1017
        %v1021 = vadd.f32 %v941, %v1016
        %v1022 = vadd.f32 %v942, %v1018
        %s1023 = sld [smem:[#allocation7 + $0x201]]
        %v1024 = vstv %s1023
        %v1025 = vmul.f32 %v1024, %v433
        %v1026 = vmul.f32 %v1024, %v434
        %1029 = vrot.lane.b32.xlu0 %v1025, 127
        %v1030 = vpop.permute.xlu0 %1029
        %1031 = vrot.lane.b32.xlu0 %v1026, 127
        %v1032 = vpop.permute.xlu0 %1031
        %v1035 = vadd.f32 %v947, %v1030
        %v1036 = vadd.f32 %v948, %v1032
        %s1037 = sld [smem:[#allocation7 + $0x281]]
        %v1038 = vstv %s1037
        %v1039 = vmul.f32 %v1038, %v433
        %v1040 = vmul.f32 %v1038, %v434
        %1043 = vrot.lane.b32.xlu0 %v1039, 127
        %v1044 = vpop.permute.xlu0 %1043
        %1045 = vrot.lane.b32.xlu0 %v1040, 127
        %v1046 = vpop.permute.xlu0 %1045
        %v1049 = vadd.f32 %v953, %v1044
        %v1050 = vadd.f32 %v954, %v1046
        %s1051 = sld [smem:[#allocation7 + $0x301]]
        %v1052 = vstv %s1051
        %v1053 = vmul.f32 %v1052, %v433
        %v1054 = vmul.f32 %v1052, %v434
        %1057 = vrot.lane.b32.xlu0 %v1053, 127
        %v1058 = vpop.permute.xlu0 %1057
        %1059 = vrot.lane.b32.xlu0 %v1054, 127
        %v1060 = vpop.permute.xlu0 %1059
        %v1063 = vadd.f32 %v959, %v1058
        %v1064 = vadd.f32 %v960, %v1060
        %s1065 = sld [smem:[#allocation7 + $0x381]]
        %v1066 = vstv %s1065
        %v1067 = vmul.f32 %v1066, %v433
        %v1068 = vmul.f32 %v1066, %v434
        %1071 = vrot.lane.b32.xlu0 %v1067, 127
        %v1072 = vpop.permute.xlu0 %1071
        %1073 = vrot.lane.b32.xlu0 %v1068, 127
        %v1074 = vpop.permute.xlu0 %1073
        %v1077 = vadd.f32 %v965, %v1072
        %v1078 = vadd.f32 %v966, %v1074
        %s1079 = sld [smem:[#allocation7 + $0x2]]
        %v1080 = vstv %s1079
        %v1081 = vmul.f32 %v1080, %v433
        %v1082 = vmul.f32 %v1080, %v434
        %1085 = vrot.lane.b32.xlu0 %v1081, 126
        %v1086 = vpop.permute.xlu0 %1085
        %1087 = vrot.lane.b32.xlu0 %v1082, 126
        %v1088 = vpop.permute.xlu0 %1087
        %v1091 = vadd.f32 %v979, %v1086
        %v1092 = vadd.f32 %v980, %v1088
        %s1093 = sld [smem:[#allocation7 + $0x82]]
        %v1094 = vstv %s1093
        %v1095 = vmul.f32 %v1094, %v433
        %v1096 = vmul.f32 %v1094, %v434
        %1099 = vrot.lane.b32.xlu0 %v1095, 126
        %v1100 = vpop.permute.xlu0 %1099
        %1101 = vrot.lane.b32.xlu0 %v1096, 126
        %v1102 = vpop.permute.xlu0 %1101
        %v1105 = vadd.f32 %v993, %v1100
        %v1106 = vadd.f32 %v994, %v1102
        %s1107 = sld [smem:[#allocation7 + $0x102]]
        %v1108 = vstv %s1107
        %v1109 = vmul.f32 %v1108, %v433
        %v1110 = vmul.f32 %v1108, %v434
        %1113 = vrot.lane.b32.xlu0 %v1109, 126
        %v1114 = vpop.permute.xlu0 %1113
        %1115 = vrot.lane.b32.xlu0 %v1110, 126
        %v1116 = vpop.permute.xlu0 %1115
        %v1119 = vadd.f32 %v1007, %v1114
        %v1120 = vadd.f32 %v1008, %v1116
        %s1121 = sld [smem:[#allocation7 + $0x182]]
        %v1122 = vstv %s1121
        %v1123 = vmul.f32 %v1122, %v433
        %v1124 = vmul.f32 %v1122, %v434
        %1127 = vrot.lane.b32.xlu0 %v1123, 126
        %v1128 = vpop.permute.xlu0 %1127
        %1129 = vrot.lane.b32.xlu0 %v1124, 126
        %v1130 = vpop.permute.xlu0 %1129
        %v1133 = vadd.f32 %v1021, %v1128
        %v1134 = vadd.f32 %v1022, %v1130
        %s1135 = sld [smem:[#allocation7 + $0x202]]
        %v1136 = vstv %s1135
        %v1137 = vmul.f32 %v1136, %v433
        %v1138 = vmul.f32 %v1136, %v434
        %1141 = vrot.lane.b32.xlu0 %v1137, 126
        %v1142 = vpop.permute.xlu0 %1141
        %1143 = vrot.lane.b32.xlu0 %v1138, 126
        %v1144 = vpop.permute.xlu0 %1143
        %v1147 = vadd.f32 %v1035, %v1142
        %v1148 = vadd.f32 %v1036, %v1144
        %s1149 = sld [smem:[#allocation7 + $0x282]]
        %v1150 = vstv %s1149
        %v1151 = vmul.f32 %v1150, %v433
        %v1152 = vmul.f32 %v1150, %v434
        %1155 = vrot.lane.b32.xlu0 %v1151, 126
        %v1156 = vpop.permute.xlu0 %1155
        %1157 = vrot.lane.b32.xlu0 %v1152, 126
        %v1158 = vpop.permute.xlu0 %1157
        %v1161 = vadd.f32 %v1049, %v1156
        %v1162 = vadd.f32 %v1050, %v1158
        %s1163 = sld [smem:[#allocation7 + $0x302]]
        %v1164 = vstv %s1163
        %v1165 = vmul.f32 %v1164, %v433
        %v1166 = vmul.f32 %v1164, %v434
        %1169 = vrot.lane.b32.xlu0 %v1165, 126
        %v1170 = vpop.permute.xlu0 %1169
        %1171 = vrot.lane.b32.xlu0 %v1166, 126
        %v1172 = vpop.permute.xlu0 %1171
        %v1175 = vadd.f32 %v1063, %v1170
        %v1176 = vadd.f32 %v1064, %v1172
        %s1177 = sld [smem:[#allocation7 + $0x382]]
        %v1178 = vstv %s1177
        %v1179 = vmul.f32 %v1178, %v433
        %v1180 = vmul.f32 %v1178, %v434
        %1183 = vrot.lane.b32.xlu0 %v1179, 126
        %v1184 = vpop.permute.xlu0 %1183
        %1185 = vrot.lane.b32.xlu0 %v1180, 126
        %v1186 = vpop.permute.xlu0 %1185
        %v1189 = vadd.f32 %v1077, %v1184
        %v1190 = vadd.f32 %v1078, %v1186
        %s1191 = sld [smem:[#allocation7 + $0x3]]
        %v1192 = vstv %s1191
        %v1193 = vmul.f32 %v1192, %v433
        %v1194 = vmul.f32 %v1192, %v434
        %v1197 = vrot.slane %v1193, 1
        %v1198 = vrot.slane %v1194, 1
        %v1199 = vsel %vm321, %v1197, %v1198
        %v1202 = vadd.f32 %v1091, %v1199
        %v1203 = vadd.f32 %v1092, %v1198
        %s1204 = sld [smem:[#allocation7 + $0x83]]
        %v1205 = vstv %s1204
        %v1206 = vmul.f32 %v1205, %v433
        %v1207 = vmul.f32 %v1205, %v434
        %v1210 = vrot.slane %v1206, 1
        %v1211 = vrot.slane %v1207, 1
        %v1212 = vsel %vm321, %v1210, %v1211
        %v1215 = vadd.f32 %v1105, %v1212
        %v1216 = vadd.f32 %v1106, %v1211
        %s1217 = sld [smem:[#allocation7 + $0x103]]
        %v1218 = vstv %s1217
        %v1219 = vmul.f32 %v1218, %v433
        %v1220 = vmul.f32 %v1218, %v434
        %v1223 = vrot.slane %v1219, 1
        %v1224 = vrot.slane %v1220, 1
        %v1225 = vsel %vm321, %v1223, %v1224
        %v1228 = vadd.f32 %v1119, %v1225
        %v1229 = vadd.f32 %v1120, %v1224
        %s1230 = sld [smem:[#allocation7 + $0x183]]
        %v1231 = vstv %s1230
        %v1232 = vmul.f32 %v1231, %v433
        %v1233 = vmul.f32 %v1231, %v434
        %v1236 = vrot.slane %v1232, 1
        %v1237 = vrot.slane %v1233, 1
        %v1238 = vsel %vm321, %v1236, %v1237
        %v1241 = vadd.f32 %v1133, %v1238
        %v1242 = vadd.f32 %v1134, %v1237
        %s1243 = sld [smem:[#allocation7 + $0x203]]
        %v1244 = vstv %s1243
        %v1245 = vmul.f32 %v1244, %v433
        %v1246 = vmul.f32 %v1244, %v434
        %v1249 = vrot.slane %v1245, 1
        %v1250 = vrot.slane %v1246, 1
        %v1251 = vsel %vm321, %v1249, %v1250
        %v1254 = vadd.f32 %v1147, %v1251
        %v1255 = vadd.f32 %v1148, %v1250
        %s1256 = sld [smem:[#allocation7 + $0x283]]
        %v1257 = vstv %s1256
        %v1258 = vmul.f32 %v1257, %v433
        %v1259 = vmul.f32 %v1257, %v434
        %v1262 = vrot.slane %v1258, 1
        %v1263 = vrot.slane %v1259, 1
        %v1264 = vsel %vm321, %v1262, %v1263
        %v1267 = vadd.f32 %v1161, %v1264
        %v1268 = vadd.f32 %v1162, %v1263
        %s1269 = sld [smem:[#allocation7 + $0x303]]
        %v1270 = vstv %s1269
        %v1271 = vmul.f32 %v1270, %v433
        %v1272 = vmul.f32 %v1270, %v434
        %v1275 = vrot.slane %v1271, 1
        %v1276 = vrot.slane %v1272, 1
        %v1277 = vsel %vm321, %v1275, %v1276
        %v1280 = vadd.f32 %v1175, %v1277
        %v1281 = vadd.f32 %v1176, %v1276
        %s1282 = sld [smem:[#allocation7 + $0x383]]
        %v1283 = vstv %s1282
        %v1284 = vmul.f32 %v1283, %v433
        %v1285 = vmul.f32 %v1283, %v434
        %v1288 = vrot.slane %v1284, 1
        %v1289 = vrot.slane %v1285, 1
        %v1290 = vsel %vm321, %v1288, %v1289
        %v1293 = vadd.f32 %v1189, %v1290
        %v1294 = vadd.f32 %v1190, %v1289
        %s1295 = sld [smem:[#allocation7 + $0x4]]
        %v1296 = vstv %s1295
        %v1297 = vmul.f32 %v1296, %v433
        %v1298 = vmul.f32 %v1296, %v434
        %v1301 = vrot.slane %v1297, 1
        %v1302 = vrot.slane %v1298, 1
        %v1303 = vsel %vm321, %v1301, %v1302
        %1304 = vrot.lane.b32.xlu0 %v1303, 127
        %v1305 = vpop.permute.xlu0 %1304
        %1306 = vrot.lane.b32.xlu0 %v1302, 127
        %v1307 = vpop.permute.xlu0 %1306
        %v1310 = vadd.f32 %v1202, %v1305
        %v1311 = vadd.f32 %v1203, %v1307
        %s1312 = sld [smem:[#allocation7 + $0x84]]
        %v1313 = vstv %s1312
        %v1314 = vmul.f32 %v1313, %v433
        %v1315 = vmul.f32 %v1313, %v434
        %v1318 = vrot.slane %v1314, 1
        %v1319 = vrot.slane %v1315, 1
        %v1320 = vsel %vm321, %v1318, %v1319
        %1321 = vrot.lane.b32.xlu0 %v1320, 127
        %v1322 = vpop.permute.xlu0 %1321
        %1323 = vrot.lane.b32.xlu0 %v1319, 127
        %v1324 = vpop.permute.xlu0 %1323
        %v1327 = vadd.f32 %v1215, %v1322
        %v1328 = vadd.f32 %v1216, %v1324
        %s1329 = sld [smem:[#allocation7 + $0x104]]
        %v1330 = vstv %s1329
        %v1331 = vmul.f32 %v1330, %v433
        %v1332 = vmul.f32 %v1330, %v434
        %v1335 = vrot.slane %v1331, 1
        %v1336 = vrot.slane %v1332, 1
        %v1337 = vsel %vm321, %v1335, %v1336
        %1338 = vrot.lane.b32.xlu0 %v1337, 127
        %v1339 = vpop.permute.xlu0 %1338
        %1340 = vrot.lane.b32.xlu0 %v1336, 127
        %v1341 = vpop.permute.xlu0 %1340
        %v1344 = vadd.f32 %v1228, %v1339
        %v1345 = vadd.f32 %v1229, %v1341
        %s1346 = sld [smem:[#allocation7 + $0x184]]
        %v1347 = vstv %s1346
        %v1348 = vmul.f32 %v1347, %v433
        %v1349 = vmul.f32 %v1347, %v434
        %v1352 = vrot.slane %v1348, 1
        %v1353 = vrot.slane %v1349, 1
        %v1354 = vsel %vm321, %v1352, %v1353
        %1355 = vrot.lane.b32.xlu0 %v1354, 127
        %v1356 = vpop.permute.xlu0 %1355
        %1357 = vrot.lane.b32.xlu0 %v1353, 127
        %v1358 = vpop.permute.xlu0 %1357
        %v1361 = vadd.f32 %v1241, %v1356
        %v1362 = vadd.f32 %v1242, %v1358
        %s1363 = sld [smem:[#allocation7 + $0x204]]
        %v1364 = vstv %s1363
        %v1365 = vmul.f32 %v1364, %v433
        %v1366 = vmul.f32 %v1364, %v434
        %v1369 = vrot.slane %v1365, 1
        %v1370 = vrot.slane %v1366, 1
        %v1371 = vsel %vm321, %v1369, %v1370
        %1372 = vrot.lane.b32.xlu0 %v1371, 127
        %v1373 = vpop.permute.xlu0 %1372
        %1374 = vrot.lane.b32.xlu0 %v1370, 127
        %v1375 = vpop.permute.xlu0 %1374
        %v1378 = vadd.f32 %v1254, %v1373
        %v1379 = vadd.f32 %v1255, %v1375
        %s1380 = sld [smem:[#allocation7 + $0x284]]
        %v1381 = vstv %s1380
        %v1382 = vmul.f32 %v1381, %v433
        %v1383 = vmul.f32 %v1381, %v434
        %v1386 = vrot.slane %v1382, 1
        %v1387 = vrot.slane %v1383, 1
        %v1388 = vsel %vm321, %v1386, %v1387
        %1389 = vrot.lane.b32.xlu0 %v1388, 127
        %v1390 = vpop.permute.xlu0 %1389
        %1391 = vrot.lane.b32.xlu0 %v1387, 127
        %v1392 = vpop.permute.xlu0 %1391
        %v1395 = vadd.f32 %v1267, %v1390
        %v1396 = vadd.f32 %v1268, %v1392
        %s1397 = sld [smem:[#allocation7 + $0x304]]
        %v1398 = vstv %s1397
        %v1399 = vmul.f32 %v1398, %v433
        %v1400 = vmul.f32 %v1398, %v434
        %v1403 = vrot.slane %v1399, 1
        %v1404 = vrot.slane %v1400, 1
        %v1405 = vsel %vm321, %v1403, %v1404
        %1406 = vrot.lane.b32.xlu0 %v1405, 127
        %v1407 = vpop.permute.xlu0 %1406
        %1408 = vrot.lane.b32.xlu0 %v1404, 127
        %v1409 = vpop.permute.xlu0 %1408
        %v1412 = vadd.f32 %v1280, %v1407
        %v1413 = vadd.f32 %v1281, %v1409
        %s1414 = sld [smem:[#allocation7 + $0x384]]
        %v1415 = vstv %s1414
        %v1416 = vmul.f32 %v1415, %v433
        %v1417 = vmul.f32 %v1415, %v434
        %v1420 = vrot.slane %v1416, 1
        %v1421 = vrot.slane %v1417, 1
        %v1422 = vsel %vm321, %v1420, %v1421
        %1423 = vrot.lane.b32.xlu0 %v1422, 127
        %v1424 = vpop.permute.xlu0 %1423
        %1425 = vrot.lane.b32.xlu0 %v1421, 127
        %v1426 = vpop.permute.xlu0 %1425
        %v1429 = vadd.f32 %v1293, %v1424
        %v1430 = vadd.f32 %v1294, %v1426
        %s1431 = sld [smem:[#allocation7 + $0x5]]
        %v1432 = vstv %s1431
        %v1433 = vmul.f32 %v1432, %v433
        %v1434 = vmul.f32 %v1432, %v434
        %v1437 = vrot.slane %v1433, 1
        %v1438 = vrot.slane %v1434, 1
        %v1439 = vsel %vm321, %v1437, %v1438
        %1440 = vrot.lane.b32.xlu0 %v1439, 126
        %v1441 = vpop.permute.xlu0 %1440
        %1442 = vrot.lane.b32.xlu0 %v1438, 126
        %v1443 = vpop.permute.xlu0 %1442
        %v1446 = vadd.f32 %v1310, %v1441
        %v1447 = vadd.f32 %v1311, %v1443
        %s1448 = sld [smem:[#allocation7 + $0x85]]
        %v1449 = vstv %s1448
        %v1450 = vmul.f32 %v1449, %v433
        %v1451 = vmul.f32 %v1449, %v434
        %v1454 = vrot.slane %v1450, 1
        %v1455 = vrot.slane %v1451, 1
        %v1456 = vsel %vm321, %v1454, %v1455
        %1457 = vrot.lane.b32.xlu0 %v1456, 126
        %v1458 = vpop.permute.xlu0 %1457
        %1459 = vrot.lane.b32.xlu0 %v1455, 126
        %v1460 = vpop.permute.xlu0 %1459
        %v1463 = vadd.f32 %v1327, %v1458
        %v1464 = vadd.f32 %v1328, %v1460
        %s1465 = sld [smem:[#allocation7 + $0x105]]
        %v1466 = vstv %s1465
        %v1467 = vmul.f32 %v1466, %v433
        %v1468 = vmul.f32 %v1466, %v434
        %v1471 = vrot.slane %v1467, 1
        %v1472 = vrot.slane %v1468, 1
        %v1473 = vsel %vm321, %v1471, %v1472
        %1474 = vrot.lane.b32.xlu0 %v1473, 126
        %v1475 = vpop.permute.xlu0 %1474
        %1476 = vrot.lane.b32.xlu0 %v1472, 126
        %v1477 = vpop.permute.xlu0 %1476
        %v1480 = vadd.f32 %v1344, %v1475
        %v1481 = vadd.f32 %v1345, %v1477
        %s1482 = sld [smem:[#allocation7 + $0x185]]
        %v1483 = vstv %s1482
        %v1484 = vmul.f32 %v1483, %v433
        %v1485 = vmul.f32 %v1483, %v434
        %v1488 = vrot.slane %v1484, 1
        %v1489 = vrot.slane %v1485, 1
        %v1490 = vsel %vm321, %v1488, %v1489
        %1491 = vrot.lane.b32.xlu0 %v1490, 126
        %v1492 = vpop.permute.xlu0 %1491
        %1493 = vrot.lane.b32.xlu0 %v1489, 126
        %v1494 = vpop.permute.xlu0 %1493
        %v1497 = vadd.f32 %v1361, %v1492
        %v1498 = vadd.f32 %v1362, %v1494
        %s1499 = sld [smem:[#allocation7 + $0x205]]
        %v1500 = vstv %s1499
        %v1501 = vmul.f32 %v1500, %v433
        %v1502 = vmul.f32 %v1500, %v434
        %v1505 = vrot.slane %v1501, 1
        %v1506 = vrot.slane %v1502, 1
        %v1507 = vsel %vm321, %v1505, %v1506
        %1508 = vrot.lane.b32.xlu0 %v1507, 126
        %v1509 = vpop.permute.xlu0 %1508
        %1510 = vrot.lane.b32.xlu0 %v1506, 126
        %v1511 = vpop.permute.xlu0 %1510
        %v1514 = vadd.f32 %v1378, %v1509
        %v1515 = vadd.f32 %v1379, %v1511
        %s1516 = sld [smem:[#allocation7 + $0x285]]
        %v1517 = vstv %s1516
        %v1518 = vmul.f32 %v1517, %v433
        %v1519 = vmul.f32 %v1517, %v434
        %v1522 = vrot.slane %v1518, 1
        %v1523 = vrot.slane %v1519, 1
        %v1524 = vsel %vm321, %v1522, %v1523
        %1525 = vrot.lane.b32.xlu0 %v1524, 126
        %v1526 = vpop.permute.xlu0 %1525
        %1527 = vrot.lane.b32.xlu0 %v1523, 126
        %v1528 = vpop.permute.xlu0 %1527
        %v1531 = vadd.f32 %v1395, %v1526
        %v1532 = vadd.f32 %v1396, %v1528
        %s1533 = sld [smem:[#allocation7 + $0x305]]
        %v1534 = vstv %s1533
        %v1535 = vmul.f32 %v1534, %v433
        %v1536 = vmul.f32 %v1534, %v434
        %v1539 = vrot.slane %v1535, 1
        %v1540 = vrot.slane %v1536, 1
        %v1541 = vsel %vm321, %v1539, %v1540
        %1542 = vrot.lane.b32.xlu0 %v1541, 126
        %v1543 = vpop.permute.xlu0 %1542
        %1544 = vrot.lane.b32.xlu0 %v1540, 126
        %v1545 = vpop.permute.xlu0 %1544
        %v1548 = vadd.f32 %v1412, %v1543
        %v1549 = vadd.f32 %v1413, %v1545
        %s1550 = sld [smem:[#allocation7 + $0x385]]
        %v1551 = vstv %s1550
        %v1552 = vmul.f32 %v1551, %v433
        %v1553 = vmul.f32 %v1551, %v434
        %v1556 = vrot.slane %v1552, 1
        %v1557 = vrot.slane %v1553, 1
        %v1558 = vsel %vm321, %v1556, %v1557
        %1559 = vrot.lane.b32.xlu0 %v1558, 126
        %v1560 = vpop.permute.xlu0 %1559
        %1561 = vrot.lane.b32.xlu0 %v1557, 126
        %v1562 = vpop.permute.xlu0 %1561
        %v1565 = vadd.f32 %v1429, %v1560
        %v1566 = vadd.f32 %v1430, %v1562
        %s1567 = sld [smem:[#allocation7 + $0x6]]
        %v1568 = vstv %s1567
        %v1569 = vmul.f32 %v1568, %v433
        %v1570 = vmul.f32 %v1568, %v434
        %v1573 = vrot.slane %v1569, 2
        %v1574 = vrot.slane %v1570, 2
        %v1575 = vsel %vm381, %v1573, %v1574
        %v1578 = vadd.f32 %v1446, %v1575
        %v1579 = vadd.f32 %v1447, %v1574
        %s1580 = sld [smem:[#allocation7 + $0x86]]
        %v1581 = vstv %s1580
        %v1582 = vmul.f32 %v1581, %v433
        %v1583 = vmul.f32 %v1581, %v434
        %v1586 = vrot.slane %v1582, 2
        %v1587 = vrot.slane %v1583, 2
        %v1588 = vsel %vm381, %v1586, %v1587
        %v1591 = vadd.f32 %v1463, %v1588
        %v1592 = vadd.f32 %v1464, %v1587
        %s1593 = sld [smem:[#allocation7 + $0x106]]
        %v1594 = vstv %s1593
        %v1595 = vmul.f32 %v1594, %v433
        %v1596 = vmul.f32 %v1594, %v434
        %v1599 = vrot.slane %v1595, 2
        %v1600 = vrot.slane %v1596, 2
        %v1601 = vsel %vm381, %v1599, %v1600
        %v1604 = vadd.f32 %v1480, %v1601
        %v1605 = vadd.f32 %v1481, %v1600
        %s1606 = sld [smem:[#allocation7 + $0x186]]
        %v1607 = vstv %s1606
        %v1608 = vmul.f32 %v1607, %v433
        %v1609 = vmul.f32 %v1607, %v434
        %v1612 = vrot.slane %v1608, 2
        %v1613 = vrot.slane %v1609, 2
        %v1614 = vsel %vm381, %v1612, %v1613
        %v1617 = vadd.f32 %v1497, %v1614
        %v1618 = vadd.f32 %v1498, %v1613
        %s1619 = sld [smem:[#allocation7 + $0x206]]
        %v1620 = vstv %s1619
        %v1621 = vmul.f32 %v1620, %v433
        %v1622 = vmul.f32 %v1620, %v434
        %v1625 = vrot.slane %v1621, 2
        %v1626 = vrot.slane %v1622, 2
        %v1627 = vsel %vm381, %v1625, %v1626
        %v1630 = vadd.f32 %v1514, %v1627
        %v1631 = vadd.f32 %v1515, %v1626
        %s1632 = sld [smem:[#allocation7 + $0x286]]
        %v1633 = vstv %s1632
        %v1634 = vmul.f32 %v1633, %v433
        %v1635 = vmul.f32 %v1633, %v434
        %v1638 = vrot.slane %v1634, 2
        %v1639 = vrot.slane %v1635, 2
        %v1640 = vsel %vm381, %v1638, %v1639
        %v1643 = vadd.f32 %v1531, %v1640
        %v1644 = vadd.f32 %v1532, %v1639
        %s1645 = sld [smem:[#allocation7 + $0x306]]
        %v1646 = vstv %s1645
        %v1647 = vmul.f32 %v1646, %v433
        %v1648 = vmul.f32 %v1646, %v434
        %v1651 = vrot.slane %v1647, 2
        %v1652 = vrot.slane %v1648, 2
        %v1653 = vsel %vm381, %v1651, %v1652
        %v1656 = vadd.f32 %v1548, %v1653
        %v1657 = vadd.f32 %v1549, %v1652
        %s1658 = sld [smem:[#allocation7 + $0x386]]
        %v1659 = vstv %s1658
        %v1660 = vmul.f32 %v1659, %v433
        %v1661 = vmul.f32 %v1659, %v434
        %v1664 = vrot.slane %v1660, 2
        %v1665 = vrot.slane %v1661, 2
        %v1666 = vsel %vm381, %v1664, %v1665
        %v1669 = vadd.f32 %v1565, %v1666
        %v1670 = vadd.f32 %v1566, %v1665
        %s1671 = sld [smem:[#allocation7 + $0x7]]
        %v1672 = vstv %s1671
        %v1673 = vmul.f32 %v1672, %v433
        %v1674 = vmul.f32 %v1672, %v434
        %v1677 = vrot.slane %v1673, 2
        %v1678 = vrot.slane %v1674, 2
        %v1679 = vsel %vm381, %v1677, %v1678
        %1680 = vrot.lane.b32.xlu0 %v1679, 127
        %v1681 = vpop.permute.xlu0 %1680
        %1682 = vrot.lane.b32.xlu0 %v1678, 127
        %v1683 = vpop.permute.xlu0 %1682
        %v1686 = vadd.f32 %v1578, %v1681
        %v1687 = vadd.f32 %v1579, %v1683
        %s1688 = sld [smem:[#allocation7 + $0x87]]
        %v1689 = vstv %s1688
        %v1690 = vmul.f32 %v1689, %v433
        %v1691 = vmul.f32 %v1689, %v434
        %v1694 = vrot.slane %v1690, 2
        %v1695 = vrot.slane %v1691, 2
        %v1696 = vsel %vm381, %v1694, %v1695
        %1697 = vrot.lane.b32.xlu0 %v1696, 127
        %v1698 = vpop.permute.xlu0 %1697
        %1699 = vrot.lane.b32.xlu0 %v1695, 127
        %v1700 = vpop.permute.xlu0 %1699
        %v1703 = vadd.f32 %v1591, %v1698
        %v1704 = vadd.f32 %v1592, %v1700
        %s1705 = sld [smem:[#allocation7 + $0x107]]
        %v1706 = vstv %s1705
        %v1707 = vmul.f32 %v1706, %v433
        %v1708 = vmul.f32 %v1706, %v434
        %v1711 = vrot.slane %v1707, 2
        %v1712 = vrot.slane %v1708, 2
        %v1713 = vsel %vm381, %v1711, %v1712
        %1714 = vrot.lane.b32.xlu0 %v1713, 127
        %v1715 = vpop.permute.xlu0 %1714
        %1716 = vrot.lane.b32.xlu0 %v1712, 127
        %v1717 = vpop.permute.xlu0 %1716
        %v1720 = vadd.f32 %v1604, %v1715
        %v1721 = vadd.f32 %v1605, %v1717
        %s1722 = sld [smem:[#allocation7 + $0x187]]
        %v1723 = vstv %s1722
        %v1724 = vmul.f32 %v1723, %v433
        %v1725 = vmul.f32 %v1723, %v434
        %v1728 = vrot.slane %v1724, 2
        %v1729 = vrot.slane %v1725, 2
        %v1730 = vsel %vm381, %v1728, %v1729
        %1731 = vrot.lane.b32.xlu0 %v1730, 127
        %v1732 = vpop.permute.xlu0 %1731
        %1733 = vrot.lane.b32.xlu0 %v1729, 127
        %v1734 = vpop.permute.xlu0 %1733
        %v1737 = vadd.f32 %v1617, %v1732
        %v1738 = vadd.f32 %v1618, %v1734
        %s1739 = sld [smem:[#allocation7 + $0x207]]
        %v1740 = vstv %s1739
        %v1741 = vmul.f32 %v1740, %v433
        %v1742 = vmul.f32 %v1740, %v434
        %v1745 = vrot.slane %v1741, 2
        %v1746 = vrot.slane %v1742, 2
        %v1747 = vsel %vm381, %v1745, %v1746
        %1748 = vrot.lane.b32.xlu0 %v1747, 127
        %v1749 = vpop.permute.xlu0 %1748
        %1750 = vrot.lane.b32.xlu0 %v1746, 127
        %v1751 = vpop.permute.xlu0 %1750
        %v1754 = vadd.f32 %v1630, %v1749
        %v1755 = vadd.f32 %v1631, %v1751
        %s1756 = sld [smem:[#allocation7 + $0x287]]
        %v1757 = vstv %s1756
        %v1758 = vmul.f32 %v1757, %v433
        %v1759 = vmul.f32 %v1757, %v434
        %v1762 = vrot.slane %v1758, 2
        %v1763 = vrot.slane %v1759, 2
        %v1764 = vsel %vm381, %v1762, %v1763
        %1765 = vrot.lane.b32.xlu0 %v1764, 127
        %v1766 = vpop.permute.xlu0 %1765
        %1767 = vrot.lane.b32.xlu0 %v1763, 127
        %v1768 = vpop.permute.xlu0 %1767
        %v1771 = vadd.f32 %v1643, %v1766
        %v1772 = vadd.f32 %v1644, %v1768
        %s1773 = sld [smem:[#allocation7 + $0x307]]
        %v1774 = vstv %s1773
        %v1775 = vmul.f32 %v1774, %v433
        %v1776 = vmul.f32 %v1774, %v434
        %v1779 = vrot.slane %v1775, 2
        %v1780 = vrot.slane %v1776, 2
        %v1781 = vsel %vm381, %v1779, %v1780
        %1782 = vrot.lane.b32.xlu0 %v1781, 127
        %v1783 = vpop.permute.xlu0 %1782
        %1784 = vrot.lane.b32.xlu0 %v1780, 127
        %v1785 = vpop.permute.xlu0 %1784
        %v1788 = vadd.f32 %v1656, %v1783
        %v1789 = vadd.f32 %v1657, %v1785
        %s1790 = sld [smem:[#allocation7 + $0x387]]
        %v1791 = vstv %s1790
        %v1792 = vmul.f32 %v1791, %v433
        %v1793 = vmul.f32 %v1791, %v434
        %v1796 = vrot.slane %v1792, 2
        %v1797 = vrot.slane %v1793, 2
        %v1798 = vsel %vm381, %v1796, %v1797
        %1799 = vrot.lane.b32.xlu0 %v1798, 127
        %v1800 = vpop.permute.xlu0 %1799
        %1801 = vrot.lane.b32.xlu0 %v1797, 127
        %v1802 = vpop.permute.xlu0 %1801
        %v1805 = vadd.f32 %v1669, %v1800
        %v1806 = vadd.f32 %v1670, %v1802
        %s1807 = sld [smem:[#allocation7 + $0x8]]
        %v1808 = vstv %s1807
        %v1809 = vmul.f32 %v1808, %v433
        %v1810 = vmul.f32 %v1808, %v434
        %v1813 = vrot.slane %v1809, 2
        %v1814 = vrot.slane %v1810, 2
        %v1815 = vsel %vm381, %v1813, %v1814
        %1816 = vrot.lane.b32.xlu0 %v1815, 126
        %v1817 = vpop.permute.xlu0 %1816
        %1818 = vrot.lane.b32.xlu0 %v1814, 126
        %v1819 = vpop.permute.xlu0 %1818
        %v1822 = vadd.f32 %v1686, %v1817
        %v1823 = vadd.f32 %v1687, %v1819
        %s1824 = sld [smem:[#allocation7 + $0x88]]
        %v1825 = vstv %s1824
        %v1826 = vmul.f32 %v1825, %v433
        %v1827 = vmul.f32 %v1825, %v434
        %v1830 = vrot.slane %v1826, 2
        %v1831 = vrot.slane %v1827, 2
        %v1832 = vsel %vm381, %v1830, %v1831
        %1833 = vrot.lane.b32.xlu0 %v1832, 126
        %v1834 = vpop.permute.xlu0 %1833
        %1835 = vrot.lane.b32.xlu0 %v1831, 126
        %v1836 = vpop.permute.xlu0 %1835
        %v1839 = vadd.f32 %v1703, %v1834
        %v1840 = vadd.f32 %v1704, %v1836
        %s1841 = sld [smem:[#allocation7 + $0x108]]
        %v1842 = vstv %s1841
        %v1843 = vmul.f32 %v1842, %v433
        %v1844 = vmul.f32 %v1842, %v434
        %v1847 = vrot.slane %v1843, 2
        %v1848 = vrot.slane %v1844, 2
        %v1849 = vsel %vm381, %v1847, %v1848
        %1850 = vrot.lane.b32.xlu0 %v1849, 126
        %v1851 = vpop.permute.xlu0 %1850
        %1852 = vrot.lane.b32.xlu0 %v1848, 126
        %v1853 = vpop.permute.xlu0 %1852
        %v1856 = vadd.f32 %v1720, %v1851
        %v1857 = vadd.f32 %v1721, %v1853
        %s1858 = sld [smem:[#allocation7 + $0x188]]
        %v1859 = vstv %s1858
        %v1860 = vmul.f32 %v1859, %v433
        %v1861 = vmul.f32 %v1859, %v434
        %v1864 = vrot.slane %v1860, 2
        %v1865 = vrot.slane %v1861, 2
        %v1866 = vsel %vm381, %v1864, %v1865
        %1867 = vrot.lane.b32.xlu0 %v1866, 126
        %v1868 = vpop.permute.xlu0 %1867
        %1869 = vrot.lane.b32.xlu0 %v1865, 126
        %v1870 = vpop.permute.xlu0 %1869
        %v1873 = vadd.f32 %v1737, %v1868
        %v1874 = vadd.f32 %v1738, %v1870
        %s1875 = sld [smem:[#allocation7 + $0x208]]
        %v1876 = vstv %s1875
        %v1877 = vmul.f32 %v1876, %v433
        %v1878 = vmul.f32 %v1876, %v434
        %v1881 = vrot.slane %v1877, 2
        %v1882 = vrot.slane %v1878, 2
        %v1883 = vsel %vm381, %v1881, %v1882
        %1884 = vrot.lane.b32.xlu0 %v1883, 126
        %v1885 = vpop.permute.xlu0 %1884
        %1886 = vrot.lane.b32.xlu0 %v1882, 126
        %v1887 = vpop.permute.xlu0 %1886
        %v1890 = vadd.f32 %v1754, %v1885
        %v1891 = vadd.f32 %v1755, %v1887
        %s1892 = sld [smem:[#allocation7 + $0x288]]
        %v1893 = vstv %s1892
        %v1894 = vmul.f32 %v1893, %v433
        %v1895 = vmul.f32 %v1893, %v434
        %v1898 = vrot.slane %v1894, 2
        %v1899 = vrot.slane %v1895, 2
        %v1900 = vsel %vm381, %v1898, %v1899
        %1901 = vrot.lane.b32.xlu0 %v1900, 126
        %v1902 = vpop.permute.xlu0 %1901
        %1903 = vrot.lane.b32.xlu0 %v1899, 126
        %v1904 = vpop.permute.xlu0 %1903
        %v1907 = vadd.f32 %v1771, %v1902
        %v1908 = vadd.f32 %v1772, %v1904
        %s1909 = sld [smem:[#allocation7 + $0x308]]
        %v1910 = vstv %s1909
        %v1911 = vmul.f32 %v1910, %v433
        %v1912 = vmul.f32 %v1910, %v434
        %v1915 = vrot.slane %v1911, 2
        %v1916 = vrot.slane %v1912, 2
        %v1917 = vsel %vm381, %v1915, %v1916
        %1918 = vrot.lane.b32.xlu0 %v1917, 126
        %v1919 = vpop.permute.xlu0 %1918
        %1920 = vrot.lane.b32.xlu0 %v1916, 126
        %v1921 = vpop.permute.xlu0 %1920
        %v1924 = vadd.f32 %v1788, %v1919
        %v1925 = vadd.f32 %v1789, %v1921
        %s1926 = sld [smem:[#allocation7 + $0x388]]
        %v1927 = vstv %s1926
        %v1928 = vmul.f32 %v1927, %v433
        %v1929 = vmul.f32 %v1927, %v434
        %v1932 = vrot.slane %v1928, 2
        %v1933 = vrot.slane %v1929, 2
        %v1934 = vsel %vm381, %v1932, %v1933
        %1935 = vrot.lane.b32.xlu0 %v1934, 126
        %v1936 = vpop.permute.xlu0 %1935
        %1937 = vrot.lane.b32.xlu0 %v1933, 126
        %v1938 = vpop.permute.xlu0 %1937
        %v1941 = vadd.f32 %v1805, %v1936
        %v1942 = vadd.f32 %v1806, %v1938
        %s1943 = sld [smem:[#allocation7 + $0x9]]
        %v1944 = vstv %s1943
        %v1945 = vmul.f32 %v1944, %v589
        %v1946 = vmul.f32 %v1944, %v590
        %v1947 = vadd.f32 %v1822, %v1945
        %v1948 = vadd.f32 %v1823, %v1946
        %s1949 = sld [smem:[#allocation7 + $0x89]]
        %v1950 = vstv %s1949
        %v1951 = vmul.f32 %v1950, %v589
        %v1952 = vmul.f32 %v1950, %v590
        %v1953 = vadd.f32 %v1839, %v1951
        %v1954 = vadd.f32 %v1840, %v1952
        %s1955 = sld [smem:[#allocation7 + $0x109]]
        %v1956 = vstv %s1955
        %v1957 = vmul.f32 %v1956, %v589
        %v1958 = vmul.f32 %v1956, %v590
        %v1959 = vadd.f32 %v1856, %v1957
        %v1960 = vadd.f32 %v1857, %v1958
        %s1961 = sld [smem:[#allocation7 + $0x189]]
        %v1962 = vstv %s1961
        %v1963 = vmul.f32 %v1962, %v589
        %v1964 = vmul.f32 %v1962, %v590
        %v1965 = vadd.f32 %v1873, %v1963
        %v1966 = vadd.f32 %v1874, %v1964
        %s1967 = sld [smem:[#allocation7 + $0x209]]
        %v1968 = vstv %s1967
        %v1969 = vmul.f32 %v1968, %v589
        %v1970 = vmul.f32 %v1968, %v590
        %v1971 = vadd.f32 %v1890, %v1969
        %v1972 = vadd.f32 %v1891, %v1970
        %s1973 = sld [smem:[#allocation7 + $0x289]]
        %v1974 = vstv %s1973
        %v1975 = vmul.f32 %v1974, %v589
        %v1976 = vmul.f32 %v1974, %v590
        %v1977 = vadd.f32 %v1907, %v1975
        %v1978 = vadd.f32 %v1908, %v1976
        %s1979 = sld [smem:[#allocation7 + $0x309]]
        %v1980 = vstv %s1979
        %v1981 = vmul.f32 %v1980, %v589
        %v1982 = vmul.f32 %v1980, %v590
        %v1983 = vadd.f32 %v1924, %v1981
        %v1984 = vadd.f32 %v1925, %v1982
        %s1985 = sld [smem:[#allocation7 + $0x389]]
        %v1986 = vstv %s1985
        %v1987 = vmul.f32 %v1986, %v589
        %v1988 = vmul.f32 %v1986, %v590
        %v1989 = vadd.f32 %v1941, %v1987
        %v1990 = vadd.f32 %v1942, %v1988
        %s1991 = sld [smem:[#allocation7 + $0xa]]
        %v1992 = vstv %s1991
        %v1993 = vmul.f32 %v1992, %v589
        %v1994 = vmul.f32 %v1992, %v590
        %1997 = vrot.lane.b32.xlu0 %v1993, 127
        %v1998 = vpop.permute.xlu0 %1997
        %1999 = vrot.lane.b32.xlu0 %v1994, 127
        %v2000 = vpop.permute.xlu0 %1999
        %v2003 = vadd.f32 %v1947, %v1998
        %v2004 = vadd.f32 %v1948, %v2000
        %s2005 = sld [smem:[#allocation7 + $0x8a]]
        %v2006 = vstv %s2005
        %v2007 = vmul.f32 %v2006, %v589
        %v2008 = vmul.f32 %v2006, %v590
        %2011 = vrot.lane.b32.xlu0 %v2007, 127
        %v2012 = vpop.permute.xlu0 %2011
        %2013 = vrot.lane.b32.xlu0 %v2008, 127
        %v2014 = vpop.permute.xlu0 %2013
        %v2017 = vadd.f32 %v1953, %v2012
        %v2018 = vadd.f32 %v1954, %v2014
        %s2019 = sld [smem:[#allocation7 + $0x10a]]
        %v2020 = vstv %s2019
        %v2021 = vmul.f32 %v2020, %v589
        %v2022 = vmul.f32 %v2020, %v590
        %2025 = vrot.lane.b32.xlu0 %v2021, 127
        %v2026 = vpop.permute.xlu0 %2025
        %2027 = vrot.lane.b32.xlu0 %v2022, 127
        %v2028 = vpop.permute.xlu0 %2027
        %v2031 = vadd.f32 %v1959, %v2026
        %v2032 = vadd.f32 %v1960, %v2028
        %s2033 = sld [smem:[#allocation7 + $0x18a]]
        %v2034 = vstv %s2033
        %v2035 = vmul.f32 %v2034, %v589
        %v2036 = vmul.f32 %v2034, %v590
        %2039 = vrot.lane.b32.xlu0 %v2035, 127
        %v2040 = vpop.permute.xlu0 %2039
        %2041 = vrot.lane.b32.xlu0 %v2036, 127
        %v2042 = vpop.permute.xlu0 %2041
        %v2045 = vadd.f32 %v1965, %v2040
        %v2046 = vadd.f32 %v1966, %v2042
        %s2047 = sld [smem:[#allocation7 + $0x20a]]
        %v2048 = vstv %s2047
        %v2049 = vmul.f32 %v2048, %v589
        %v2050 = vmul.f32 %v2048, %v590
        %2053 = vrot.lane.b32.xlu0 %v2049, 127
        %v2054 = vpop.permute.xlu0 %2053
        %2055 = vrot.lane.b32.xlu0 %v2050, 127
        %v2056 = vpop.permute.xlu0 %2055
        %v2059 = vadd.f32 %v1971, %v2054
        %v2060 = vadd.f32 %v1972, %v2056
        %s2061 = sld [smem:[#allocation7 + $0x28a]]
        %v2062 = vstv %s2061
        %v2063 = vmul.f32 %v2062, %v589
        %v2064 = vmul.f32 %v2062, %v590
        %2067 = vrot.lane.b32.xlu0 %v2063, 127
        %v2068 = vpop.permute.xlu0 %2067
        %2069 = vrot.lane.b32.xlu0 %v2064, 127
        %v2070 = vpop.permute.xlu0 %2069
        %v2073 = vadd.f32 %v1977, %v2068
        %v2074 = vadd.f32 %v1978, %v2070
        %s2075 = sld [smem:[#allocation7 + $0x30a]]
        %v2076 = vstv %s2075
        %v2077 = vmul.f32 %v2076, %v589
        %v2078 = vmul.f32 %v2076, %v590
        %2081 = vrot.lane.b32.xlu0 %v2077, 127
        %v2082 = vpop.permute.xlu0 %2081
        %2083 = vrot.lane.b32.xlu0 %v2078, 127
        %v2084 = vpop.permute.xlu0 %2083
        %v2087 = vadd.f32 %v1983, %v2082
        %v2088 = vadd.f32 %v1984, %v2084
        %s2089 = sld [smem:[#allocation7 + $0x38a]]
        %v2090 = vstv %s2089
        %v2091 = vmul.f32 %v2090, %v589
        %v2092 = vmul.f32 %v2090, %v590
        %2095 = vrot.lane.b32.xlu0 %v2091, 127
        %v2096 = vpop.permute.xlu0 %2095
        %2097 = vrot.lane.b32.xlu0 %v2092, 127
        %v2098 = vpop.permute.xlu0 %2097
        %v2101 = vadd.f32 %v1989, %v2096
        %v2102 = vadd.f32 %v1990, %v2098
        %s2103 = sld [smem:[#allocation7 + $0xb]]
        %v2104 = vstv %s2103
        %v2105 = vmul.f32 %v2104, %v589
        %v2106 = vmul.f32 %v2104, %v590
        %2109 = vrot.lane.b32.xlu0 %v2105, 126
        %v2110 = vpop.permute.xlu0 %2109
        %2111 = vrot.lane.b32.xlu0 %v2106, 126
        %v2112 = vpop.permute.xlu0 %2111
        %v2115 = vadd.f32 %v2003, %v2110
        %v2116 = vadd.f32 %v2004, %v2112
        %s2117 = sld [smem:[#allocation7 + $0x8b]]
        %v2118 = vstv %s2117
        %v2119 = vmul.f32 %v2118, %v589
        %v2120 = vmul.f32 %v2118, %v590
        %2123 = vrot.lane.b32.xlu0 %v2119, 126
        %v2124 = vpop.permute.xlu0 %2123
        %2125 = vrot.lane.b32.xlu0 %v2120, 126
        %v2126 = vpop.permute.xlu0 %2125
        %v2129 = vadd.f32 %v2017, %v2124
        %v2130 = vadd.f32 %v2018, %v2126
        %s2131 = sld [smem:[#allocation7 + $0x10b]]
        %v2132 = vstv %s2131
        %v2133 = vmul.f32 %v2132, %v589
        %v2134 = vmul.f32 %v2132, %v590
        %2137 = vrot.lane.b32.xlu0 %v2133, 126
        %v2138 = vpop.permute.xlu0 %2137
        %2139 = vrot.lane.b32.xlu0 %v2134, 126
        %v2140 = vpop.permute.xlu0 %2139
        %v2143 = vadd.f32 %v2031, %v2138
        %v2144 = vadd.f32 %v2032, %v2140
        %s2145 = sld [smem:[#allocation7 + $0x18b]]
        %v2146 = vstv %s2145
        %v2147 = vmul.f32 %v2146, %v589
        %v2148 = vmul.f32 %v2146, %v590
        %2151 = vrot.lane.b32.xlu0 %v2147, 126
        %v2152 = vpop.permute.xlu0 %2151
        %2153 = vrot.lane.b32.xlu0 %v2148, 126
        %v2154 = vpop.permute.xlu0 %2153
        %v2157 = vadd.f32 %v2045, %v2152
        %v2158 = vadd.f32 %v2046, %v2154
        %s2159 = sld [smem:[#allocation7 + $0x20b]]
        %v2160 = vstv %s2159
        %v2161 = vmul.f32 %v2160, %v589
        %v2162 = vmul.f32 %v2160, %v590
        %2165 = vrot.lane.b32.xlu0 %v2161, 126
        %v2166 = vpop.permute.xlu0 %2165
        %2167 = vrot.lane.b32.xlu0 %v2162, 126
        %v2168 = vpop.permute.xlu0 %2167
        %v2171 = vadd.f32 %v2059, %v2166
        %v2172 = vadd.f32 %v2060, %v2168
        %s2173 = sld [smem:[#allocation7 + $0x28b]]
        %v2174 = vstv %s2173
        %v2175 = vmul.f32 %v2174, %v589
        %v2176 = vmul.f32 %v2174, %v590
        %2179 = vrot.lane.b32.xlu0 %v2175, 126
        %v2180 = vpop.permute.xlu0 %2179
        %2181 = vrot.lane.b32.xlu0 %v2176, 126
        %v2182 = vpop.permute.xlu0 %2181
        %v2185 = vadd.f32 %v2073, %v2180
        %v2186 = vadd.f32 %v2074, %v2182
        %s2187 = sld [smem:[#allocation7 + $0x30b]]
        %v2188 = vstv %s2187
        %v2189 = vmul.f32 %v2188, %v589
        %v2190 = vmul.f32 %v2188, %v590
        %2193 = vrot.lane.b32.xlu0 %v2189, 126
        %v2194 = vpop.permute.xlu0 %2193
        %2195 = vrot.lane.b32.xlu0 %v2190, 126
        %v2196 = vpop.permute.xlu0 %2195
        %v2199 = vadd.f32 %v2087, %v2194
        %v2200 = vadd.f32 %v2088, %v2196
        %s2201 = sld [smem:[#allocation7 + $0x38b]]
        %v2202 = vstv %s2201
        %v2203 = vmul.f32 %v2202, %v589
        %v2204 = vmul.f32 %v2202, %v590
        %2207 = vrot.lane.b32.xlu0 %v2203, 126
        %v2208 = vpop.permute.xlu0 %2207
        %2209 = vrot.lane.b32.xlu0 %v2204, 126
        %v2210 = vpop.permute.xlu0 %2209
        %v2213 = vadd.f32 %v2101, %v2208
        %v2214 = vadd.f32 %v2102, %v2210
        %s2215 = sld [smem:[#allocation7 + $0xc]]
        %v2216 = vstv %s2215
        %v2217 = vmul.f32 %v2216, %v589
        %v2218 = vmul.f32 %v2216, %v590
        %v2221 = vrot.slane %v2217, 1
        %v2222 = vrot.slane %v2218, 1
        %v2223 = vsel %vm321, %v2221, %v2222
        %v2226 = vadd.f32 %v2115, %v2223
        %v2227 = vadd.f32 %v2116, %v2222
        %s2228 = sld [smem:[#allocation7 + $0x8c]]
        %v2229 = vstv %s2228
        %v2230 = vmul.f32 %v2229, %v589
        %v2231 = vmul.f32 %v2229, %v590
        %v2234 = vrot.slane %v2230, 1
        %v2235 = vrot.slane %v2231, 1
        %v2236 = vsel %vm321, %v2234, %v2235
        %v2239 = vadd.f32 %v2129, %v2236
        %v2240 = vadd.f32 %v2130, %v2235
        %s2241 = sld [smem:[#allocation7 + $0x10c]]
        %v2242 = vstv %s2241
        %v2243 = vmul.f32 %v2242, %v589
        %v2244 = vmul.f32 %v2242, %v590
        %v2247 = vrot.slane %v2243, 1
        %v2248 = vrot.slane %v2244, 1
        %v2249 = vsel %vm321, %v2247, %v2248
        %v2252 = vadd.f32 %v2143, %v2249
        %v2253 = vadd.f32 %v2144, %v2248
        %s2254 = sld [smem:[#allocation7 + $0x18c]]
        %v2255 = vstv %s2254
        %v2256 = vmul.f32 %v2255, %v589
        %v2257 = vmul.f32 %v2255, %v590
        %v2260 = vrot.slane %v2256, 1
        %v2261 = vrot.slane %v2257, 1
        %v2262 = vsel %vm321, %v2260, %v2261
        %v2265 = vadd.f32 %v2157, %v2262
        %v2266 = vadd.f32 %v2158, %v2261
        %s2267 = sld [smem:[#allocation7 + $0x20c]]
        %v2268 = vstv %s2267
        %v2269 = vmul.f32 %v2268, %v589
        %v2270 = vmul.f32 %v2268, %v590
        %v2273 = vrot.slane %v2269, 1
        %v2274 = vrot.slane %v2270, 1
        %v2275 = vsel %vm321, %v2273, %v2274
        %v2278 = vadd.f32 %v2171, %v2275
        %v2279 = vadd.f32 %v2172, %v2274
        %s2280 = sld [smem:[#allocation7 + $0x28c]]
        %v2281 = vstv %s2280
        %v2282 = vmul.f32 %v2281, %v589
        %v2283 = vmul.f32 %v2281, %v590
        %v2286 = vrot.slane %v2282, 1
        %v2287 = vrot.slane %v2283, 1
        %v2288 = vsel %vm321, %v2286, %v2287
        %v2291 = vadd.f32 %v2185, %v2288
        %v2292 = vadd.f32 %v2186, %v2287
        %s2293 = sld [smem:[#allocation7 + $0x30c]]
        %v2294 = vstv %s2293
        %v2295 = vmul.f32 %v2294, %v589
        %v2296 = vmul.f32 %v2294, %v590
        %v2299 = vrot.slane %v2295, 1
        %v2300 = vrot.slane %v2296, 1
        %v2301 = vsel %vm321, %v2299, %v2300
        %v2304 = vadd.f32 %v2199, %v2301
        %v2305 = vadd.f32 %v2200, %v2300
        %s2306 = sld [smem:[#allocation7 + $0x38c]]
        %v2307 = vstv %s2306
        %v2308 = vmul.f32 %v2307, %v589
        %v2309 = vmul.f32 %v2307, %v590
        %v2312 = vrot.slane %v2308, 1
        %v2313 = vrot.slane %v2309, 1
        %v2314 = vsel %vm321, %v2312, %v2313
        %v2317 = vadd.f32 %v2213, %v2314
        %v2318 = vadd.f32 %v2214, %v2313
        %s2319 = sld [smem:[#allocation7 + $0xd]]
        %v2320 = vstv %s2319
        %v2321 = vmul.f32 %v2320, %v589
        %v2322 = vmul.f32 %v2320, %v590
        %v2325 = vrot.slane %v2321, 1
        %v2326 = vrot.slane %v2322, 1
        %v2327 = vsel %vm321, %v2325, %v2326
        %2328 = vrot.lane.b32.xlu0 %v2327, 127
        %v2329 = vpop.permute.xlu0 %2328
        %2330 = vrot.lane.b32.xlu0 %v2326, 127
        %v2331 = vpop.permute.xlu0 %2330
        %v2334 = vadd.f32 %v2226, %v2329
        %v2335 = vadd.f32 %v2227, %v2331
        %s2336 = sld [smem:[#allocation7 + $0x8d]]
        %v2337 = vstv %s2336
        %v2338 = vmul.f32 %v2337, %v589
        %v2339 = vmul.f32 %v2337, %v590
        %v2342 = vrot.slane %v2338, 1
        %v2343 = vrot.slane %v2339, 1
        %v2344 = vsel %vm321, %v2342, %v2343
        %2345 = vrot.lane.b32.xlu0 %v2344, 127
        %v2346 = vpop.permute.xlu0 %2345
        %2347 = vrot.lane.b32.xlu0 %v2343, 127
        %v2348 = vpop.permute.xlu0 %2347
        %v2351 = vadd.f32 %v2239, %v2346
        %v2352 = vadd.f32 %v2240, %v2348
        %s2353 = sld [smem:[#allocation7 + $0x10d]]
        %v2354 = vstv %s2353
        %v2355 = vmul.f32 %v2354, %v589
        %v2356 = vmul.f32 %v2354, %v590
        %v2359 = vrot.slane %v2355, 1
        %v2360 = vrot.slane %v2356, 1
        %v2361 = vsel %vm321, %v2359, %v2360
        %2362 = vrot.lane.b32.xlu0 %v2361, 127
        %v2363 = vpop.permute.xlu0 %2362
        %2364 = vrot.lane.b32.xlu0 %v2360, 127
        %v2365 = vpop.permute.xlu0 %2364
        %v2368 = vadd.f32 %v2252, %v2363
        %v2369 = vadd.f32 %v2253, %v2365
        %s2370 = sld [smem:[#allocation7 + $0x18d]]
        %v2371 = vstv %s2370
        %v2372 = vmul.f32 %v2371, %v589
        %v2373 = vmul.f32 %v2371, %v590
        %v2376 = vrot.slane %v2372, 1
        %v2377 = vrot.slane %v2373, 1
        %v2378 = vsel %vm321, %v2376, %v2377
        %2379 = vrot.lane.b32.xlu0 %v2378, 127
        %v2380 = vpop.permute.xlu0 %2379
        %2381 = vrot.lane.b32.xlu0 %v2377, 127
        %v2382 = vpop.permute.xlu0 %2381
        %v2385 = vadd.f32 %v2265, %v2380
        %v2386 = vadd.f32 %v2266, %v2382
        %s2387 = sld [smem:[#allocation7 + $0x20d]]
        %v2388 = vstv %s2387
        %v2389 = vmul.f32 %v2388, %v589
        %v2390 = vmul.f32 %v2388, %v590
        %v2393 = vrot.slane %v2389, 1
        %v2394 = vrot.slane %v2390, 1
        %v2395 = vsel %vm321, %v2393, %v2394
        %2396 = vrot.lane.b32.xlu0 %v2395, 127
        %v2397 = vpop.permute.xlu0 %2396
        %2398 = vrot.lane.b32.xlu0 %v2394, 127
        %v2399 = vpop.permute.xlu0 %2398
        %v2402 = vadd.f32 %v2278, %v2397
        %v2403 = vadd.f32 %v2279, %v2399
        %s2404 = sld [smem:[#allocation7 + $0x28d]]
        %v2405 = vstv %s2404
        %v2406 = vmul.f32 %v2405, %v589
        %v2407 = vmul.f32 %v2405, %v590
        %v2410 = vrot.slane %v2406, 1
        %v2411 = vrot.slane %v2407, 1
        %v2412 = vsel %vm321, %v2410, %v2411
        %2413 = vrot.lane.b32.xlu0 %v2412, 127
        %v2414 = vpop.permute.xlu0 %2413
        %2415 = vrot.lane.b32.xlu0 %v2411, 127
        %v2416 = vpop.permute.xlu0 %2415
        %v2419 = vadd.f32 %v2291, %v2414
        %v2420 = vadd.f32 %v2292, %v2416
        %s2421 = sld [smem:[#allocation7 + $0x30d]]
        %v2422 = vstv %s2421
        %v2423 = vmul.f32 %v2422, %v589
        %v2424 = vmul.f32 %v2422, %v590
        %v2427 = vrot.slane %v2423, 1
        %v2428 = vrot.slane %v2424, 1
        %v2429 = vsel %vm321, %v2427, %v2428
        %2430 = vrot.lane.b32.xlu0 %v2429, 127
        %v2431 = vpop.permute.xlu0 %2430
        %2432 = vrot.lane.b32.xlu0 %v2428, 127
        %v2433 = vpop.permute.xlu0 %2432
        %v2436 = vadd.f32 %v2304, %v2431
        %v2437 = vadd.f32 %v2305, %v2433
        %s2438 = sld [smem:[#allocation7 + $0x38d]]
        %v2439 = vstv %s2438
        %v2440 = vmul.f32 %v2439, %v589
        %v2441 = vmul.f32 %v2439, %v590
        %v2444 = vrot.slane %v2440, 1
        %v2445 = vrot.slane %v2441, 1
        %v2446 = vsel %vm321, %v2444, %v2445
        %2447 = vrot.lane.b32.xlu0 %v2446, 127
        %v2448 = vpop.permute.xlu0 %2447
        %2449 = vrot.lane.b32.xlu0 %v2445, 127
        %v2450 = vpop.permute.xlu0 %2449
        %v2453 = vadd.f32 %v2317, %v2448
        %v2454 = vadd.f32 %v2318, %v2450
        %s2455 = sld [smem:[#allocation7 + $0xe]]
        %v2456 = vstv %s2455
        %v2457 = vmul.f32 %v2456, %v589
        %v2458 = vmul.f32 %v2456, %v590
        %v2461 = vrot.slane %v2457, 1
        %v2462 = vrot.slane %v2458, 1
        %v2463 = vsel %vm321, %v2461, %v2462
        %2464 = vrot.lane.b32.xlu0 %v2463, 126
        %v2465 = vpop.permute.xlu0 %2464
        %2466 = vrot.lane.b32.xlu0 %v2462, 126
        %v2467 = vpop.permute.xlu0 %2466
        %v2470 = vadd.f32 %v2334, %v2465
        %v2471 = vadd.f32 %v2335, %v2467
        %s2472 = sld [smem:[#allocation7 + $0x8e]]
        %v2473 = vstv %s2472
        %v2474 = vmul.f32 %v2473, %v589
        %v2475 = vmul.f32 %v2473, %v590
        %v2478 = vrot.slane %v2474, 1
        %v2479 = vrot.slane %v2475, 1
        %v2480 = vsel %vm321, %v2478, %v2479
        %2481 = vrot.lane.b32.xlu0 %v2480, 126
        %v2482 = vpop.permute.xlu0 %2481
        %2483 = vrot.lane.b32.xlu0 %v2479, 126
        %v2484 = vpop.permute.xlu0 %2483
        %v2487 = vadd.f32 %v2351, %v2482
        %v2488 = vadd.f32 %v2352, %v2484
        %s2489 = sld [smem:[#allocation7 + $0x10e]]
        %v2490 = vstv %s2489
        %v2491 = vmul.f32 %v2490, %v589
        %v2492 = vmul.f32 %v2490, %v590
        %v2495 = vrot.slane %v2491, 1
        %v2496 = vrot.slane %v2492, 1
        %v2497 = vsel %vm321, %v2495, %v2496
        %2498 = vrot.lane.b32.xlu0 %v2497, 126
        %v2499 = vpop.permute.xlu0 %2498
        %2500 = vrot.lane.b32.xlu0 %v2496, 126
        %v2501 = vpop.permute.xlu0 %2500
        %v2504 = vadd.f32 %v2368, %v2499
        %v2505 = vadd.f32 %v2369, %v2501
        %s2506 = sld [smem:[#allocation7 + $0x18e]]
        %v2507 = vstv %s2506
        %v2508 = vmul.f32 %v2507, %v589
        %v2509 = vmul.f32 %v2507, %v590
        %v2512 = vrot.slane %v2508, 1
        %v2513 = vrot.slane %v2509, 1
        %v2514 = vsel %vm321, %v2512, %v2513
        %2515 = vrot.lane.b32.xlu0 %v2514, 126
        %v2516 = vpop.permute.xlu0 %2515
        %2517 = vrot.lane.b32.xlu0 %v2513, 126
        %v2518 = vpop.permute.xlu0 %2517
        %v2521 = vadd.f32 %v2385, %v2516
        %v2522 = vadd.f32 %v2386, %v2518
        %s2523 = sld [smem:[#allocation7 + $0x20e]]
        %v2524 = vstv %s2523
        %v2525 = vmul.f32 %v2524, %v589
        %v2526 = vmul.f32 %v2524, %v590
        %v2529 = vrot.slane %v2525, 1
        %v2530 = vrot.slane %v2526, 1
        %v2531 = vsel %vm321, %v2529, %v2530
        %2532 = vrot.lane.b32.xlu0 %v2531, 126
        %v2533 = vpop.permute.xlu0 %2532
        %2534 = vrot.lane.b32.xlu0 %v2530, 126
        %v2535 = vpop.permute.xlu0 %2534
        %v2538 = vadd.f32 %v2402, %v2533
        %v2539 = vadd.f32 %v2403, %v2535
        %s2540 = sld [smem:[#allocation7 + $0x28e]]
        %v2541 = vstv %s2540
        %v2542 = vmul.f32 %v2541, %v589
        %v2543 = vmul.f32 %v2541, %v590
        %v2546 = vrot.slane %v2542, 1
        %v2547 = vrot.slane %v2543, 1
        %v2548 = vsel %vm321, %v2546, %v2547
        %2549 = vrot.lane.b32.xlu0 %v2548, 126
        %v2550 = vpop.permute.xlu0 %2549
        %2551 = vrot.lane.b32.xlu0 %v2547, 126
        %v2552 = vpop.permute.xlu0 %2551
        %v2555 = vadd.f32 %v2419, %v2550
        %v2556 = vadd.f32 %v2420, %v2552
        %s2557 = sld [smem:[#allocation7 + $0x30e]]
        %v2558 = vstv %s2557
        %v2559 = vmul.f32 %v2558, %v589
        %v2560 = vmul.f32 %v2558, %v590
        %v2563 = vrot.slane %v2559, 1
        %v2564 = vrot.slane %v2560, 1
        %v2565 = vsel %vm321, %v2563, %v2564
        %2566 = vrot.lane.b32.xlu0 %v2565, 126
        %v2567 = vpop.permute.xlu0 %2566
        %2568 = vrot.lane.b32.xlu0 %v2564, 126
        %v2569 = vpop.permute.xlu0 %2568
        %v2572 = vadd.f32 %v2436, %v2567
        %v2573 = vadd.f32 %v2437, %v2569
        %s2574 = sld [smem:[#allocation7 + $0x38e]]
        %v2575 = vstv %s2574
        %v2576 = vmul.f32 %v2575, %v589
        %v2577 = vmul.f32 %v2575, %v590
        %v2580 = vrot.slane %v2576, 1
        %v2581 = vrot.slane %v2577, 1
        %v2582 = vsel %vm321, %v2580, %v2581
        %2583 = vrot.lane.b32.xlu0 %v2582, 126
        %v2584 = vpop.permute.xlu0 %2583
        %2585 = vrot.lane.b32.xlu0 %v2581, 126
        %v2586 = vpop.permute.xlu0 %2585
        %v2589 = vadd.f32 %v2453, %v2584
        %v2590 = vadd.f32 %v2454, %v2586
        %s2591 = sld [smem:[#allocation7 + $0xf]]
        %v2592 = vstv %s2591
        %v2593 = vmul.f32 %v2592, %v589
        %v2594 = vmul.f32 %v2592, %v590
        %v2597 = vrot.slane %v2593, 2
        %v2598 = vrot.slane %v2594, 2
        %v2599 = vsel %vm381, %v2597, %v2598
        %v2602 = vadd.f32 %v2470, %v2599
        %v2603 = vadd.f32 %v2471, %v2598
        %s2604 = sld [smem:[#allocation7 + $0x8f]]
        %v2605 = vstv %s2604
        %v2606 = vmul.f32 %v2605, %v589
        %v2607 = vmul.f32 %v2605, %v590
        %v2610 = vrot.slane %v2606, 2
        %v2611 = vrot.slane %v2607, 2
        %v2612 = vsel %vm381, %v2610, %v2611
        %v2615 = vadd.f32 %v2487, %v2612
        %v2616 = vadd.f32 %v2488, %v2611
        %s2617 = sld [smem:[#allocation7 + $0x10f]]
        %v2618 = vstv %s2617
        %v2619 = vmul.f32 %v2618, %v589
        %v2620 = vmul.f32 %v2618, %v590
        %v2623 = vrot.slane %v2619, 2
        %v2624 = vrot.slane %v2620, 2
        %v2625 = vsel %vm381, %v2623, %v2624
        %v2628 = vadd.f32 %v2504, %v2625
        %v2629 = vadd.f32 %v2505, %v2624
        %s2630 = sld [smem:[#allocation7 + $0x18f]]
        %v2631 = vstv %s2630
        %v2632 = vmul.f32 %v2631, %v589
        %v2633 = vmul.f32 %v2631, %v590
        %v2636 = vrot.slane %v2632, 2
        %v2637 = vrot.slane %v2633, 2
        %v2638 = vsel %vm381, %v2636, %v2637
        %v2641 = vadd.f32 %v2521, %v2638
        %v2642 = vadd.f32 %v2522, %v2637
        %s2643 = sld [smem:[#allocation7 + $0x20f]]
        %v2644 = vstv %s2643
        %v2645 = vmul.f32 %v2644, %v589
        %v2646 = vmul.f32 %v2644, %v590
        %v2649 = vrot.slane %v2645, 2
        %v2650 = vrot.slane %v2646, 2
        %v2651 = vsel %vm381, %v2649, %v2650
        %v2654 = vadd.f32 %v2538, %v2651
        %v2655 = vadd.f32 %v2539, %v2650
        %s2656 = sld [smem:[#allocation7 + $0x28f]]
        %v2657 = vstv %s2656
        %v2658 = vmul.f32 %v2657, %v589
        %v2659 = vmul.f32 %v2657, %v590
        %v2662 = vrot.slane %v2658, 2
        %v2663 = vrot.slane %v2659, 2
        %v2664 = vsel %vm381, %v2662, %v2663
        %v2667 = vadd.f32 %v2555, %v2664
        %v2668 = vadd.f32 %v2556, %v2663
        %s2669 = sld [smem:[#allocation7 + $0x30f]]
        %v2670 = vstv %s2669
        %v2671 = vmul.f32 %v2670, %v589
        %v2672 = vmul.f32 %v2670, %v590
        %v2675 = vrot.slane %v2671, 2
        %v2676 = vrot.slane %v2672, 2
        %v2677 = vsel %vm381, %v2675, %v2676
        %v2680 = vadd.f32 %v2572, %v2677
        %v2681 = vadd.f32 %v2573, %v2676
        %s2682 = sld [smem:[#allocation7 + $0x38f]]
        %v2683 = vstv %s2682
        %v2684 = vmul.f32 %v2683, %v589
        %v2685 = vmul.f32 %v2683, %v590
        %v2688 = vrot.slane %v2684, 2
        %v2689 = vrot.slane %v2685, 2
        %v2690 = vsel %vm381, %v2688, %v2689
        %v2693 = vadd.f32 %v2589, %v2690
        %v2694 = vadd.f32 %v2590, %v2689
        %s2695 = sld [smem:[#allocation7 + $0x10]]
        %v2696 = vstv %s2695
        %v2697 = vmul.f32 %v2696, %v589
        %v2698 = vmul.f32 %v2696, %v590
        %v2701 = vrot.slane %v2697, 2
        %v2702 = vrot.slane %v2698, 2
        %v2703 = vsel %vm381, %v2701, %v2702
        %2704 = vrot.lane.b32.xlu0 %v2703, 127
        %v2705 = vpop.permute.xlu0 %2704
        %2706 = vrot.lane.b32.xlu0 %v2702, 127
        %v2707 = vpop.permute.xlu0 %2706
        %v2710 = vadd.f32 %v2602, %v2705
        %v2711 = vadd.f32 %v2603, %v2707
        %s2712 = sld [smem:[#allocation7 + $0x90]]
        %v2713 = vstv %s2712
        %v2714 = vmul.f32 %v2713, %v589
        %v2715 = vmul.f32 %v2713, %v590
        %v2718 = vrot.slane %v2714, 2
        %v2719 = vrot.slane %v2715, 2
        %v2720 = vsel %vm381, %v2718, %v2719
        %2721 = vrot.lane.b32.xlu0 %v2720, 127
        %v2722 = vpop.permute.xlu0 %2721
        %2723 = vrot.lane.b32.xlu0 %v2719, 127
        %v2724 = vpop.permute.xlu0 %2723
        %v2727 = vadd.f32 %v2615, %v2722
        %v2728 = vadd.f32 %v2616, %v2724
        %s2729 = sld [smem:[#allocation7 + $0x110]]
        %v2730 = vstv %s2729
        %v2731 = vmul.f32 %v2730, %v589
        %v2732 = vmul.f32 %v2730, %v590
        %v2735 = vrot.slane %v2731, 2
        %v2736 = vrot.slane %v2732, 2
        %v2737 = vsel %vm381, %v2735, %v2736
        %2738 = vrot.lane.b32.xlu0 %v2737, 127
        %v2739 = vpop.permute.xlu0 %2738
        %2740 = vrot.lane.b32.xlu0 %v2736, 127
        %v2741 = vpop.permute.xlu0 %2740
        %v2744 = vadd.f32 %v2628, %v2739
        %v2745 = vadd.f32 %v2629, %v2741
        %s2746 = sld [smem:[#allocation7 + $0x190]]
        %v2747 = vstv %s2746
        %v2748 = vmul.f32 %v2747, %v589
        %v2749 = vmul.f32 %v2747, %v590
        %v2752 = vrot.slane %v2748, 2
        %v2753 = vrot.slane %v2749, 2
        %v2754 = vsel %vm381, %v2752, %v2753
        %2755 = vrot.lane.b32.xlu0 %v2754, 127
        %v2756 = vpop.permute.xlu0 %2755
        %2757 = vrot.lane.b32.xlu0 %v2753, 127
        %v2758 = vpop.permute.xlu0 %2757
        %v2761 = vadd.f32 %v2641, %v2756
        %v2762 = vadd.f32 %v2642, %v2758
        %s2763 = sld [smem:[#allocation7 + $0x210]]
        %v2764 = vstv %s2763
        %v2765 = vmul.f32 %v2764, %v589
        %v2766 = vmul.f32 %v2764, %v590
        %v2769 = vrot.slane %v2765, 2
        %v2770 = vrot.slane %v2766, 2
        %v2771 = vsel %vm381, %v2769, %v2770
        %2772 = vrot.lane.b32.xlu0 %v2771, 127
        %v2773 = vpop.permute.xlu0 %2772
        %2774 = vrot.lane.b32.xlu0 %v2770, 127
        %v2775 = vpop.permute.xlu0 %2774
        %v2778 = vadd.f32 %v2654, %v2773
        %v2779 = vadd.f32 %v2655, %v2775
        %s2780 = sld [smem:[#allocation7 + $0x290]]
        %v2781 = vstv %s2780
        %v2782 = vmul.f32 %v2781, %v589
        %v2783 = vmul.f32 %v2781, %v590
        %v2786 = vrot.slane %v2782, 2
        %v2787 = vrot.slane %v2783, 2
        %v2788 = vsel %vm381, %v2786, %v2787
        %2789 = vrot.lane.b32.xlu0 %v2788, 127
        %v2790 = vpop.permute.xlu0 %2789
        %2791 = vrot.lane.b32.xlu0 %v2787, 127
        %v2792 = vpop.permute.xlu0 %2791
        %v2795 = vadd.f32 %v2667, %v2790
        %v2796 = vadd.f32 %v2668, %v2792
        %s2797 = sld [smem:[#allocation7 + $0x310]]
        %v2798 = vstv %s2797
        %v2799 = vmul.f32 %v2798, %v589
        %v2800 = vmul.f32 %v2798, %v590
        %v2803 = vrot.slane %v2799, 2
        %v2804 = vrot.slane %v2800, 2
        %v2805 = vsel %vm381, %v2803, %v2804
        %2806 = vrot.lane.b32.xlu0 %v2805, 127
        %v2807 = vpop.permute.xlu0 %2806
        %2808 = vrot.lane.b32.xlu0 %v2804, 127
        %v2809 = vpop.permute.xlu0 %2808
        %v2812 = vadd.f32 %v2680, %v2807
        %v2813 = vadd.f32 %v2681, %v2809
        %s2814 = sld [smem:[#allocation7 + $0x390]]
        %v2815 = vstv %s2814
        %v2816 = vmul.f32 %v2815, %v589
        %v2817 = vmul.f32 %v2815, %v590
        %v2820 = vrot.slane %v2816, 2
        %v2821 = vrot.slane %v2817, 2
        %v2822 = vsel %vm381, %v2820, %v2821
        %2823 = vrot.lane.b32.xlu0 %v2822, 127
        %v2824 = vpop.permute.xlu0 %2823
        %2825 = vrot.lane.b32.xlu0 %v2821, 127
        %v2826 = vpop.permute.xlu0 %2825
        %v2829 = vadd.f32 %v2693, %v2824
        %v2830 = vadd.f32 %v2694, %v2826
        %s2831 = sld [smem:[#allocation7 + $0x11]]
        %v2832 = vstv %s2831
        %v2833 = vmul.f32 %v2832, %v589
        %v2834 = vmul.f32 %v2832, %v590
        %v2837 = vrot.slane %v2833, 2
        %v2838 = vrot.slane %v2834, 2
        %v2839 = vsel %vm381, %v2837, %v2838
        %2840 = vrot.lane.b32.xlu0 %v2839, 126
        %v2841 = vpop.permute.xlu0 %2840
        %2842 = vrot.lane.b32.xlu0 %v2838, 126
        %v2843 = vpop.permute.xlu0 %2842
        %v2846 = vadd.f32 %v2710, %v2841
        %v2847 = vadd.f32 %v2711, %v2843
        %s2848 = sld [smem:[#allocation7 + $0x91]]
        %v2849 = vstv %s2848
        %v2850 = vmul.f32 %v2849, %v589
        %v2851 = vmul.f32 %v2849, %v590
        %v2854 = vrot.slane %v2850, 2
        %v2855 = vrot.slane %v2851, 2
        %v2856 = vsel %vm381, %v2854, %v2855
        %2857 = vrot.lane.b32.xlu0 %v2856, 126
        %v2858 = vpop.permute.xlu0 %2857
        %2859 = vrot.lane.b32.xlu0 %v2855, 126
        %v2860 = vpop.permute.xlu0 %2859
        %v2863 = vadd.f32 %v2727, %v2858
        %v2864 = vadd.f32 %v2728, %v2860
        %s2865 = sld [smem:[#allocation7 + $0x111]]
        %v2866 = vstv %s2865
        %v2867 = vmul.f32 %v2866, %v589
        %v2868 = vmul.f32 %v2866, %v590
        %v2871 = vrot.slane %v2867, 2
        %v2872 = vrot.slane %v2868, 2
        %v2873 = vsel %vm381, %v2871, %v2872
        %2874 = vrot.lane.b32.xlu0 %v2873, 126
        %v2875 = vpop.permute.xlu0 %2874
        %2876 = vrot.lane.b32.xlu0 %v2872, 126
        %v2877 = vpop.permute.xlu0 %2876
        %v2880 = vadd.f32 %v2744, %v2875
        %v2881 = vadd.f32 %v2745, %v2877
        %s2882 = sld [smem:[#allocation7 + $0x191]]
        %v2883 = vstv %s2882
        %v2884 = vmul.f32 %v2883, %v589
        %v2885 = vmul.f32 %v2883, %v590
        %v2888 = vrot.slane %v2884, 2
        %v2889 = vrot.slane %v2885, 2
        %v2890 = vsel %vm381, %v2888, %v2889
        %2891 = vrot.lane.b32.xlu0 %v2890, 126
        %v2892 = vpop.permute.xlu0 %2891
        %2893 = vrot.lane.b32.xlu0 %v2889, 126
        %v2894 = vpop.permute.xlu0 %2893
        %v2897 = vadd.f32 %v2761, %v2892
        %v2898 = vadd.f32 %v2762, %v2894
        %s2899 = sld [smem:[#allocation7 + $0x211]]
        %v2900 = vstv %s2899
        %v2901 = vmul.f32 %v2900, %v589
        %v2902 = vmul.f32 %v2900, %v590
        %v2905 = vrot.slane %v2901, 2
        %v2906 = vrot.slane %v2902, 2
        %v2907 = vsel %vm381, %v2905, %v2906
        %2908 = vrot.lane.b32.xlu0 %v2907, 126
        %v2909 = vpop.permute.xlu0 %2908
        %2910 = vrot.lane.b32.xlu0 %v2906, 126
        %v2911 = vpop.permute.xlu0 %2910
        %v2914 = vadd.f32 %v2778, %v2909
        %v2915 = vadd.f32 %v2779, %v2911
        %s2916 = sld [smem:[#allocation7 + $0x291]]
        %v2917 = vstv %s2916
        %v2918 = vmul.f32 %v2917, %v589
        %v2919 = vmul.f32 %v2917, %v590
        %v2922 = vrot.slane %v2918, 2
        %v2923 = vrot.slane %v2919, 2
        %v2924 = vsel %vm381, %v2922, %v2923
        %2925 = vrot.lane.b32.xlu0 %v2924, 126
        %v2926 = vpop.permute.xlu0 %2925
        %2927 = vrot.lane.b32.xlu0 %v2923, 126
        %v2928 = vpop.permute.xlu0 %2927
        %v2931 = vadd.f32 %v2795, %v2926
        %v2932 = vadd.f32 %v2796, %v2928
        %s2933 = sld [smem:[#allocation7 + $0x311]]
        %v2934 = vstv %s2933
        %v2935 = vmul.f32 %v2934, %v589
        %v2936 = vmul.f32 %v2934, %v590
        %v2939 = vrot.slane %v2935, 2
        %v2940 = vrot.slane %v2936, 2
        %v2941 = vsel %vm381, %v2939, %v2940
        %2942 = vrot.lane.b32.xlu0 %v2941, 126
        %v2943 = vpop.permute.xlu0 %2942
        %2944 = vrot.lane.b32.xlu0 %v2940, 126
        %v2945 = vpop.permute.xlu0 %2944
        %v2948 = vadd.f32 %v2812, %v2943
        %v2949 = vadd.f32 %v2813, %v2945
        %s2950 = sld [smem:[#allocation7 + $0x391]]
        %v2951 = vstv %s2950
        %v2952 = vmul.f32 %v2951, %v589
        %v2953 = vmul.f32 %v2951, %v590
        %v2956 = vrot.slane %v2952, 2
        %v2957 = vrot.slane %v2953, 2
        %v2958 = vsel %vm381, %v2956, %v2957
        %2959 = vrot.lane.b32.xlu0 %v2958, 126
        %v2960 = vpop.permute.xlu0 %2959
        %2961 = vrot.lane.b32.xlu0 %v2957, 126
        %v2962 = vpop.permute.xlu0 %2961
        %v2965 = vadd.f32 %v2829, %v2960
        %v2966 = vadd.f32 %v2830, %v2962
        %s2967 = sld [smem:[#allocation7 + $0x12]]
        %v2968 = vstv %s2967
        %v2969 = vmul.f32 %v2968, %v745
        %v2970 = vmul.f32 %v2968, %v746
        %v2971 = vadd.f32 %v2846, %v2969
        %v2972 = vadd.f32 %v2847, %v2970
        %s2973 = sld [smem:[#allocation7 + $0x92]]
        %v2974 = vstv %s2973
        %v2975 = vmul.f32 %v2974, %v745
        %v2976 = vmul.f32 %v2974, %v746
        %v2977 = vadd.f32 %v2863, %v2975
        %v2978 = vadd.f32 %v2864, %v2976
        %s2979 = sld [smem:[#allocation7 + $0x112]]
        %v2980 = vstv %s2979
        %v2981 = vmul.f32 %v2980, %v745
        %v2982 = vmul.f32 %v2980, %v746
        %v2983 = vadd.f32 %v2880, %v2981
        %v2984 = vadd.f32 %v2881, %v2982
        %s2985 = sld [smem:[#allocation7 + $0x192]]
        %v2986 = vstv %s2985
        %v2987 = vmul.f32 %v2986, %v745
        %v2988 = vmul.f32 %v2986, %v746
        %v2989 = vadd.f32 %v2897, %v2987
        %v2990 = vadd.f32 %v2898, %v2988
        %s2991 = sld [smem:[#allocation7 + $0x212]]
        %v2992 = vstv %s2991
        %v2993 = vmul.f32 %v2992, %v745
        %v2994 = vmul.f32 %v2992, %v746
        %v2995 = vadd.f32 %v2914, %v2993
        %v2996 = vadd.f32 %v2915, %v2994
        %s2997 = sld [smem:[#allocation7 + $0x292]]
        %v2998 = vstv %s2997
        %v2999 = vmul.f32 %v2998, %v745
        %v3000 = vmul.f32 %v2998, %v746
        %v3001 = vadd.f32 %v2931, %v2999
        %v3002 = vadd.f32 %v2932, %v3000
        %s3003 = sld [smem:[#allocation7 + $0x312]]
        %v3004 = vstv %s3003
        %v3005 = vmul.f32 %v3004, %v745
        %v3006 = vmul.f32 %v3004, %v746
        %v3007 = vadd.f32 %v2948, %v3005
        %v3008 = vadd.f32 %v2949, %v3006
        %s3009 = sld [smem:[#allocation7 + $0x392]]
        %v3010 = vstv %s3009
        %v3011 = vmul.f32 %v3010, %v745
        %v3012 = vmul.f32 %v3010, %v746
        %v3013 = vadd.f32 %v2965, %v3011
        %v3014 = vadd.f32 %v2966, %v3012
        %s3015 = sld [smem:[#allocation7 + $0x13]]
        %v3016 = vstv %s3015
        %v3017 = vmul.f32 %v3016, %v745
        %v3018 = vmul.f32 %v3016, %v746
        %3021 = vrot.lane.b32.xlu0 %v3017, 127
        %v3022 = vpop.permute.xlu0 %3021
        %3023 = vrot.lane.b32.xlu0 %v3018, 127
        %v3024 = vpop.permute.xlu0 %3023
        %v3027 = vadd.f32 %v2971, %v3022
        %v3028 = vadd.f32 %v2972, %v3024
        %s3029 = sld [smem:[#allocation7 + $0x93]]
        %v3030 = vstv %s3029
        %v3031 = vmul.f32 %v3030, %v745
        %v3032 = vmul.f32 %v3030, %v746
        %3035 = vrot.lane.b32.xlu0 %v3031, 127
        %v3036 = vpop.permute.xlu0 %3035
        %3037 = vrot.lane.b32.xlu0 %v3032, 127
        %v3038 = vpop.permute.xlu0 %3037
        %v3041 = vadd.f32 %v2977, %v3036
        %v3042 = vadd.f32 %v2978, %v3038
        %s3043 = sld [smem:[#allocation7 + $0x113]]
        %v3044 = vstv %s3043
        %v3045 = vmul.f32 %v3044, %v745
        %v3046 = vmul.f32 %v3044, %v746
        %3049 = vrot.lane.b32.xlu0 %v3045, 127
        %v3050 = vpop.permute.xlu0 %3049
        %3051 = vrot.lane.b32.xlu0 %v3046, 127
        %v3052 = vpop.permute.xlu0 %3051
        %v3055 = vadd.f32 %v2983, %v3050
        %v3056 = vadd.f32 %v2984, %v3052
        %s3057 = sld [smem:[#allocation7 + $0x193]]
        %v3058 = vstv %s3057
        %v3059 = vmul.f32 %v3058, %v745
        %v3060 = vmul.f32 %v3058, %v746
        %3063 = vrot.lane.b32.xlu0 %v3059, 127
        %v3064 = vpop.permute.xlu0 %3063
        %3065 = vrot.lane.b32.xlu0 %v3060, 127
        %v3066 = vpop.permute.xlu0 %3065
        %v3069 = vadd.f32 %v2989, %v3064
        %v3070 = vadd.f32 %v2990, %v3066
        %s3071 = sld [smem:[#allocation7 + $0x213]]
        %v3072 = vstv %s3071
        %v3073 = vmul.f32 %v3072, %v745
        %v3074 = vmul.f32 %v3072, %v746
        %3077 = vrot.lane.b32.xlu0 %v3073, 127
        %v3078 = vpop.permute.xlu0 %3077
        %3079 = vrot.lane.b32.xlu0 %v3074, 127
        %v3080 = vpop.permute.xlu0 %3079
        %v3083 = vadd.f32 %v2995, %v3078
        %v3084 = vadd.f32 %v2996, %v3080
        %s3085 = sld [smem:[#allocation7 + $0x293]]
        %v3086 = vstv %s3085
        %v3087 = vmul.f32 %v3086, %v745
        %v3088 = vmul.f32 %v3086, %v746
        %3091 = vrot.lane.b32.xlu0 %v3087, 127
        %v3092 = vpop.permute.xlu0 %3091
        %3093 = vrot.lane.b32.xlu0 %v3088, 127
        %v3094 = vpop.permute.xlu0 %3093
        %v3097 = vadd.f32 %v3001, %v3092
        %v3098 = vadd.f32 %v3002, %v3094
        %s3099 = sld [smem:[#allocation7 + $0x313]]
        %v3100 = vstv %s3099
        %v3101 = vmul.f32 %v3100, %v745
        %v3102 = vmul.f32 %v3100, %v746
        %3105 = vrot.lane.b32.xlu0 %v3101, 127
        %v3106 = vpop.permute.xlu0 %3105
        %3107 = vrot.lane.b32.xlu0 %v3102, 127
        %v3108 = vpop.permute.xlu0 %3107
        %v3111 = vadd.f32 %v3007, %v3106
        %v3112 = vadd.f32 %v3008, %v3108
        %s3113 = sld [smem:[#allocation7 + $0x393]]
        %v3114 = vstv %s3113
        %v3115 = vmul.f32 %v3114, %v745
        %v3116 = vmul.f32 %v3114, %v746
        %3119 = vrot.lane.b32.xlu0 %v3115, 127
        %v3120 = vpop.permute.xlu0 %3119
        %3121 = vrot.lane.b32.xlu0 %v3116, 127
        %v3122 = vpop.permute.xlu0 %3121
        %v3125 = vadd.f32 %v3013, %v3120
        %v3126 = vadd.f32 %v3014, %v3122
        %s3127 = sld [smem:[#allocation7 + $0x14]]
        %v3128 = vstv %s3127
        %v3129 = vmul.f32 %v3128, %v745
        %v3130 = vmul.f32 %v3128, %v746
        %3133 = vrot.lane.b32.xlu0 %v3129, 126
        %v3134 = vpop.permute.xlu0 %3133
        %3135 = vrot.lane.b32.xlu0 %v3130, 126
        %v3136 = vpop.permute.xlu0 %3135
        %v3139 = vadd.f32 %v3027, %v3134
        %v3140 = vadd.f32 %v3028, %v3136
        %s3141 = sld [smem:[#allocation7 + $0x94]]
        %v3142 = vstv %s3141
        %v3143 = vmul.f32 %v3142, %v745
        %v3144 = vmul.f32 %v3142, %v746
        %3147 = vrot.lane.b32.xlu0 %v3143, 126
        %v3148 = vpop.permute.xlu0 %3147
        %3149 = vrot.lane.b32.xlu0 %v3144, 126
        %v3150 = vpop.permute.xlu0 %3149
        %v3153 = vadd.f32 %v3041, %v3148
        %v3154 = vadd.f32 %v3042, %v3150
        %s3155 = sld [smem:[#allocation7 + $0x114]]
        %v3156 = vstv %s3155
        %v3157 = vmul.f32 %v3156, %v745
        %v3158 = vmul.f32 %v3156, %v746
        %3161 = vrot.lane.b32.xlu0 %v3157, 126
        %v3162 = vpop.permute.xlu0 %3161
        %3163 = vrot.lane.b32.xlu0 %v3158, 126
        %v3164 = vpop.permute.xlu0 %3163
        %v3167 = vadd.f32 %v3055, %v3162
        %v3168 = vadd.f32 %v3056, %v3164
        %s3169 = sld [smem:[#allocation7 + $0x194]]
        %v3170 = vstv %s3169
        %v3171 = vmul.f32 %v3170, %v745
        %v3172 = vmul.f32 %v3170, %v746
        %3175 = vrot.lane.b32.xlu0 %v3171, 126
        %v3176 = vpop.permute.xlu0 %3175
        %3177 = vrot.lane.b32.xlu0 %v3172, 126
        %v3178 = vpop.permute.xlu0 %3177
        %v3181 = vadd.f32 %v3069, %v3176
        %v3182 = vadd.f32 %v3070, %v3178
        %s3183 = sld [smem:[#allocation7 + $0x214]]
        %v3184 = vstv %s3183
        %v3185 = vmul.f32 %v3184, %v745
        %v3186 = vmul.f32 %v3184, %v746
        %3189 = vrot.lane.b32.xlu0 %v3185, 126
        %v3190 = vpop.permute.xlu0 %3189
        %3191 = vrot.lane.b32.xlu0 %v3186, 126
        %v3192 = vpop.permute.xlu0 %3191
        %v3195 = vadd.f32 %v3083, %v3190
        %v3196 = vadd.f32 %v3084, %v3192
        %s3197 = sld [smem:[#allocation7 + $0x294]]
        %v3198 = vstv %s3197
        %v3199 = vmul.f32 %v3198, %v745
        %v3200 = vmul.f32 %v3198, %v746
        %3203 = vrot.lane.b32.xlu0 %v3199, 126
        %v3204 = vpop.permute.xlu0 %3203
        %3205 = vrot.lane.b32.xlu0 %v3200, 126
        %v3206 = vpop.permute.xlu0 %3205
        %v3209 = vadd.f32 %v3097, %v3204
        %v3210 = vadd.f32 %v3098, %v3206
        %s3211 = sld [smem:[#allocation7 + $0x314]]
        %v3212 = vstv %s3211
        %v3213 = vmul.f32 %v3212, %v745
        %v3214 = vmul.f32 %v3212, %v746
        %3217 = vrot.lane.b32.xlu0 %v3213, 126
        %v3218 = vpop.permute.xlu0 %3217
        %3219 = vrot.lane.b32.xlu0 %v3214, 126
        %v3220 = vpop.permute.xlu0 %3219
        %v3223 = vadd.f32 %v3111, %v3218
        %v3224 = vadd.f32 %v3112, %v3220
        %s3225 = sld [smem:[#allocation7 + $0x394]]
        %v3226 = vstv %s3225
        %v3227 = vmul.f32 %v3226, %v745
        %v3228 = vmul.f32 %v3226, %v746
        %3231 = vrot.lane.b32.xlu0 %v3227, 126
        %v3232 = vpop.permute.xlu0 %3231
        %3233 = vrot.lane.b32.xlu0 %v3228, 126
        %v3234 = vpop.permute.xlu0 %3233
        %v3237 = vadd.f32 %v3125, %v3232
        %v3238 = vadd.f32 %v3126, %v3234
        %s3239 = sld [smem:[#allocation7 + $0x15]]
        %v3240 = vstv %s3239
        %v3241 = vmul.f32 %v3240, %v745
        %v3242 = vmul.f32 %v3240, %v746
        %v3245 = vrot.slane %v3241, 1
        %v3246 = vrot.slane %v3242, 1
        %v3247 = vsel %vm321, %v3245, %v3246
        %v3250 = vadd.f32 %v3139, %v3247
        %v3251 = vadd.f32 %v3140, %v3246
        %s3252 = sld [smem:[#allocation7 + $0x95]]
        %v3253 = vstv %s3252
        %v3254 = vmul.f32 %v3253, %v745
        %v3255 = vmul.f32 %v3253, %v746
        %v3258 = vrot.slane %v3254, 1
        %v3259 = vrot.slane %v3255, 1
        %v3260 = vsel %vm321, %v3258, %v3259
        %v3263 = vadd.f32 %v3153, %v3260
        %v3264 = vadd.f32 %v3154, %v3259
        %s3265 = sld [smem:[#allocation7 + $0x115]]
        %v3266 = vstv %s3265
        %v3267 = vmul.f32 %v3266, %v745
        %v3268 = vmul.f32 %v3266, %v746
        %v3271 = vrot.slane %v3267, 1
        %v3272 = vrot.slane %v3268, 1
        %v3273 = vsel %vm321, %v3271, %v3272
        %v3276 = vadd.f32 %v3167, %v3273
        %v3277 = vadd.f32 %v3168, %v3272
        %s3278 = sld [smem:[#allocation7 + $0x195]]
        %v3279 = vstv %s3278
        %v3280 = vmul.f32 %v3279, %v745
        %v3281 = vmul.f32 %v3279, %v746
        %v3284 = vrot.slane %v3280, 1
        %v3285 = vrot.slane %v3281, 1
        %v3286 = vsel %vm321, %v3284, %v3285
        %v3289 = vadd.f32 %v3181, %v3286
        %v3290 = vadd.f32 %v3182, %v3285
        %s3291 = sld [smem:[#allocation7 + $0x215]]
        %v3292 = vstv %s3291
        %v3293 = vmul.f32 %v3292, %v745
        %v3294 = vmul.f32 %v3292, %v746
        %v3297 = vrot.slane %v3293, 1
        %v3298 = vrot.slane %v3294, 1
        %v3299 = vsel %vm321, %v3297, %v3298
        %v3302 = vadd.f32 %v3195, %v3299
        %v3303 = vadd.f32 %v3196, %v3298
        %s3304 = sld [smem:[#allocation7 + $0x295]]
        %v3305 = vstv %s3304
        %v3306 = vmul.f32 %v3305, %v745
        %v3307 = vmul.f32 %v3305, %v746
        %v3310 = vrot.slane %v3306, 1
        %v3311 = vrot.slane %v3307, 1
        %v3312 = vsel %vm321, %v3310, %v3311
        %v3315 = vadd.f32 %v3209, %v3312
        %v3316 = vadd.f32 %v3210, %v3311
        %s3317 = sld [smem:[#allocation7 + $0x315]]
        %v3318 = vstv %s3317
        %v3319 = vmul.f32 %v3318, %v745
        %v3320 = vmul.f32 %v3318, %v746
        %v3323 = vrot.slane %v3319, 1
        %v3324 = vrot.slane %v3320, 1
        %v3325 = vsel %vm321, %v3323, %v3324
        %v3328 = vadd.f32 %v3223, %v3325
        %v3329 = vadd.f32 %v3224, %v3324
        %s3330 = sld [smem:[#allocation7 + $0x395]]
        %v3331 = vstv %s3330
        %v3332 = vmul.f32 %v3331, %v745
        %v3333 = vmul.f32 %v3331, %v746
        %v3336 = vrot.slane %v3332, 1
        %v3337 = vrot.slane %v3333, 1
        %v3338 = vsel %vm321, %v3336, %v3337
        %v3341 = vadd.f32 %v3237, %v3338
        %v3342 = vadd.f32 %v3238, %v3337
        %s3343 = sld [smem:[#allocation7 + $0x16]]
        %v3344 = vstv %s3343
        %v3345 = vmul.f32 %v3344, %v745
        %v3346 = vmul.f32 %v3344, %v746
        %v3349 = vrot.slane %v3345, 1
        %v3350 = vrot.slane %v3346, 1
        %v3351 = vsel %vm321, %v3349, %v3350
        %3352 = vrot.lane.b32.xlu0 %v3351, 127
        %v3353 = vpop.permute.xlu0 %3352
        %3354 = vrot.lane.b32.xlu0 %v3350, 127
        %v3355 = vpop.permute.xlu0 %3354
        %v3358 = vadd.f32 %v3250, %v3353
        %v3359 = vadd.f32 %v3251, %v3355
        %s3360 = sld [smem:[#allocation7 + $0x96]]
        %v3361 = vstv %s3360
        %v3362 = vmul.f32 %v3361, %v745
        %v3363 = vmul.f32 %v3361, %v746
        %v3366 = vrot.slane %v3362, 1
        %v3367 = vrot.slane %v3363, 1
        %v3368 = vsel %vm321, %v3366, %v3367
        %3369 = vrot.lane.b32.xlu0 %v3368, 127
        %v3370 = vpop.permute.xlu0 %3369
        %3371 = vrot.lane.b32.xlu0 %v3367, 127
        %v3372 = vpop.permute.xlu0 %3371
        %v3375 = vadd.f32 %v3263, %v3370
        %v3376 = vadd.f32 %v3264, %v3372
        %s3377 = sld [smem:[#allocation7 + $0x116]]
        %v3378 = vstv %s3377
        %v3379 = vmul.f32 %v3378, %v745
        %v3380 = vmul.f32 %v3378, %v746
        %v3383 = vrot.slane %v3379, 1
        %v3384 = vrot.slane %v3380, 1
        %v3385 = vsel %vm321, %v3383, %v3384
        %3386 = vrot.lane.b32.xlu0 %v3385, 127
        %v3387 = vpop.permute.xlu0 %3386
        %3388 = vrot.lane.b32.xlu0 %v3384, 127
        %v3389 = vpop.permute.xlu0 %3388
        %v3392 = vadd.f32 %v3276, %v3387
        %v3393 = vadd.f32 %v3277, %v3389
        %s3394 = sld [smem:[#allocation7 + $0x196]]
        %v3395 = vstv %s3394
        %v3396 = vmul.f32 %v3395, %v745
        %v3397 = vmul.f32 %v3395, %v746
        %v3400 = vrot.slane %v3396, 1
        %v3401 = vrot.slane %v3397, 1
        %v3402 = vsel %vm321, %v3400, %v3401
        %3403 = vrot.lane.b32.xlu0 %v3402, 127
        %v3404 = vpop.permute.xlu0 %3403
        %3405 = vrot.lane.b32.xlu0 %v3401, 127
        %v3406 = vpop.permute.xlu0 %3405
        %v3409 = vadd.f32 %v3289, %v3404
        %v3410 = vadd.f32 %v3290, %v3406
        %s3411 = sld [smem:[#allocation7 + $0x216]]
        %v3412 = vstv %s3411
        %v3413 = vmul.f32 %v3412, %v745
        %v3414 = vmul.f32 %v3412, %v746
        %v3417 = vrot.slane %v3413, 1
        %v3418 = vrot.slane %v3414, 1
        %v3419 = vsel %vm321, %v3417, %v3418
        %3420 = vrot.lane.b32.xlu0 %v3419, 127
        %v3421 = vpop.permute.xlu0 %3420
        %3422 = vrot.lane.b32.xlu0 %v3418, 127
        %v3423 = vpop.permute.xlu0 %3422
        %v3426 = vadd.f32 %v3302, %v3421
        %v3427 = vadd.f32 %v3303, %v3423
        %s3428 = sld [smem:[#allocation7 + $0x296]]
        %v3429 = vstv %s3428
        %v3430 = vmul.f32 %v3429, %v745
        %v3431 = vmul.f32 %v3429, %v746
        %v3434 = vrot.slane %v3430, 1
        %v3435 = vrot.slane %v3431, 1
        %v3436 = vsel %vm321, %v3434, %v3435
        %3437 = vrot.lane.b32.xlu0 %v3436, 127
        %v3438 = vpop.permute.xlu0 %3437
        %3439 = vrot.lane.b32.xlu0 %v3435, 127
        %v3440 = vpop.permute.xlu0 %3439
        %v3443 = vadd.f32 %v3315, %v3438
        %v3444 = vadd.f32 %v3316, %v3440
        %s3445 = sld [smem:[#allocation7 + $0x316]]
        %v3446 = vstv %s3445
        %v3447 = vmul.f32 %v3446, %v745
        %v3448 = vmul.f32 %v3446, %v746
        %v3451 = vrot.slane %v3447, 1
        %v3452 = vrot.slane %v3448, 1
        %v3453 = vsel %vm321, %v3451, %v3452
        %3454 = vrot.lane.b32.xlu0 %v3453, 127
        %v3455 = vpop.permute.xlu0 %3454
        %3456 = vrot.lane.b32.xlu0 %v3452, 127
        %v3457 = vpop.permute.xlu0 %3456
        %v3460 = vadd.f32 %v3328, %v3455
        %v3461 = vadd.f32 %v3329, %v3457
        %s3462 = sld [smem:[#allocation7 + $0x396]]
        %v3463 = vstv %s3462
        %v3464 = vmul.f32 %v3463, %v745
        %v3465 = vmul.f32 %v3463, %v746
        %v3468 = vrot.slane %v3464, 1
        %v3469 = vrot.slane %v3465, 1
        %v3470 = vsel %vm321, %v3468, %v3469
        %3471 = vrot.lane.b32.xlu0 %v3470, 127
        %v3472 = vpop.permute.xlu0 %3471
        %3473 = vrot.lane.b32.xlu0 %v3469, 127
        %v3474 = vpop.permute.xlu0 %3473
        %v3477 = vadd.f32 %v3341, %v3472
        %v3478 = vadd.f32 %v3342, %v3474
        %s3479 = sld [smem:[#allocation7 + $0x17]]
        %v3480 = vstv %s3479
        %v3481 = vmul.f32 %v3480, %v745
        %v3482 = vmul.f32 %v3480, %v746
        %v3485 = vrot.slane %v3481, 1
        %v3486 = vrot.slane %v3482, 1
        %v3487 = vsel %vm321, %v3485, %v3486
        %3488 = vrot.lane.b32.xlu0 %v3487, 126
        %v3489 = vpop.permute.xlu0 %3488
        %3490 = vrot.lane.b32.xlu0 %v3486, 126
        %v3491 = vpop.permute.xlu0 %3490
        %v3494 = vadd.f32 %v3358, %v3489
        %v3495 = vadd.f32 %v3359, %v3491
        %s3496 = sld [smem:[#allocation7 + $0x97]]
        %v3497 = vstv %s3496
        %v3498 = vmul.f32 %v3497, %v745
        %v3499 = vmul.f32 %v3497, %v746
        %v3502 = vrot.slane %v3498, 1
        %v3503 = vrot.slane %v3499, 1
        %v3504 = vsel %vm321, %v3502, %v3503
        %3505 = vrot.lane.b32.xlu0 %v3504, 126
        %v3506 = vpop.permute.xlu0 %3505
        %3507 = vrot.lane.b32.xlu0 %v3503, 126
        %v3508 = vpop.permute.xlu0 %3507
        %v3511 = vadd.f32 %v3375, %v3506
        %v3512 = vadd.f32 %v3376, %v3508
        %s3513 = sld [smem:[#allocation7 + $0x117]]
        %v3514 = vstv %s3513
        %v3515 = vmul.f32 %v3514, %v745
        %v3516 = vmul.f32 %v3514, %v746
        %v3519 = vrot.slane %v3515, 1
        %v3520 = vrot.slane %v3516, 1
        %v3521 = vsel %vm321, %v3519, %v3520
        %3522 = vrot.lane.b32.xlu0 %v3521, 126
        %v3523 = vpop.permute.xlu0 %3522
        %3524 = vrot.lane.b32.xlu0 %v3520, 126
        %v3525 = vpop.permute.xlu0 %3524
        %v3528 = vadd.f32 %v3392, %v3523
        %v3529 = vadd.f32 %v3393, %v3525
        %s3530 = sld [smem:[#allocation7 + $0x197]]
        %v3531 = vstv %s3530
        %v3532 = vmul.f32 %v3531, %v745
        %v3533 = vmul.f32 %v3531, %v746
        %v3536 = vrot.slane %v3532, 1
        %v3537 = vrot.slane %v3533, 1
        %v3538 = vsel %vm321, %v3536, %v3537
        %3539 = vrot.lane.b32.xlu0 %v3538, 126
        %v3540 = vpop.permute.xlu0 %3539
        %3541 = vrot.lane.b32.xlu0 %v3537, 126
        %v3542 = vpop.permute.xlu0 %3541
        %v3545 = vadd.f32 %v3409, %v3540
        %v3546 = vadd.f32 %v3410, %v3542
        %s3547 = sld [smem:[#allocation7 + $0x217]]
        %v3548 = vstv %s3547
        %v3549 = vmul.f32 %v3548, %v745
        %v3550 = vmul.f32 %v3548, %v746
        %v3553 = vrot.slane %v3549, 1
        %v3554 = vrot.slane %v3550, 1
        %v3555 = vsel %vm321, %v3553, %v3554
        %3556 = vrot.lane.b32.xlu0 %v3555, 126
        %v3557 = vpop.permute.xlu0 %3556
        %3558 = vrot.lane.b32.xlu0 %v3554, 126
        %v3559 = vpop.permute.xlu0 %3558
        %v3562 = vadd.f32 %v3426, %v3557
        %v3563 = vadd.f32 %v3427, %v3559
        %s3564 = sld [smem:[#allocation7 + $0x297]]
        %v3565 = vstv %s3564
        %v3566 = vmul.f32 %v3565, %v745
        %v3567 = vmul.f32 %v3565, %v746
        %v3570 = vrot.slane %v3566, 1
        %v3571 = vrot.slane %v3567, 1
        %v3572 = vsel %vm321, %v3570, %v3571
        %3573 = vrot.lane.b32.xlu0 %v3572, 126
        %v3574 = vpop.permute.xlu0 %3573
        %3575 = vrot.lane.b32.xlu0 %v3571, 126
        %v3576 = vpop.permute.xlu0 %3575
        %v3579 = vadd.f32 %v3443, %v3574
        %v3580 = vadd.f32 %v3444, %v3576
        %s3581 = sld [smem:[#allocation7 + $0x317]]
        %v3582 = vstv %s3581
        %v3583 = vmul.f32 %v3582, %v745
        %v3584 = vmul.f32 %v3582, %v746
        %v3587 = vrot.slane %v3583, 1
        %v3588 = vrot.slane %v3584, 1
        %v3589 = vsel %vm321, %v3587, %v3588
        %3590 = vrot.lane.b32.xlu0 %v3589, 126
        %v3591 = vpop.permute.xlu0 %3590
        %3592 = vrot.lane.b32.xlu0 %v3588, 126
        %v3593 = vpop.permute.xlu0 %3592
        %v3596 = vadd.f32 %v3460, %v3591
        %v3597 = vadd.f32 %v3461, %v3593
        %s3598 = sld [smem:[#allocation7 + $0x397]]
        %v3599 = vstv %s3598
        %v3600 = vmul.f32 %v3599, %v745
        %v3601 = vmul.f32 %v3599, %v746
        %v3604 = vrot.slane %v3600, 1
        %v3605 = vrot.slane %v3601, 1
        %v3606 = vsel %vm321, %v3604, %v3605
        %3607 = vrot.lane.b32.xlu0 %v3606, 126
        %v3608 = vpop.permute.xlu0 %3607
        %3609 = vrot.lane.b32.xlu0 %v3605, 126
        %v3610 = vpop.permute.xlu0 %3609
        %v3613 = vadd.f32 %v3477, %v3608
        %v3614 = vadd.f32 %v3478, %v3610
        %s3615 = sld [smem:[#allocation7 + $0x18]]
        %v3616 = vstv %s3615
        %v3617 = vmul.f32 %v3616, %v745
        %v3618 = vmul.f32 %v3616, %v746
        %v3621 = vrot.slane %v3617, 2
        %v3622 = vrot.slane %v3618, 2
        %v3623 = vsel %vm381, %v3621, %v3622
        %v3626 = vadd.f32 %v3494, %v3623
        %v3627 = vadd.f32 %v3495, %v3622
        %s3628 = sld [smem:[#allocation7 + $0x98]]
        %v3629 = vstv %s3628
        %v3630 = vmul.f32 %v3629, %v745
        %v3631 = vmul.f32 %v3629, %v746
        %v3634 = vrot.slane %v3630, 2
        %v3635 = vrot.slane %v3631, 2
        %v3636 = vsel %vm381, %v3634, %v3635
        %v3639 = vadd.f32 %v3511, %v3636
        %v3640 = vadd.f32 %v3512, %v3635
        %s3641 = sld [smem:[#allocation7 + $0x118]]
        %v3642 = vstv %s3641
        %v3643 = vmul.f32 %v3642, %v745
        %v3644 = vmul.f32 %v3642, %v746
        %v3647 = vrot.slane %v3643, 2
        %v3648 = vrot.slane %v3644, 2
        %v3649 = vsel %vm381, %v3647, %v3648
        %v3652 = vadd.f32 %v3528, %v3649
        %v3653 = vadd.f32 %v3529, %v3648
        %s3654 = sld [smem:[#allocation7 + $0x198]]
        %v3655 = vstv %s3654
        %v3656 = vmul.f32 %v3655, %v745
        %v3657 = vmul.f32 %v3655, %v746
        %v3660 = vrot.slane %v3656, 2
        %v3661 = vrot.slane %v3657, 2
        %v3662 = vsel %vm381, %v3660, %v3661
        %v3665 = vadd.f32 %v3545, %v3662
        %v3666 = vadd.f32 %v3546, %v3661
        %s3667 = sld [smem:[#allocation7 + $0x218]]
        %v3668 = vstv %s3667
        %v3669 = vmul.f32 %v3668, %v745
        %v3670 = vmul.f32 %v3668, %v746
        %v3673 = vrot.slane %v3669, 2
        %v3674 = vrot.slane %v3670, 2
        %v3675 = vsel %vm381, %v3673, %v3674
        %v3678 = vadd.f32 %v3562, %v3675
        %v3679 = vadd.f32 %v3563, %v3674
        %s3680 = sld [smem:[#allocation7 + $0x298]]
        %v3681 = vstv %s3680
        %v3682 = vmul.f32 %v3681, %v745
        %v3683 = vmul.f32 %v3681, %v746
        %v3686 = vrot.slane %v3682, 2
        %v3687 = vrot.slane %v3683, 2
        %v3688 = vsel %vm381, %v3686, %v3687
        %v3691 = vadd.f32 %v3579, %v3688
        %v3692 = vadd.f32 %v3580, %v3687
        %s3693 = sld [smem:[#allocation7 + $0x318]]
        %v3694 = vstv %s3693
        %v3695 = vmul.f32 %v3694, %v745
        %v3696 = vmul.f32 %v3694, %v746
        %v3699 = vrot.slane %v3695, 2
        %v3700 = vrot.slane %v3696, 2
        %v3701 = vsel %vm381, %v3699, %v3700
        %v3704 = vadd.f32 %v3596, %v3701
        %v3705 = vadd.f32 %v3597, %v3700
        %s3706 = sld [smem:[#allocation7 + $0x398]]
        %v3707 = vstv %s3706
        %v3708 = vmul.f32 %v3707, %v745
        %v3709 = vmul.f32 %v3707, %v746
        %v3712 = vrot.slane %v3708, 2
        %v3713 = vrot.slane %v3709, 2
        %v3714 = vsel %vm381, %v3712, %v3713
        %v3717 = vadd.f32 %v3613, %v3714
        %v3718 = vadd.f32 %v3614, %v3713
        %s3719 = sld [smem:[#allocation7 + $0x19]]
        %v3720 = vstv %s3719
        %v3721 = vmul.f32 %v3720, %v745
        %v3722 = vmul.f32 %v3720, %v746
        %v3725 = vrot.slane %v3721, 2
        %v3726 = vrot.slane %v3722, 2
        %v3727 = vsel %vm381, %v3725, %v3726
        %3728 = vrot.lane.b32.xlu0 %v3727, 127
        %v3729 = vpop.permute.xlu0 %3728
        %3730 = vrot.lane.b32.xlu0 %v3726, 127
        %v3731 = vpop.permute.xlu0 %3730
        %v3734 = vadd.f32 %v3626, %v3729
        %v3735 = vadd.f32 %v3627, %v3731
        %s3736 = sld [smem:[#allocation7 + $0x99]]
        %v3737 = vstv %s3736
        %v3738 = vmul.f32 %v3737, %v745
        %v3739 = vmul.f32 %v3737, %v746
        %v3742 = vrot.slane %v3738, 2
        %v3743 = vrot.slane %v3739, 2
        %v3744 = vsel %vm381, %v3742, %v3743
        %3745 = vrot.lane.b32.xlu0 %v3744, 127
        %v3746 = vpop.permute.xlu0 %3745
        %3747 = vrot.lane.b32.xlu0 %v3743, 127
        %v3748 = vpop.permute.xlu0 %3747
        %v3751 = vadd.f32 %v3639, %v3746
        %v3752 = vadd.f32 %v3640, %v3748
        %s3753 = sld [smem:[#allocation7 + $0x119]]
        %v3754 = vstv %s3753
        %v3755 = vmul.f32 %v3754, %v745
        %v3756 = vmul.f32 %v3754, %v746
        %v3759 = vrot.slane %v3755, 2
        %v3760 = vrot.slane %v3756, 2
        %v3761 = vsel %vm381, %v3759, %v3760
        %3762 = vrot.lane.b32.xlu0 %v3761, 127
        %v3763 = vpop.permute.xlu0 %3762
        %3764 = vrot.lane.b32.xlu0 %v3760, 127
        %v3765 = vpop.permute.xlu0 %3764
        %v3768 = vadd.f32 %v3652, %v3763
        %v3769 = vadd.f32 %v3653, %v3765
        %s3770 = sld [smem:[#allocation7 + $0x199]]
        %v3771 = vstv %s3770
        %v3772 = vmul.f32 %v3771, %v745
        %v3773 = vmul.f32 %v3771, %v746
        %v3776 = vrot.slane %v3772, 2
        %v3777 = vrot.slane %v3773, 2
        %v3778 = vsel %vm381, %v3776, %v3777
        %3779 = vrot.lane.b32.xlu0 %v3778, 127
        %v3780 = vpop.permute.xlu0 %3779
        %3781 = vrot.lane.b32.xlu0 %v3777, 127
        %v3782 = vpop.permute.xlu0 %3781
        %v3785 = vadd.f32 %v3665, %v3780
        %v3786 = vadd.f32 %v3666, %v3782
        %s3787 = sld [smem:[#allocation7 + $0x219]]
        %v3788 = vstv %s3787
        %v3789 = vmul.f32 %v3788, %v745
        %v3790 = vmul.f32 %v3788, %v746
        %v3793 = vrot.slane %v3789, 2
        %v3794 = vrot.slane %v3790, 2
        %v3795 = vsel %vm381, %v3793, %v3794
        %3796 = vrot.lane.b32.xlu0 %v3795, 127
        %v3797 = vpop.permute.xlu0 %3796
        %3798 = vrot.lane.b32.xlu0 %v3794, 127
        %v3799 = vpop.permute.xlu0 %3798
        %v3802 = vadd.f32 %v3678, %v3797
        %v3803 = vadd.f32 %v3679, %v3799
        %s3804 = sld [smem:[#allocation7 + $0x299]]
        %v3805 = vstv %s3804
        %v3806 = vmul.f32 %v3805, %v745
        %v3807 = vmul.f32 %v3805, %v746
        %v3810 = vrot.slane %v3806, 2
        %v3811 = vrot.slane %v3807, 2
        %v3812 = vsel %vm381, %v3810, %v3811
        %3813 = vrot.lane.b32.xlu0 %v3812, 127
        %v3814 = vpop.permute.xlu0 %3813
        %3815 = vrot.lane.b32.xlu0 %v3811, 127
        %v3816 = vpop.permute.xlu0 %3815
        %v3819 = vadd.f32 %v3691, %v3814
        %v3820 = vadd.f32 %v3692, %v3816
        %s3821 = sld [smem:[#allocation7 + $0x319]]
        %v3822 = vstv %s3821
        %v3823 = vmul.f32 %v3822, %v745
        %v3824 = vmul.f32 %v3822, %v746
        %v3827 = vrot.slane %v3823, 2
        %v3828 = vrot.slane %v3824, 2
        %v3829 = vsel %vm381, %v3827, %v3828
        %3830 = vrot.lane.b32.xlu0 %v3829, 127
        %v3831 = vpop.permute.xlu0 %3830
        %3832 = vrot.lane.b32.xlu0 %v3828, 127
        %v3833 = vpop.permute.xlu0 %3832
        %v3836 = vadd.f32 %v3704, %v3831
        %v3837 = vadd.f32 %v3705, %v3833
        %s3838 = sld [smem:[#allocation7 + $0x399]]
        %v3839 = vstv %s3838
        %v3840 = vmul.f32 %v3839, %v745
        %v3841 = vmul.f32 %v3839, %v746
        %v3844 = vrot.slane %v3840, 2
        %v3845 = vrot.slane %v3841, 2
        %v3846 = vsel %vm381, %v3844, %v3845
        %3847 = vrot.lane.b32.xlu0 %v3846, 127
        %v3848 = vpop.permute.xlu0 %3847
        %3849 = vrot.lane.b32.xlu0 %v3845, 127
        %v3850 = vpop.permute.xlu0 %3849
        %v3853 = vadd.f32 %v3717, %v3848
        %v3854 = vadd.f32 %v3718, %v3850
        %s3855 = sld [smem:[#allocation7 + $0x1a]]
        %v3856 = vstv %s3855
        %v3857 = vmul.f32 %v3856, %v745
        %v3858 = vmul.f32 %v3856, %v746
        %v3861 = vrot.slane %v3857, 2
        %v3862 = vrot.slane %v3858, 2
        %v3863 = vsel %vm381, %v3861, %v3862
        %3864 = vrot.lane.b32.xlu0 %v3863, 126
        %v3865 = vpop.permute.xlu0 %3864
        %3866 = vrot.lane.b32.xlu0 %v3862, 126
        %v3867 = vpop.permute.xlu0 %3866
        %v3870 = vadd.f32 %v3734, %v3865
        %v3871 = vadd.f32 %v3735, %v3867
        %s3872 = sld [smem:[#allocation7 + $0x9a]]
        %v3873 = vstv %s3872
        %v3874 = vmul.f32 %v3873, %v745
        %v3875 = vmul.f32 %v3873, %v746
        %v3878 = vrot.slane %v3874, 2
        %v3879 = vrot.slane %v3875, 2
        %v3880 = vsel %vm381, %v3878, %v3879
        %3881 = vrot.lane.b32.xlu0 %v3880, 126
        %v3882 = vpop.permute.xlu0 %3881
        %3883 = vrot.lane.b32.xlu0 %v3879, 126
        %v3884 = vpop.permute.xlu0 %3883
        %v3887 = vadd.f32 %v3751, %v3882
        %v3888 = vadd.f32 %v3752, %v3884
        %s3889 = sld [smem:[#allocation7 + $0x11a]]
        %v3890 = vstv %s3889
        %v3891 = vmul.f32 %v3890, %v745
        %v3892 = vmul.f32 %v3890, %v746
        %v3895 = vrot.slane %v3891, 2
        %v3896 = vrot.slane %v3892, 2
        %v3897 = vsel %vm381, %v3895, %v3896
        %3898 = vrot.lane.b32.xlu0 %v3897, 126
        %v3899 = vpop.permute.xlu0 %3898
        %3900 = vrot.lane.b32.xlu0 %v3896, 126
        %v3901 = vpop.permute.xlu0 %3900
        %v3904 = vadd.f32 %v3768, %v3899
        %v3905 = vadd.f32 %v3769, %v3901
        %s3906 = sld [smem:[#allocation7 + $0x19a]]
        %v3907 = vstv %s3906
        %v3908 = vmul.f32 %v3907, %v745
        %v3909 = vmul.f32 %v3907, %v746
        %v3912 = vrot.slane %v3908, 2
        %v3913 = vrot.slane %v3909, 2
        %v3914 = vsel %vm381, %v3912, %v3913
        %3915 = vrot.lane.b32.xlu0 %v3914, 126
        %v3916 = vpop.permute.xlu0 %3915
        %3917 = vrot.lane.b32.xlu0 %v3913, 126
        %v3918 = vpop.permute.xlu0 %3917
        %v3921 = vadd.f32 %v3785, %v3916
        %v3922 = vadd.f32 %v3786, %v3918
        %s3923 = sld [smem:[#allocation7 + $0x21a]]
        %v3924 = vstv %s3923
        %v3925 = vmul.f32 %v3924, %v745
        %v3926 = vmul.f32 %v3924, %v746
        %v3929 = vrot.slane %v3925, 2
        %v3930 = vrot.slane %v3926, 2
        %v3931 = vsel %vm381, %v3929, %v3930
        %3932 = vrot.lane.b32.xlu0 %v3931, 126
        %v3933 = vpop.permute.xlu0 %3932
        %3934 = vrot.lane.b32.xlu0 %v3930, 126
        %v3935 = vpop.permute.xlu0 %3934
        %v3938 = vadd.f32 %v3802, %v3933
        %v3939 = vadd.f32 %v3803, %v3935
        %s3940 = sld [smem:[#allocation7 + $0x29a]]
        %v3941 = vstv %s3940
        %v3942 = vmul.f32 %v3941, %v745
        %v3943 = vmul.f32 %v3941, %v746
        %v3946 = vrot.slane %v3942, 2
        %v3947 = vrot.slane %v3943, 2
        %v3948 = vsel %vm381, %v3946, %v3947
        %3949 = vrot.lane.b32.xlu0 %v3948, 126
        %v3950 = vpop.permute.xlu0 %3949
        %3951 = vrot.lane.b32.xlu0 %v3947, 126
        %v3952 = vpop.permute.xlu0 %3951
        %v3955 = vadd.f32 %v3819, %v3950
        %v3956 = vadd.f32 %v3820, %v3952
        %s3957 = sld [smem:[#allocation7 + $0x31a]]
        %v3958 = vstv %s3957
        %v3959 = vmul.f32 %v3958, %v745
        %v3960 = vmul.f32 %v3958, %v746
        %v3963 = vrot.slane %v3959, 2
        %v3964 = vrot.slane %v3960, 2
        %v3965 = vsel %vm381, %v3963, %v3964
        %3966 = vrot.lane.b32.xlu0 %v3965, 126
        %v3967 = vpop.permute.xlu0 %3966
        %3968 = vrot.lane.b32.xlu0 %v3964, 126
        %v3969 = vpop.permute.xlu0 %3968
        %v3972 = vadd.f32 %v3836, %v3967
        %v3973 = vadd.f32 %v3837, %v3969
        %s3974 = sld [smem:[#allocation7 + $0x39a]]
        %v3975 = vstv %s3974
        %v3976 = vmul.f32 %v3975, %v745
        %v3977 = vmul.f32 %v3975, %v746
        %v3980 = vrot.slane %v3976, 2
        %v3981 = vrot.slane %v3977, 2
        %v3982 = vsel %vm381, %v3980, %v3981
        %3983 = vrot.lane.b32.xlu0 %v3982, 126
        %v3984 = vpop.permute.xlu0 %3983
        %3985 = vrot.lane.b32.xlu0 %v3981, 126
        %v3986 = vpop.permute.xlu0 %3985
        %v3989 = vadd.f32 %v3853, %v3984
        %v3990 = vadd.f32 %v3854, %v3986
        %s3991 = sld [smem:[#allocation7 + $0x1b]]
        %v3992 = vstv %s3991
        %v3993 = vmul.f32 %v3992, %v901
        %v3994 = vmul.f32 %v3992, %v902
        %v3995 = vadd.f32 %v3870, %v3993
        %v3996 = vadd.f32 %v3871, %v3994
        %s3997 = sld [smem:[#allocation7 + $0x9b]]
        %v3998 = vstv %s3997
        %v3999 = vmul.f32 %v3998, %v901
        %v4000 = vmul.f32 %v3998, %v902
        %v4001 = vadd.f32 %v3887, %v3999
        %v4002 = vadd.f32 %v3888, %v4000
        %s4003 = sld [smem:[#allocation7 + $0x11b]]
        %v4004 = vstv %s4003
        %v4005 = vmul.f32 %v4004, %v901
        %v4006 = vmul.f32 %v4004, %v902
        %v4007 = vadd.f32 %v3904, %v4005
        %v4008 = vadd.f32 %v3905, %v4006
        %s4009 = sld [smem:[#allocation7 + $0x19b]]
        %v4010 = vstv %s4009
        %v4011 = vmul.f32 %v4010, %v901
        %v4012 = vmul.f32 %v4010, %v902
        %v4013 = vadd.f32 %v3921, %v4011
        %v4014 = vadd.f32 %v3922, %v4012
        %s4015 = sld [smem:[#allocation7 + $0x21b]]
        %v4016 = vstv %s4015
        %v4017 = vmul.f32 %v4016, %v901
        %v4018 = vmul.f32 %v4016, %v902
        %v4019 = vadd.f32 %v3938, %v4017
        %v4020 = vadd.f32 %v3939, %v4018
        %s4021 = sld [smem:[#allocation7 + $0x29b]]
        %v4022 = vstv %s4021
        %v4023 = vmul.f32 %v4022, %v901
        %v4024 = vmul.f32 %v4022, %v902
        %v4025 = vadd.f32 %v3955, %v4023
        %v4026 = vadd.f32 %v3956, %v4024
        %s4027 = sld [smem:[#allocation7 + $0x31b]]
        %v4028 = vstv %s4027
        %v4029 = vmul.f32 %v4028, %v901
        %v4030 = vmul.f32 %v4028, %v902
        %v4031 = vadd.f32 %v3972, %v4029
        %v4032 = vadd.f32 %v3973, %v4030
        %s4033 = sld [smem:[#allocation7 + $0x39b]]
        %v4034 = vstv %s4033
        %v4035 = vmul.f32 %v4034, %v901
        %v4036 = vmul.f32 %v4034, %v902
        %v4037 = vadd.f32 %v3989, %v4035
        %v4038 = vadd.f32 %v3990, %v4036
        %s4039 = sld [smem:[#allocation7 + $0x1c]]
        %v4040 = vstv %s4039
        %v4041 = vmul.f32 %v4040, %v901
        %v4042 = vmul.f32 %v4040, %v902
        %4045 = vrot.lane.b32.xlu0 %v4041, 127
        %v4046 = vpop.permute.xlu0 %4045
        %4047 = vrot.lane.b32.xlu0 %v4042, 127
        %v4048 = vpop.permute.xlu0 %4047
        %v4051 = vadd.f32 %v3995, %v4046
        %v4052 = vadd.f32 %v3996, %v4048
        %s4053 = sld [smem:[#allocation7 + $0x9c]]
        %v4054 = vstv %s4053
        %v4055 = vmul.f32 %v4054, %v901
        %v4056 = vmul.f32 %v4054, %v902
        %4059 = vrot.lane.b32.xlu0 %v4055, 127
        %v4060 = vpop.permute.xlu0 %4059
        %4061 = vrot.lane.b32.xlu0 %v4056, 127
        %v4062 = vpop.permute.xlu0 %4061
        %v4065 = vadd.f32 %v4001, %v4060
        %v4066 = vadd.f32 %v4002, %v4062
        %s4067 = sld [smem:[#allocation7 + $0x11c]]
        %v4068 = vstv %s4067
        %v4069 = vmul.f32 %v4068, %v901
        %v4070 = vmul.f32 %v4068, %v902
        %4073 = vrot.lane.b32.xlu0 %v4069, 127
        %v4074 = vpop.permute.xlu0 %4073
        %4075 = vrot.lane.b32.xlu0 %v4070, 127
        %v4076 = vpop.permute.xlu0 %4075
        %v4079 = vadd.f32 %v4007, %v4074
        %v4080 = vadd.f32 %v4008, %v4076
        %s4081 = sld [smem:[#allocation7 + $0x19c]]
        %v4082 = vstv %s4081
        %v4083 = vmul.f32 %v4082, %v901
        %v4084 = vmul.f32 %v4082, %v902
        %4087 = vrot.lane.b32.xlu0 %v4083, 127
        %v4088 = vpop.permute.xlu0 %4087
        %4089 = vrot.lane.b32.xlu0 %v4084, 127
        %v4090 = vpop.permute.xlu0 %4089
        %v4093 = vadd.f32 %v4013, %v4088
        %v4094 = vadd.f32 %v4014, %v4090
        %s4095 = sld [smem:[#allocation7 + $0x21c]]
        %v4096 = vstv %s4095
        %v4097 = vmul.f32 %v4096, %v901
        %v4098 = vmul.f32 %v4096, %v902
        %4101 = vrot.lane.b32.xlu0 %v4097, 127
        %v4102 = vpop.permute.xlu0 %4101
        %4103 = vrot.lane.b32.xlu0 %v4098, 127
        %v4104 = vpop.permute.xlu0 %4103
        %v4107 = vadd.f32 %v4019, %v4102
        %v4108 = vadd.f32 %v4020, %v4104
        %s4109 = sld [smem:[#allocation7 + $0x29c]]
        %v4110 = vstv %s4109
        %v4111 = vmul.f32 %v4110, %v901
        %v4112 = vmul.f32 %v4110, %v902
        %4115 = vrot.lane.b32.xlu0 %v4111, 127
        %v4116 = vpop.permute.xlu0 %4115
        %4117 = vrot.lane.b32.xlu0 %v4112, 127
        %v4118 = vpop.permute.xlu0 %4117
        %v4121 = vadd.f32 %v4025, %v4116
        %v4122 = vadd.f32 %v4026, %v4118
        %s4123 = sld [smem:[#allocation7 + $0x31c]]
        %v4124 = vstv %s4123
        %v4125 = vmul.f32 %v4124, %v901
        %v4126 = vmul.f32 %v4124, %v902
        %4129 = vrot.lane.b32.xlu0 %v4125, 127
        %v4130 = vpop.permute.xlu0 %4129
        %4131 = vrot.lane.b32.xlu0 %v4126, 127
        %v4132 = vpop.permute.xlu0 %4131
        %v4135 = vadd.f32 %v4031, %v4130
        %v4136 = vadd.f32 %v4032, %v4132
        %s4137 = sld [smem:[#allocation7 + $0x39c]]
        %v4138 = vstv %s4137
        %v4139 = vmul.f32 %v4138, %v901
        %v4140 = vmul.f32 %v4138, %v902
        %4143 = vrot.lane.b32.xlu0 %v4139, 127
        %v4144 = vpop.permute.xlu0 %4143
        %4145 = vrot.lane.b32.xlu0 %v4140, 127
        %v4146 = vpop.permute.xlu0 %4145
        %v4149 = vadd.f32 %v4037, %v4144
        %v4150 = vadd.f32 %v4038, %v4146
        %s4151 = sld [smem:[#allocation7 + $0x1d]]
        %v4152 = vstv %s4151
        %v4153 = vmul.f32 %v4152, %v901
        %v4154 = vmul.f32 %v4152, %v902
        %4157 = vrot.lane.b32.xlu0 %v4153, 126
        %v4158 = vpop.permute.xlu0 %4157
        %4159 = vrot.lane.b32.xlu0 %v4154, 126
        %v4160 = vpop.permute.xlu0 %4159
        %v4163 = vadd.f32 %v4051, %v4158
        %v4164 = vadd.f32 %v4052, %v4160
        %s4165 = sld [smem:[#allocation7 + $0x9d]]
        %v4166 = vstv %s4165
        %v4167 = vmul.f32 %v4166, %v901
        %v4168 = vmul.f32 %v4166, %v902
        %4171 = vrot.lane.b32.xlu0 %v4167, 126
        %v4172 = vpop.permute.xlu0 %4171
        %4173 = vrot.lane.b32.xlu0 %v4168, 126
        %v4174 = vpop.permute.xlu0 %4173
        %v4177 = vadd.f32 %v4065, %v4172
        %v4178 = vadd.f32 %v4066, %v4174
        %s4179 = sld [smem:[#allocation7 + $0x11d]]
        %v4180 = vstv %s4179
        %v4181 = vmul.f32 %v4180, %v901
        %v4182 = vmul.f32 %v4180, %v902
        %4185 = vrot.lane.b32.xlu0 %v4181, 126
        %v4186 = vpop.permute.xlu0 %4185
        %4187 = vrot.lane.b32.xlu0 %v4182, 126
        %v4188 = vpop.permute.xlu0 %4187
        %v4191 = vadd.f32 %v4079, %v4186
        %v4192 = vadd.f32 %v4080, %v4188
        %s4193 = sld [smem:[#allocation7 + $0x19d]]
        %v4194 = vstv %s4193
        %v4195 = vmul.f32 %v4194, %v901
        %v4196 = vmul.f32 %v4194, %v902
        %4199 = vrot.lane.b32.xlu0 %v4195, 126
        %v4200 = vpop.permute.xlu0 %4199
        %4201 = vrot.lane.b32.xlu0 %v4196, 126
        %v4202 = vpop.permute.xlu0 %4201
        %v4205 = vadd.f32 %v4093, %v4200
        %v4206 = vadd.f32 %v4094, %v4202
        %s4207 = sld [smem:[#allocation7 + $0x21d]]
        %v4208 = vstv %s4207
        %v4209 = vmul.f32 %v4208, %v901
        %v4210 = vmul.f32 %v4208, %v902
        %4213 = vrot.lane.b32.xlu0 %v4209, 126
        %v4214 = vpop.permute.xlu0 %4213
        %4215 = vrot.lane.b32.xlu0 %v4210, 126
        %v4216 = vpop.permute.xlu0 %4215
        %v4219 = vadd.f32 %v4107, %v4214
        %v4220 = vadd.f32 %v4108, %v4216
        %s4221 = sld [smem:[#allocation7 + $0x29d]]
        %v4222 = vstv %s4221
        %v4223 = vmul.f32 %v4222, %v901
        %v4224 = vmul.f32 %v4222, %v902
        %4227 = vrot.lane.b32.xlu0 %v4223, 126
        %v4228 = vpop.permute.xlu0 %4227
        %4229 = vrot.lane.b32.xlu0 %v4224, 126
        %v4230 = vpop.permute.xlu0 %4229
        %v4233 = vadd.f32 %v4121, %v4228
        %v4234 = vadd.f32 %v4122, %v4230
        %s4235 = sld [smem:[#allocation7 + $0x31d]]
        %v4236 = vstv %s4235
        %v4237 = vmul.f32 %v4236, %v901
        %v4238 = vmul.f32 %v4236, %v902
        %4241 = vrot.lane.b32.xlu0 %v4237, 126
        %v4242 = vpop.permute.xlu0 %4241
        %4243 = vrot.lane.b32.xlu0 %v4238, 126
        %v4244 = vpop.permute.xlu0 %4243
        %v4247 = vadd.f32 %v4135, %v4242
        %v4248 = vadd.f32 %v4136, %v4244
        %s4249 = sld [smem:[#allocation7 + $0x39d]]
        %v4250 = vstv %s4249
        %v4251 = vmul.f32 %v4250, %v901
        %v4252 = vmul.f32 %v4250, %v902
        %4255 = vrot.lane.b32.xlu0 %v4251, 126
        %v4256 = vpop.permute.xlu0 %4255
        %4257 = vrot.lane.b32.xlu0 %v4252, 126
        %v4258 = vpop.permute.xlu0 %4257
        %v4261 = vadd.f32 %v4149, %v4256
        %v4262 = vadd.f32 %v4150, %v4258
        %s4263 = sld [smem:[#allocation7 + $0x1e]]
        %v4264 = vstv %s4263
        %v4265 = vmul.f32 %v4264, %v901
        %v4266 = vmul.f32 %v4264, %v902
        %v4269 = vrot.slane %v4265, 1
        %v4270 = vrot.slane %v4266, 1
        %v4271 = vsel %vm321, %v4269, %v4270
        %v4274 = vadd.f32 %v4163, %v4271
        %v4275 = vadd.f32 %v4164, %v4270
        %s4276 = sld [smem:[#allocation7 + $0x9e]]
        %v4277 = vstv %s4276
        %v4278 = vmul.f32 %v4277, %v901
        %v4279 = vmul.f32 %v4277, %v902
        %v4282 = vrot.slane %v4278, 1
        %v4283 = vrot.slane %v4279, 1
        %v4284 = vsel %vm321, %v4282, %v4283
        %v4287 = vadd.f32 %v4177, %v4284
        %v4288 = vadd.f32 %v4178, %v4283
        %s4289 = sld [smem:[#allocation7 + $0x11e]]
        %v4290 = vstv %s4289
        %v4291 = vmul.f32 %v4290, %v901
        %v4292 = vmul.f32 %v4290, %v902
        %v4295 = vrot.slane %v4291, 1
        %v4296 = vrot.slane %v4292, 1
        %v4297 = vsel %vm321, %v4295, %v4296
        %v4300 = vadd.f32 %v4191, %v4297
        %v4301 = vadd.f32 %v4192, %v4296
        %s4302 = sld [smem:[#allocation7 + $0x19e]]
        %v4303 = vstv %s4302
        %v4304 = vmul.f32 %v4303, %v901
        %v4305 = vmul.f32 %v4303, %v902
        %v4308 = vrot.slane %v4304, 1
        %v4309 = vrot.slane %v4305, 1
        %v4310 = vsel %vm321, %v4308, %v4309
        %v4313 = vadd.f32 %v4205, %v4310
        %v4314 = vadd.f32 %v4206, %v4309
        %s4315 = sld [smem:[#allocation7 + $0x21e]]
        %v4316 = vstv %s4315
        %v4317 = vmul.f32 %v4316, %v901
        %v4318 = vmul.f32 %v4316, %v902
        %v4321 = vrot.slane %v4317, 1
        %v4322 = vrot.slane %v4318, 1
        %v4323 = vsel %vm321, %v4321, %v4322
        %v4326 = vadd.f32 %v4219, %v4323
        %v4327 = vadd.f32 %v4220, %v4322
        %s4328 = sld [smem:[#allocation7 + $0x29e]]
        %v4329 = vstv %s4328
        %v4330 = vmul.f32 %v4329, %v901
        %v4331 = vmul.f32 %v4329, %v902
        %v4334 = vrot.slane %v4330, 1
        %v4335 = vrot.slane %v4331, 1
        %v4336 = vsel %vm321, %v4334, %v4335
        %v4339 = vadd.f32 %v4233, %v4336
        %v4340 = vadd.f32 %v4234, %v4335
        %s4341 = sld [smem:[#allocation7 + $0x31e]]
        %v4342 = vstv %s4341
        %v4343 = vmul.f32 %v4342, %v901
        %v4344 = vmul.f32 %v4342, %v902
        %v4347 = vrot.slane %v4343, 1
        %v4348 = vrot.slane %v4344, 1
        %v4349 = vsel %vm321, %v4347, %v4348
        %v4352 = vadd.f32 %v4247, %v4349
        %v4353 = vadd.f32 %v4248, %v4348
        %s4354 = sld [smem:[#allocation7 + $0x39e]]
        %v4355 = vstv %s4354
        %v4356 = vmul.f32 %v4355, %v901
        %v4357 = vmul.f32 %v4355, %v902
        %v4360 = vrot.slane %v4356, 1
        %v4361 = vrot.slane %v4357, 1
        %v4362 = vsel %vm321, %v4360, %v4361
        %v4365 = vadd.f32 %v4261, %v4362
        %v4366 = vadd.f32 %v4262, %v4361
        %s4367 = sld [smem:[#allocation7 + $0x1f]]
        %v4368 = vstv %s4367
        %v4369 = vmul.f32 %v4368, %v901
        %v4370 = vmul.f32 %v4368, %v902
        %v4373 = vrot.slane %v4369, 1
        %v4374 = vrot.slane %v4370, 1
        %v4375 = vsel %vm321, %v4373, %v4374
        %4376 = vrot.lane.b32.xlu0 %v4375, 127
        %v4377 = vpop.permute.xlu0 %4376
        %4378 = vrot.lane.b32.xlu0 %v4374, 127
        %v4379 = vpop.permute.xlu0 %4378
        %v4382 = vadd.f32 %v4274, %v4377
        %v4383 = vadd.f32 %v4275, %v4379
        %s4384 = sld [smem:[#allocation7 + $0x9f]]
        %v4385 = vstv %s4384
        %v4386 = vmul.f32 %v4385, %v901
        %v4387 = vmul.f32 %v4385, %v902
        %v4390 = vrot.slane %v4386, 1
        %v4391 = vrot.slane %v4387, 1
        %v4392 = vsel %vm321, %v4390, %v4391
        %4393 = vrot.lane.b32.xlu0 %v4392, 127
        %v4394 = vpop.permute.xlu0 %4393
        %4395 = vrot.lane.b32.xlu0 %v4391, 127
        %v4396 = vpop.permute.xlu0 %4395
        %v4399 = vadd.f32 %v4287, %v4394
        %v4400 = vadd.f32 %v4288, %v4396
        %s4401 = sld [smem:[#allocation7 + $0x11f]]
        %v4402 = vstv %s4401
        %v4403 = vmul.f32 %v4402, %v901
        %v4404 = vmul.f32 %v4402, %v902
        %v4407 = vrot.slane %v4403, 1
        %v4408 = vrot.slane %v4404, 1
        %v4409 = vsel %vm321, %v4407, %v4408
        %4410 = vrot.lane.b32.xlu0 %v4409, 127
        %v4411 = vpop.permute.xlu0 %4410
        %4412 = vrot.lane.b32.xlu0 %v4408, 127
        %v4413 = vpop.permute.xlu0 %4412
        %v4416 = vadd.f32 %v4300, %v4411
        %v4417 = vadd.f32 %v4301, %v4413
        %s4418 = sld [smem:[#allocation7 + $0x19f]]
        %v4419 = vstv %s4418
        %v4420 = vmul.f32 %v4419, %v901
        %v4421 = vmul.f32 %v4419, %v902
        %v4424 = vrot.slane %v4420, 1
        %v4425 = vrot.slane %v4421, 1
        %v4426 = vsel %vm321, %v4424, %v4425
        %4427 = vrot.lane.b32.xlu0 %v4426, 127
        %v4428 = vpop.permute.xlu0 %4427
        %4429 = vrot.lane.b32.xlu0 %v4425, 127
        %v4430 = vpop.permute.xlu0 %4429
        %v4433 = vadd.f32 %v4313, %v4428
        %v4434 = vadd.f32 %v4314, %v4430
        %s4435 = sld [smem:[#allocation7 + $0x21f]]
        %v4436 = vstv %s4435
        %v4437 = vmul.f32 %v4436, %v901
        %v4438 = vmul.f32 %v4436, %v902
        %v4441 = vrot.slane %v4437, 1
        %v4442 = vrot.slane %v4438, 1
        %v4443 = vsel %vm321, %v4441, %v4442
        %4444 = vrot.lane.b32.xlu0 %v4443, 127
        %v4445 = vpop.permute.xlu0 %4444
        %4446 = vrot.lane.b32.xlu0 %v4442, 127
        %v4447 = vpop.permute.xlu0 %4446
        %v4450 = vadd.f32 %v4326, %v4445
        %v4451 = vadd.f32 %v4327, %v4447
        %s4452 = sld [smem:[#allocation7 + $0x29f]]
        %v4453 = vstv %s4452
        %v4454 = vmul.f32 %v4453, %v901
        %v4455 = vmul.f32 %v4453, %v902
        %v4458 = vrot.slane %v4454, 1
        %v4459 = vrot.slane %v4455, 1
        %v4460 = vsel %vm321, %v4458, %v4459
        %4461 = vrot.lane.b32.xlu0 %v4460, 127
        %v4462 = vpop.permute.xlu0 %4461
        %4463 = vrot.lane.b32.xlu0 %v4459, 127
        %v4464 = vpop.permute.xlu0 %4463
        %v4467 = vadd.f32 %v4339, %v4462
        %v4468 = vadd.f32 %v4340, %v4464
        %s4469 = sld [smem:[#allocation7 + $0x31f]]
        %v4470 = vstv %s4469
        %v4471 = vmul.f32 %v4470, %v901
        %v4472 = vmul.f32 %v4470, %v902
        %v4475 = vrot.slane %v4471, 1
        %v4476 = vrot.slane %v4472, 1
        %v4477 = vsel %vm321, %v4475, %v4476
        %4478 = vrot.lane.b32.xlu0 %v4477, 127
        %v4479 = vpop.permute.xlu0 %4478
        %4480 = vrot.lane.b32.xlu0 %v4476, 127
        %v4481 = vpop.permute.xlu0 %4480
        %v4484 = vadd.f32 %v4352, %v4479
        %v4485 = vadd.f32 %v4353, %v4481
        %s4486 = sld [smem:[#allocation7 + $0x39f]]
        %v4487 = vstv %s4486
        %v4488 = vmul.f32 %v4487, %v901
        %v4489 = vmul.f32 %v4487, %v902
        %v4492 = vrot.slane %v4488, 1
        %v4493 = vrot.slane %v4489, 1
        %v4494 = vsel %vm321, %v4492, %v4493
        %4495 = vrot.lane.b32.xlu0 %v4494, 127
        %v4496 = vpop.permute.xlu0 %4495
        %4497 = vrot.lane.b32.xlu0 %v4493, 127
        %v4498 = vpop.permute.xlu0 %4497
        %v4501 = vadd.f32 %v4365, %v4496
        %v4502 = vadd.f32 %v4366, %v4498
        %s4503 = sld [smem:[#allocation7 + $0x20]]
        %v4504 = vstv %s4503
        %v4505 = vmul.f32 %v4504, %v901
        %v4506 = vmul.f32 %v4504, %v902
        %v4509 = vrot.slane %v4505, 1
        %v4510 = vrot.slane %v4506, 1
        %v4511 = vsel %vm321, %v4509, %v4510
        %4512 = vrot.lane.b32.xlu0 %v4511, 126
        %v4513 = vpop.permute.xlu0 %4512
        %4514 = vrot.lane.b32.xlu0 %v4510, 126
        %v4515 = vpop.permute.xlu0 %4514
        %v4518 = vadd.f32 %v4382, %v4513
        %v4519 = vadd.f32 %v4383, %v4515
        %s4520 = sld [smem:[#allocation7 + $0xa0]]
        %v4521 = vstv %s4520
        %v4522 = vmul.f32 %v4521, %v901
        %v4523 = vmul.f32 %v4521, %v902
        %v4526 = vrot.slane %v4522, 1
        %v4527 = vrot.slane %v4523, 1
        %v4528 = vsel %vm321, %v4526, %v4527
        %4529 = vrot.lane.b32.xlu0 %v4528, 126
        %v4530 = vpop.permute.xlu0 %4529
        %4531 = vrot.lane.b32.xlu0 %v4527, 126
        %v4532 = vpop.permute.xlu0 %4531
        %v4535 = vadd.f32 %v4399, %v4530
        %v4536 = vadd.f32 %v4400, %v4532
        %s4537 = sld [smem:[#allocation7 + $0x120]]
        %v4538 = vstv %s4537
        %v4539 = vmul.f32 %v4538, %v901
        %v4540 = vmul.f32 %v4538, %v902
        %v4543 = vrot.slane %v4539, 1
        %v4544 = vrot.slane %v4540, 1
        %v4545 = vsel %vm321, %v4543, %v4544
        %4546 = vrot.lane.b32.xlu0 %v4545, 126
        %v4547 = vpop.permute.xlu0 %4546
        %4548 = vrot.lane.b32.xlu0 %v4544, 126
        %v4549 = vpop.permute.xlu0 %4548
        %v4552 = vadd.f32 %v4416, %v4547
        %v4553 = vadd.f32 %v4417, %v4549
        %s4554 = sld [smem:[#allocation7 + $0x1a0]]
        %v4555 = vstv %s4554
        %v4556 = vmul.f32 %v4555, %v901
        %v4557 = vmul.f32 %v4555, %v902
        %v4560 = vrot.slane %v4556, 1
        %v4561 = vrot.slane %v4557, 1
        %v4562 = vsel %vm321, %v4560, %v4561
        %4563 = vrot.lane.b32.xlu0 %v4562, 126
        %v4564 = vpop.permute.xlu0 %4563
        %4565 = vrot.lane.b32.xlu0 %v4561, 126
        %v4566 = vpop.permute.xlu0 %4565
        %v4569 = vadd.f32 %v4433, %v4564
        %v4570 = vadd.f32 %v4434, %v4566
        %s4571 = sld [smem:[#allocation7 + $0x220]]
        %v4572 = vstv %s4571
        %v4573 = vmul.f32 %v4572, %v901
        %v4574 = vmul.f32 %v4572, %v902
        %v4577 = vrot.slane %v4573, 1
        %v4578 = vrot.slane %v4574, 1
        %v4579 = vsel %vm321, %v4577, %v4578
        %4580 = vrot.lane.b32.xlu0 %v4579, 126
        %v4581 = vpop.permute.xlu0 %4580
        %4582 = vrot.lane.b32.xlu0 %v4578, 126
        %v4583 = vpop.permute.xlu0 %4582
        %v4586 = vadd.f32 %v4450, %v4581
        %v4587 = vadd.f32 %v4451, %v4583
        %s4588 = sld [smem:[#allocation7 + $0x2a0]]
        %v4589 = vstv %s4588
        %v4590 = vmul.f32 %v4589, %v901
        %v4591 = vmul.f32 %v4589, %v902
        %v4594 = vrot.slane %v4590, 1
        %v4595 = vrot.slane %v4591, 1
        %v4596 = vsel %vm321, %v4594, %v4595
        %4597 = vrot.lane.b32.xlu0 %v4596, 126
        %v4598 = vpop.permute.xlu0 %4597
        %4599 = vrot.lane.b32.xlu0 %v4595, 126
        %v4600 = vpop.permute.xlu0 %4599
        %v4603 = vadd.f32 %v4467, %v4598
        %v4604 = vadd.f32 %v4468, %v4600
        %s4605 = sld [smem:[#allocation7 + $0x320]]
        %v4606 = vstv %s4605
        %v4607 = vmul.f32 %v4606, %v901
        %v4608 = vmul.f32 %v4606, %v902
        %v4611 = vrot.slane %v4607, 1
        %v4612 = vrot.slane %v4608, 1
        %v4613 = vsel %vm321, %v4611, %v4612
        %4614 = vrot.lane.b32.xlu0 %v4613, 126
        %v4615 = vpop.permute.xlu0 %4614
        %4616 = vrot.lane.b32.xlu0 %v4612, 126
        %v4617 = vpop.permute.xlu0 %4616
        %v4620 = vadd.f32 %v4484, %v4615
        %v4621 = vadd.f32 %v4485, %v4617
        %s4622 = sld [smem:[#allocation7 + $0x3a0]]
        %v4623 = vstv %s4622
        %v4624 = vmul.f32 %v4623, %v901
        %v4625 = vmul.f32 %v4623, %v902
        %v4628 = vrot.slane %v4624, 1
        %v4629 = vrot.slane %v4625, 1
        %v4630 = vsel %vm321, %v4628, %v4629
        %4631 = vrot.lane.b32.xlu0 %v4630, 126
        %v4632 = vpop.permute.xlu0 %4631
        %4633 = vrot.lane.b32.xlu0 %v4629, 126
        %v4634 = vpop.permute.xlu0 %4633
        %v4637 = vadd.f32 %v4501, %v4632
        %v4638 = vadd.f32 %v4502, %v4634
        %s4639 = sld [smem:[#allocation7 + $0x21]]
        %v4640 = vstv %s4639
        %v4641 = vmul.f32 %v4640, %v901
        %v4642 = vmul.f32 %v4640, %v902
        %v4645 = vrot.slane %v4641, 2
        %v4646 = vrot.slane %v4642, 2
        %v4647 = vsel %vm381, %v4645, %v4646
        %v4650 = vadd.f32 %v4518, %v4647
        %v4651 = vadd.f32 %v4519, %v4646
        %s4652 = sld [smem:[#allocation7 + $0xa1]]
        %v4653 = vstv %s4652
        %v4654 = vmul.f32 %v4653, %v901
        %v4655 = vmul.f32 %v4653, %v902
        %v4658 = vrot.slane %v4654, 2
        %v4659 = vrot.slane %v4655, 2
        %v4660 = vsel %vm381, %v4658, %v4659
        %v4663 = vadd.f32 %v4535, %v4660
        %v4664 = vadd.f32 %v4536, %v4659
        %s4665 = sld [smem:[#allocation7 + $0x121]]
        %v4666 = vstv %s4665
        %v4667 = vmul.f32 %v4666, %v901
        %v4668 = vmul.f32 %v4666, %v902
        %v4671 = vrot.slane %v4667, 2
        %v4672 = vrot.slane %v4668, 2
        %v4673 = vsel %vm381, %v4671, %v4672
        %v4676 = vadd.f32 %v4552, %v4673
        %v4677 = vadd.f32 %v4553, %v4672
        %s4678 = sld [smem:[#allocation7 + $0x1a1]]
        %v4679 = vstv %s4678
        %v4680 = vmul.f32 %v4679, %v901
        %v4681 = vmul.f32 %v4679, %v902
        %v4684 = vrot.slane %v4680, 2
        %v4685 = vrot.slane %v4681, 2
        %v4686 = vsel %vm381, %v4684, %v4685
        %v4689 = vadd.f32 %v4569, %v4686
        %v4690 = vadd.f32 %v4570, %v4685
        %s4691 = sld [smem:[#allocation7 + $0x221]]
        %v4692 = vstv %s4691
        %v4693 = vmul.f32 %v4692, %v901
        %v4694 = vmul.f32 %v4692, %v902
        %v4697 = vrot.slane %v4693, 2
        %v4698 = vrot.slane %v4694, 2
        %v4699 = vsel %vm381, %v4697, %v4698
        %v4702 = vadd.f32 %v4586, %v4699
        %v4703 = vadd.f32 %v4587, %v4698
        %s4704 = sld [smem:[#allocation7 + $0x2a1]]
        %v4705 = vstv %s4704
        %v4706 = vmul.f32 %v4705, %v901
        %v4707 = vmul.f32 %v4705, %v902
        %v4710 = vrot.slane %v4706, 2
        %v4711 = vrot.slane %v4707, 2
        %v4712 = vsel %vm381, %v4710, %v4711
        %v4715 = vadd.f32 %v4603, %v4712
        %v4716 = vadd.f32 %v4604, %v4711
        %s4717 = sld [smem:[#allocation7 + $0x321]]
        %v4718 = vstv %s4717
        %v4719 = vmul.f32 %v4718, %v901
        %v4720 = vmul.f32 %v4718, %v902
        %v4723 = vrot.slane %v4719, 2
        %v4724 = vrot.slane %v4720, 2
        %v4725 = vsel %vm381, %v4723, %v4724
        %v4728 = vadd.f32 %v4620, %v4725
        %v4729 = vadd.f32 %v4621, %v4724
        %s4730 = sld [smem:[#allocation7 + $0x3a1]]
        %v4731 = vstv %s4730
        %v4732 = vmul.f32 %v4731, %v901
        %v4733 = vmul.f32 %v4731, %v902
        %v4736 = vrot.slane %v4732, 2
        %v4737 = vrot.slane %v4733, 2
        %v4738 = vsel %vm381, %v4736, %v4737
        %v4741 = vadd.f32 %v4637, %v4738
        %v4742 = vadd.f32 %v4638, %v4737
        %s4743 = sld [smem:[#allocation7 + $0x22]]
        %v4744 = vstv %s4743
        %v4745 = vmul.f32 %v4744, %v901
        %v4746 = vmul.f32 %v4744, %v902
        %v4749 = vrot.slane %v4745, 2
        %v4750 = vrot.slane %v4746, 2
        %v4751 = vsel %vm381, %v4749, %v4750
        %4752 = vrot.lane.b32.xlu0 %v4751, 127
        %v4753 = vpop.permute.xlu0 %4752
        %4754 = vrot.lane.b32.xlu0 %v4750, 127
        %v4755 = vpop.permute.xlu0 %4754
        %v4758 = vadd.f32 %v4650, %v4753
        %v4759 = vadd.f32 %v4651, %v4755
        %s4760 = sld [smem:[#allocation7 + $0xa2]]
        %v4761 = vstv %s4760
        %v4762 = vmul.f32 %v4761, %v901
        %v4763 = vmul.f32 %v4761, %v902
        %v4766 = vrot.slane %v4762, 2
        %v4767 = vrot.slane %v4763, 2
        %v4768 = vsel %vm381, %v4766, %v4767
        %4769 = vrot.lane.b32.xlu0 %v4768, 127
        %v4770 = vpop.permute.xlu0 %4769
        %4771 = vrot.lane.b32.xlu0 %v4767, 127
        %v4772 = vpop.permute.xlu0 %4771
        %v4775 = vadd.f32 %v4663, %v4770
        %v4776 = vadd.f32 %v4664, %v4772
        %s4777 = sld [smem:[#allocation7 + $0x122]]
        %v4778 = vstv %s4777
        %v4779 = vmul.f32 %v4778, %v901
        %v4780 = vmul.f32 %v4778, %v902
        %v4783 = vrot.slane %v4779, 2
        %v4784 = vrot.slane %v4780, 2
        %v4785 = vsel %vm381, %v4783, %v4784
        %4786 = vrot.lane.b32.xlu0 %v4785, 127
        %v4787 = vpop.permute.xlu0 %4786
        %4788 = vrot.lane.b32.xlu0 %v4784, 127
        %v4789 = vpop.permute.xlu0 %4788
        %v4792 = vadd.f32 %v4676, %v4787
        %v4793 = vadd.f32 %v4677, %v4789
        %s4794 = sld [smem:[#allocation7 + $0x1a2]]
        %v4795 = vstv %s4794
        %v4796 = vmul.f32 %v4795, %v901
        %v4797 = vmul.f32 %v4795, %v902
        %v4800 = vrot.slane %v4796, 2
        %v4801 = vrot.slane %v4797, 2
        %v4802 = vsel %vm381, %v4800, %v4801
        %4803 = vrot.lane.b32.xlu0 %v4802, 127
        %v4804 = vpop.permute.xlu0 %4803
        %4805 = vrot.lane.b32.xlu0 %v4801, 127
        %v4806 = vpop.permute.xlu0 %4805
        %v4809 = vadd.f32 %v4689, %v4804
        %v4810 = vadd.f32 %v4690, %v4806
        %s4811 = sld [smem:[#allocation7 + $0x222]]
        %v4812 = vstv %s4811
        %v4813 = vmul.f32 %v4812, %v901
        %v4814 = vmul.f32 %v4812, %v902
        %v4817 = vrot.slane %v4813, 2
        %v4818 = vrot.slane %v4814, 2
        %v4819 = vsel %vm381, %v4817, %v4818
        %4820 = vrot.lane.b32.xlu0 %v4819, 127
        %v4821 = vpop.permute.xlu0 %4820
        %4822 = vrot.lane.b32.xlu0 %v4818, 127
        %v4823 = vpop.permute.xlu0 %4822
        %v4826 = vadd.f32 %v4702, %v4821
        %v4827 = vadd.f32 %v4703, %v4823
        %s4828 = sld [smem:[#allocation7 + $0x2a2]]
        %v4829 = vstv %s4828
        %v4830 = vmul.f32 %v4829, %v901
        %v4831 = vmul.f32 %v4829, %v902
        %v4834 = vrot.slane %v4830, 2
        %v4835 = vrot.slane %v4831, 2
        %v4836 = vsel %vm381, %v4834, %v4835
        %4837 = vrot.lane.b32.xlu0 %v4836, 127
        %v4838 = vpop.permute.xlu0 %4837
        %4839 = vrot.lane.b32.xlu0 %v4835, 127
        %v4840 = vpop.permute.xlu0 %4839
        %v4843 = vadd.f32 %v4715, %v4838
        %v4844 = vadd.f32 %v4716, %v4840
        %s4845 = sld [smem:[#allocation7 + $0x322]]
        %v4846 = vstv %s4845
        %v4847 = vmul.f32 %v4846, %v901
        %v4848 = vmul.f32 %v4846, %v902
        %v4851 = vrot.slane %v4847, 2
        %v4852 = vrot.slane %v4848, 2
        %v4853 = vsel %vm381, %v4851, %v4852
        %4854 = vrot.lane.b32.xlu0 %v4853, 127
        %v4855 = vpop.permute.xlu0 %4854
        %4856 = vrot.lane.b32.xlu0 %v4852, 127
        %v4857 = vpop.permute.xlu0 %4856
        %v4860 = vadd.f32 %v4728, %v4855
        %v4861 = vadd.f32 %v4729, %v4857
        %s4862 = sld [smem:[#allocation7 + $0x3a2]]
        %v4863 = vstv %s4862
        %v4864 = vmul.f32 %v4863, %v901
        %v4865 = vmul.f32 %v4863, %v902
        %v4868 = vrot.slane %v4864, 2
        %v4869 = vrot.slane %v4865, 2
        %v4870 = vsel %vm381, %v4868, %v4869
        %4871 = vrot.lane.b32.xlu0 %v4870, 127
        %v4872 = vpop.permute.xlu0 %4871
        %4873 = vrot.lane.b32.xlu0 %v4869, 127
        %v4874 = vpop.permute.xlu0 %4873
        %v4877 = vadd.f32 %v4741, %v4872
        %v4878 = vadd.f32 %v4742, %v4874
        %s4879 = sld [smem:[#allocation7 + $0x23]]
        %v4880 = vstv %s4879
        %v4881 = vmul.f32 %v4880, %v901
        %v4882 = vmul.f32 %v4880, %v902
        %v4885 = vrot.slane %v4881, 2
        %v4886 = vrot.slane %v4882, 2
        %v4887 = vsel %vm381, %v4885, %v4886
        %4888 = vrot.lane.b32.xlu0 %v4887, 126
        %v4889 = vpop.permute.xlu0 %4888
        %4890 = vrot.lane.b32.xlu0 %v4886, 126
        %v4891 = vpop.permute.xlu0 %4890
        %v4894 = vadd.f32 %v4758, %v4889
        %v4895 = vadd.f32 %v4759, %v4891
        %s4896 = sld [smem:[#allocation7 + $0xa3]]
        %v4897 = vstv %s4896
        %v4898 = vmul.f32 %v4897, %v901
        %v4899 = vmul.f32 %v4897, %v902
        %v4902 = vrot.slane %v4898, 2
        %v4903 = vrot.slane %v4899, 2
        %v4904 = vsel %vm381, %v4902, %v4903
        %4905 = vrot.lane.b32.xlu0 %v4904, 126
        %v4906 = vpop.permute.xlu0 %4905
        %4907 = vrot.lane.b32.xlu0 %v4903, 126
        %v4908 = vpop.permute.xlu0 %4907
        %v4911 = vadd.f32 %v4775, %v4906
        %v4912 = vadd.f32 %v4776, %v4908
        %s4913 = sld [smem:[#allocation7 + $0x123]]
        %v4914 = vstv %s4913
        %v4915 = vmul.f32 %v4914, %v901
        %v4916 = vmul.f32 %v4914, %v902
        %v4919 = vrot.slane %v4915, 2
        %v4920 = vrot.slane %v4916, 2
        %v4921 = vsel %vm381, %v4919, %v4920
        %4922 = vrot.lane.b32.xlu0 %v4921, 126
        %v4923 = vpop.permute.xlu0 %4922
        %4924 = vrot.lane.b32.xlu0 %v4920, 126
        %v4925 = vpop.permute.xlu0 %4924
        %v4928 = vadd.f32 %v4792, %v4923
        %v4929 = vadd.f32 %v4793, %v4925
        %s4930 = sld [smem:[#allocation7 + $0x1a3]]
        %v4931 = vstv %s4930
        %v4932 = vmul.f32 %v4931, %v901
        %v4933 = vmul.f32 %v4931, %v902
        %v4936 = vrot.slane %v4932, 2
        %v4937 = vrot.slane %v4933, 2
        %v4938 = vsel %vm381, %v4936, %v4937
        %4939 = vrot.lane.b32.xlu0 %v4938, 126
        %v4940 = vpop.permute.xlu0 %4939
        %4941 = vrot.lane.b32.xlu0 %v4937, 126
        %v4942 = vpop.permute.xlu0 %4941
        %v4945 = vadd.f32 %v4809, %v4940
        %v4946 = vadd.f32 %v4810, %v4942
        %s4947 = sld [smem:[#allocation7 + $0x223]]
        %v4948 = vstv %s4947
        %v4949 = vmul.f32 %v4948, %v901
        %v4950 = vmul.f32 %v4948, %v902
        %v4953 = vrot.slane %v4949, 2
        %v4954 = vrot.slane %v4950, 2
        %v4955 = vsel %vm381, %v4953, %v4954
        %4956 = vrot.lane.b32.xlu0 %v4955, 126
        %v4957 = vpop.permute.xlu0 %4956
        %4958 = vrot.lane.b32.xlu0 %v4954, 126
        %v4959 = vpop.permute.xlu0 %4958
        %v4962 = vadd.f32 %v4826, %v4957
        %v4963 = vadd.f32 %v4827, %v4959
        %s4964 = sld [smem:[#allocation7 + $0x2a3]]
        %v4965 = vstv %s4964
        %v4966 = vmul.f32 %v4965, %v901
        %v4967 = vmul.f32 %v4965, %v902
        %v4970 = vrot.slane %v4966, 2
        %v4971 = vrot.slane %v4967, 2
        %v4972 = vsel %vm381, %v4970, %v4971
        %4973 = vrot.lane.b32.xlu0 %v4972, 126
        %v4974 = vpop.permute.xlu0 %4973
        %4975 = vrot.lane.b32.xlu0 %v4971, 126
        %v4976 = vpop.permute.xlu0 %4975
        %v4979 = vadd.f32 %v4843, %v4974
        %v4980 = vadd.f32 %v4844, %v4976
        %s4981 = sld [smem:[#allocation7 + $0x323]]
        %v4982 = vstv %s4981
        %v4983 = vmul.f32 %v4982, %v901
        %v4984 = vmul.f32 %v4982, %v902
        %v4987 = vrot.slane %v4983, 2
        %v4988 = vrot.slane %v4984, 2
        %v4989 = vsel %vm381, %v4987, %v4988
        %4990 = vrot.lane.b32.xlu0 %v4989, 126
        %v4991 = vpop.permute.xlu0 %4990
        %4992 = vrot.lane.b32.xlu0 %v4988, 126
        %v4993 = vpop.permute.xlu0 %4992
        %v4996 = vadd.f32 %v4860, %v4991
        %v4997 = vadd.f32 %v4861, %v4993
        %s4998 = sld [smem:[#allocation7 + $0x3a3]]
        %v4999 = vstv %s4998
        %v5000 = vmul.f32 %v4999, %v901
        %v5001 = vmul.f32 %v4999, %v902
        %v5004 = vrot.slane %v5000, 2
        %v5005 = vrot.slane %v5001, 2
        %v5006 = vsel %vm381, %v5004, %v5005
        %5007 = vrot.lane.b32.xlu0 %v5006, 126
        %v5008 = vpop.permute.xlu0 %5007
        %5009 = vrot.lane.b32.xlu0 %v5005, 126
        %v5010 = vpop.permute.xlu0 %5009
        %v5013 = vadd.f32 %v4877, %v5008
        %v5014 = vadd.f32 %v4878, %v5010
        %v5015 = vmax.f32 %v4894, 0.0
        %v5016 = vmax.f32 %v4895, 0.0
        %vm5017 = vcmask 113664
        %v5018 = vsel %vm5017, %v5015, -inf
        %vm5019 = vcmask 111616
        %v5020 = vsel %vm5019, %v5016, -inf
        %v5021 = vmax.f32 %v5018, %v5020
        %5022 = vmax.xlane.f32.xlu0 %v5021
        %v5023 = vpop.xlane.xlu0 %5022
        %v5024 = vrot.slane %v5023, 4
        %v5025 = vmax.f32 %v5023, %v5024
        %v5026 = vrot.slane %v5025, 2
        %v5027 = vmax.f32 %v5025, %v5026
        %v5028 = vrot.slane %v5027, 1
        %v5029 = vmax.f32 %v5027, %v5028
        %s5030 = vtos %v5029
        %v5031 = vstv %s5030
        %v5032 = vmax.f32 %v4911, 0.0
        %v5033 = vmax.f32 %v4912, 0.0
        %v5034 = vsel %vm5017, %v5032, -inf
        %v5035 = vsel %vm5019, %v5033, -inf
        %v5036 = vmax.f32 %v5034, %v5035
        %5037 = vmax.xlane.f32.xlu0 %v5036
        %v5038 = vpop.xlane.xlu0 %5037
        %v5039 = vrot.slane %v5038, 4
        %v5040 = vmax.f32 %v5038, %v5039
        %v5041 = vrot.slane %v5040, 2
        %v5042 = vmax.f32 %v5040, %v5041
        %v5043 = vrot.slane %v5042, 1
        %v5044 = vmax.f32 %v5042, %v5043
        %s5045 = vtos %v5044
        %v5046 = vstv %s5045
        %v5047 = vmax.f32 %v4928, 0.0
        %v5048 = vmax.f32 %v4929, 0.0
        %v5049 = vsel %vm5017, %v5047, -inf
        %v5050 = vsel %vm5019, %v5048, -inf
        %v5051 = vmax.f32 %v5049, %v5050
        %5052 = vmax.xlane.f32.xlu0 %v5051
        %v5053 = vpop.xlane.xlu0 %5052
        %v5054 = vrot.slane %v5053, 4
        %v5055 = vmax.f32 %v5053, %v5054
        %v5056 = vrot.slane %v5055, 2
        %v5057 = vmax.f32 %v5055, %v5056
        %v5058 = vrot.slane %v5057, 1
        %v5059 = vmax.f32 %v5057, %v5058
        %s5060 = vtos %v5059
        %v5061 = vstv %s5060
        %v5062 = vmax.f32 %v4945, 0.0
        %v5063 = vmax.f32 %v4946, 0.0
        %v5064 = vsel %vm5017, %v5062, -inf
        %v5065 = vsel %vm5019, %v5063, -inf
        %v5066 = vmax.f32 %v5064, %v5065
        %5067 = vmax.xlane.f32.xlu0 %v5066
        %v5068 = vpop.xlane.xlu0 %5067
        %v5069 = vrot.slane %v5068, 4
        %v5070 = vmax.f32 %v5068, %v5069
        %v5071 = vrot.slane %v5070, 2
        %v5072 = vmax.f32 %v5070, %v5071
        %v5073 = vrot.slane %v5072, 1
        %v5074 = vmax.f32 %v5072, %v5073
        %s5075 = vtos %v5074
        %v5076 = vstv %s5075
        %v5077 = vmax.f32 %v4962, 0.0
        %v5078 = vmax.f32 %v4963, 0.0
        %v5079 = vsel %vm5017, %v5077, -inf
        %v5080 = vsel %vm5019, %v5078, -inf
        %v5081 = vmax.f32 %v5079, %v5080
        %5082 = vmax.xlane.f32.xlu0 %v5081
        %v5083 = vpop.xlane.xlu0 %5082
        %v5084 = vrot.slane %v5083, 4
        %v5085 = vmax.f32 %v5083, %v5084
        %v5086 = vrot.slane %v5085, 2
        %v5087 = vmax.f32 %v5085, %v5086
        %v5088 = vrot.slane %v5087, 1
        %v5089 = vmax.f32 %v5087, %v5088
        %s5090 = vtos %v5089
        %v5091 = vstv %s5090
        %v5092 = vmax.f32 %v4979, 0.0
        %v5093 = vmax.f32 %v4980, 0.0
        %v5094 = vsel %vm5017, %v5092, -inf
        %v5095 = vsel %vm5019, %v5093, -inf
        %v5096 = vmax.f32 %v5094, %v5095
        %5097 = vmax.xlane.f32.xlu0 %v5096
        %v5098 = vpop.xlane.xlu0 %5097
        %v5099 = vrot.slane %v5098, 4
        %v5100 = vmax.f32 %v5098, %v5099
        %v5101 = vrot.slane %v5100, 2
        %v5102 = vmax.f32 %v5100, %v5101
        %v5103 = vrot.slane %v5102, 1
        %v5104 = vmax.f32 %v5102, %v5103
        %s5105 = vtos %v5104
        %v5106 = vstv %s5105
        %v5107 = vmax.f32 %v4996, 0.0
        %v5108 = vmax.f32 %v4997, 0.0
        %v5109 = vsel %vm5017, %v5107, -inf
        %v5110 = vsel %vm5019, %v5108, -inf
        %v5111 = vmax.f32 %v5109, %v5110
        %5112 = vmax.xlane.f32.xlu0 %v5111
        %v5113 = vpop.xlane.xlu0 %5112
        %v5114 = vrot.slane %v5113, 4
        %v5115 = vmax.f32 %v5113, %v5114
        %v5116 = vrot.slane %v5115, 2
        %v5117 = vmax.f32 %v5115, %v5116
        %v5118 = vrot.slane %v5117, 1
        %v5119 = vmax.f32 %v5117, %v5118
        %s5120 = vtos %v5119
        %v5121 = vstv %s5120
        %v5122 = vmax.f32 %v5013, 0.0
        %v5123 = vmax.f32 %v5014, 0.0
        %v5124 = vsel %vm5017, %v5122, -inf
        %v5125 = vsel %vm5019, %v5123, -inf
        %v5126 = vmax.f32 %v5124, %v5125
        %5127 = vmax.xlane.f32.xlu0 %v5126
        %v5128 = vpop.xlane.xlu0 %5127
        %v5129 = vrot.slane %v5128, 4
        %v5130 = vmax.f32 %v5128, %v5129
        %v5131 = vrot.slane %v5130, 2
        %v5132 = vmax.f32 %v5130, %v5131
        %v5133 = vrot.slane %v5132, 1
        %v5134 = vmax.f32 %v5132, %v5133
        %s5135 = vtos %v5134
        %v5136 = vstv %s5135
        %vm5137 = vcmask 7168
        %v5138 = vsel %vm5137, %v5031, %v5046
        %vm5139 = vcmask 15360
        %v5140 = vsel %vm5139, %v5138, %v5061
        %vm5141 = vcmask 23552
        %v5142 = vsel %vm5141, %v5140, %v5076
        %vm5143 = vcmask 31744
        %v5144 = vsel %vm5143, %v5142, %v5091
        %vm5145 = vcmask 39936
        %v5146 = vsel %vm5145, %v5144, %v5106
        %vm5147 = vcmask 48128
        %v5148 = vsel %vm5147, %v5146, %v5121
        %vm5149 = vcmask 56320
        %v5150 = vsel %vm5149, %v5148, %v5136
        %vm5151 = vcmask 57344
        %5152 = vst.msk [vmem:[%s268] sm:$0x1] %vm5151, %v5150
        %s5153 = sand.u32 %s140, 1
        %s5154 = scalar_lea.sflag [#allocation3], %s5153
        %s5155 = sand.u32 %s140, 1
        %s5156 = scalar_lea.vmem [#allocation10], %s5155
        // Predicated region
        $region57: #{fcn_forward.1} parent=39 // pred_check
          %p5157 = pneg %p150
        $region58: #{fcn_forward.1} parent=39 // pred_check_branch
          %5159 = sbr.rel (%p5157) target = $region60
        $region59: #{fcn_forward.1} parent=39 // pred_region
          %s5161 = ssub.s32 16, 16
          %5162 = vsyncadd %s5154, %s5161
          %s5163 = smul.addr %s22, 16
          %s5164 = scalar_lea.hbm %s5, %s5163
          %s5166 = sshll.u32 %s5156, 4
          %s5167 = int_to_ptr.vmem [resolvable:$true] %s5166
          %5169 = dma.vmem_to_hbm [thread:$0]  %s5167, 16, %s5164, %s5154
        $region60: #{fcn_forward.1} parent=39 // pred_fallthru
          _
      $region40: #{fcn_forward.1} parent=5 // pred_fallthru
        _
      %p5170 = scmp.le.s32.totalorder 2, %s17
      // Predicated region
      $region61: #{fcn_forward.1} parent=5 // pred_check
        %p5171 = pneg %p5170
      $region62: #{fcn_forward.1} parent=5 // pred_check_branch
        %5173 = sbr.rel (%p5171) target = $region64
      $region63: #{fcn_forward.1} parent=5 // pred_region
        %s5174 = ssub.s32 %s17, 2
        // Predicated region
        $region65: #{fcn_forward.1} parent=63 // pred_check
          %p5175 = pneg %p156
        $region66: #{fcn_forward.1} parent=63 // pred_check_branch
          %5177 = sbr.rel (%p5175) target = $region68
        $region67: #{fcn_forward.1} parent=63 // pred_region
          %s5178 = sand.u32 %s141, 1
          %s5179 = scalar_lea.sflag [#allocation3], %s5178
          %s5180 = sand.u32 %s141, 1
          %s5181 = scalar_lea.vmem [#allocation10], %s5180
          %5182 = dma.done %s5179, 16
        $region68: #{fcn_forward.1} parent=63 // pred_fallthru
          _
      $region64: #{fcn_forward.1} parent=5 // pred_fallthru
        _
    $region6: #{fcn_forward.1} parent=1 // loop_footer
      %s21 = sadd.s32 1, %s17
    $region7: #{fcn_forward.1} parent=1 // loop_footer_branch
      %16 = sbr.rel target = $region3
    $region8: #{fcn_forward.1} parent=1 // loop_exit
      _
    %5183 = vsyncpa [#allocation3], 1
    %s5184 = scalar_lea.sflag [#allocation3], 1
    %5185 = vsyncpa %s5184, 1
    %5186 = vsyncpa [#allocation4], 1
    %s5187 = scalar_lea.sflag [#allocation4], 1
    %5188 = vsyncpa %s5187, 1
    %5189 = vsyncpa [#allocation6], 1
    %5190 = vsyncpa [#allocation9], 1

</llo_original>
